<compile_context>
chip_gen: v7x
topology: tpu7x:2x2x1
jax: 0.10.0
libtpu: 0.0.40
codegen_flags: <defaults>
</compile_context>

<pallas_src>
import jax
import jax.numpy as jnp
from jax import lax
from jax.experimental import pallas as pl
from jax.experimental.pallas import tpu as pltpu

_LANE = 128
_SUBLANE = 8


def _round_up(x, m):
    return ((x + m - 1) // m) * m


# ----------------------------------------------------------------------------
# Fused Pallas kernel: n_layers GRU layers + fc_mu in a single pallas_call.
# Grid is 1-D over batch tiles ("parallel").
# ----------------------------------------------------------------------------
def _make_encoder_kernel(n_layers, T, BT, H_pad, din0, mxu_dtype, store_dtype,
                         t_chunk):
    """Build the fused kernel. All shape parameters are static.

    Ref layout (inputs..., outputs..., scratch...):
      x_ref:    (T, BT, din0)  f32   time-major batch tile (true Din, unpadded)
      len_ref:  (BT, 1)        i32   valid lengths (0 for pad rows)
      per layer l: wih (K, 3H_pad), whh (H_pad, 3H_pad)  [mxu_dtype]
                   bih (1, 3H_pad) f32 (b_ih with b_hh r/z slices folded in)
                   bhn (1, H_pad)  f32 (n-gate slice of b_hh)
      w_mu:     (H_pad, O_pad) mxu_dtype,  b_mu: (1, O_pad) f32
      mu_ref:   (BT, O_pad) f32  (output)
      gx_ref:   (T, BT, 3H_pad) store_dtype scratch (hoisted x@Wih + bias)
      seq_ref:  (T, BT, H_pad)  store_dtype scratch (inter-layer hidden seq)
    """
    G = 3 * H_pad
    unroll = T if T <= 16 else 8  # bounded unroll: LLO visibility w/o blow-up

    def kernel(*refs):
        x_ref, len_ref = refs[0], refs[1]
        layer_refs = refs[2:2 + 4 * n_layers]
        w_mu_ref = refs[2 + 4 * n_layers]
        b_mu_ref = refs[3 + 4 * n_layers]
        mu_ref = refs[4 + 4 * n_layers]
        gx_ref = refs[5 + 4 * n_layers]
        seq_ref = refs[6 + 4 * n_layers]

        lens = len_ref[...]                                   # (BT, 1) i32

        h_last = None
        for layer in range(n_layers):
            wih_ref = layer_refs[4 * layer + 0]
            whh_ref = layer_refs[4 * layer + 1]
            bih_ref = layer_refs[4 * layer + 2]
            bhn_ref = layer_refs[4 * layer + 3]

            din = din0 if layer == 0 else H_pad
            src_ref = x_ref if layer == 0 else seq_ref

            # ---- hoisted input projection, written in T-chunks (avoids a
            #      full-T f32 temporary on top of gx_ref) ----------------------
            for t0 in range(0, T, t_chunk):
                tl = min(t_chunk, T - t0)
                xin = src_ref[t0:t0 + tl]                     # (tl, BT, din)
                x2d = xin.reshape(tl * BT, din).astype(mxu_dtype)
                gxc = jnp.dot(x2d, wih_ref[...],
                              preferred_element_type=jnp.float32) + bih_ref[...]
                gx_ref[t0:t0 + tl] = gxc.reshape(tl, BT, G).astype(store_dtype)

            write_seq = layer < n_layers - 1  # last layer only needs h_T

            def step(t, h, whh_ref=whh_ref, bhn_ref=bhn_ref,
                     write_seq=write_seq):
                gx_t = gx_ref[t].astype(jnp.float32)          # (BT, 3H_pad)
                # TODO(synk): hold whh in the MXU across the time loop
                # (pltpu.matmul_push_rhs / matmul_acc_lhs / matmul_pop).
                gh = jnp.dot(h.astype(mxu_dtype), whh_ref[...],
                             preferred_element_type=jnp.float32)
                r = jax.nn.sigmoid(gx_t[:, 0:H_pad] + gh[:, 0:H_pad])
                z = jax.nn.sigmoid(gx_t[:, H_pad:2 * H_pad]
                                   + gh[:, H_pad:2 * H_pad])
                n = jnp.tanh(gx_t[:, 2 * H_pad:]
                             + r * (gh[:, 2 * H_pad:] + bhn_ref[...]))
                h_cand = (1.0 - z) * n + z * h
                # packed-sequence semantics: only update for t < length[b]
                h_next = jnp.where(t < lens, h_cand, h)
                if write_seq:
                    seq_ref[t] = h_next.astype(store_dtype)
                return h_next

            h_last = lax.fori_loop(0, T, step,
                                   jnp.zeros((BT, H_pad), jnp.float32),
                                   unroll=unroll)

        # epilogue: fc_mu on the top layer's final hidden state (fused in)
        mu_ref[...] = (jnp.dot(h_last.astype(mxu_dtype), w_mu_ref[...],
                               preferred_element_type=jnp.float32)
                       + b_mu_ref[...])

    return kernel


# ----------------------------------------------------------------------------
# Wrapper class (JAX/Pallas equivalent of the PyTorch Encoder module)
# ----------------------------------------------------------------------------
class EncoderPallas:
    def __init__(self, input_dim, hidden_dim, output_dim, n_layers, key,
                 mxu_dtype=jnp.bfloat16, batch_tile=256):
        self.input_dim = input_dim
        self.hidden_dim = hidden_dim
        self.output_dim = output_dim
        self.n_layers = n_layers
        self.mxu_dtype = mxu_dtype
        self.store_dtype = mxu_dtype          # gx / inter-layer seq scratch dtype
        self.batch_tile = max(_SUBLANE, _round_up(batch_tile, _SUBLANE))

        self.H_pad = _round_up(hidden_dim, _LANE)
        self.O_pad = _round_up(output_dim, _LANE)

        k = 1.0 / jnp.sqrt(jnp.float32(hidden_dim))
        keys = jax.random.split(key, 4 * n_layers + 4)

        def u(kk, shape):
            return jax.random.uniform(kk, shape, jnp.float32, -k, k)

        # --- raw PyTorch-layout params (kept f32 for the pure-JAX reference) -
        self.gru_params = []
        ki = 0
        for layer in range(n_layers):
            in_dim = input_dim if layer == 0 else hidden_dim
            w_ih = u(keys[ki], (3 * hidden_dim, in_dim)); ki += 1
            w_hh = u(keys[ki], (3 * hidden_dim, hidden_dim)); ki += 1
            b_ih = u(keys[ki], (3 * hidden_dim,)); ki += 1
            b_hh = u(keys[ki], (3 * hidden_dim,)); ki += 1
            self.gru_params.append((w_ih, w_hh, b_ih, b_hh))
        self.w_mu = u(keys[ki], (output_dim, hidden_dim)); ki += 1
        self.b_mu = u(keys[ki], (output_dim,)); ki += 1
        # fc_var params kept for parity with the torch module; its output is
        # discarded in the torch forward, so no kernel is launched for it.
        self.w_var = u(keys[ki], (output_dim, hidden_dim)); ki += 1
        self.b_var = u(keys[ki], (output_dim,)); ki += 1

        # --- kernel-ready params, prepared ONCE (transposed, gate blocks
        #     lane-aligned at multiples of H_pad, zero-padded, biases folded) --
        H, Hp = hidden_dim, self.H_pad
        flat = []
        for layer, (w_ih, w_hh, b_ih, b_hh) in enumerate(self.gru_params):
            in_dim = input_dim if layer == 0 else hidden_dim
            in_pad = input_dim if layer == 0 else Hp   # layer-0 K stays true Din
            flat.append(self._pad_gate_w(w_ih, in_dim, in_pad, H, Hp))
            flat.append(self._pad_gate_w(w_hh, hidden_dim, Hp, H, Hp))
            b_fold, b_hn = self._fold_gate_biases(b_ih, b_hh, H, Hp)
            flat.append(b_fold)
            flat.append(b_hn)
        self.kernel_gru_params = flat
        self.w_mu_p = (jnp.zeros((Hp, self.O_pad), mxu_dtype)
                       .at[:H, :output_dim]
                       .set(jnp.transpose(self.w_mu).astype(mxu_dtype)))
        self.b_mu_p = (jnp.zeros((1, self.O_pad), jnp.float32)
                       .at[0, :output_dim].set(self.b_mu))

        self._fwd = jax.jit(self._forward)

    # torch GRU weight (3H, in) with gates stacked [r; z; n] ->
    # (in_pad, 3*H_pad) with each gate block starting at a lane-aligned offset.
    def _pad_gate_w(self, w, in_dim, in_pad, H, Hp):
        wt = jnp.transpose(w)                                  # (in_dim, 3H)
        out = jnp.zeros((in_pad, 3 * Hp), self.mxu_dtype)
        for g in range(3):
            out = out.at[:in_dim, g * Hp:g * Hp + H].set(
                wt[:, g * H:(g + 1) * H].astype(self.mxu_dtype))
        return out

    # Fold b_hh's r/z slices into b_ih (they are plain adds in the gate math);
    # only the n-gate slice of b_hh must stay separate (multiplied by r).
    def _fold_gate_biases(self, b_ih, b_hh, H, Hp):
        b_fold = jnp.zeros((1, 3 * Hp), jnp.float32)
        for g in range(3):
            bg = b_ih[g * H:(g + 1) * H]
            if g < 2:
                bg = bg + b_hh[g * H:(g + 1) * H]
            b_fold = b_fold.at[0, g * Hp:g * Hp + H].set(bg)
        b_hn = jnp.zeros((1, Hp), jnp.float32).at[0, :H].set(b_hh[2 * H:])
        return b_fold, b_hn

    # --- resource accounting -------------------------------------------------
    def _vmem_bytes(self, T, BT, Din):
        Hp, Op = self.H_pad, self.O_pad
        itm = jnp.dtype(self.mxu_dtype).itemsize
        sto = jnp.dtype(self.store_dtype).itemsize
        io = T * BT * Din * 4 + BT * 4 + BT * Op * 4          # x, lens, mu
        io += Hp * Op * itm + Op * 4                          # fc_mu
        for layer in range(self.n_layers):
            kin = Din if layer == 0 else Hp
            io += (kin + Hp) * 3 * Hp * itm + (3 * Hp + Hp) * 4
        scratch = T * BT * (3 * Hp + Hp) * sto                # gx + seq
        est = 2 * io + scratch                                # double-buffered I/O
        est = int(est * 1.25) + (1 << 20)                     # headroom / temps
        # NOTE: v7x has 64 MiB physical VMEM; shrink batch_tile / T if est > that.
        return max(32 << 20, min(est, 128 << 20))

    def _cost_estimate(self, T, B_pad, Din):
        Hp, Op = self.H_pad, self.O_pad
        flops = 0
        for layer in range(self.n_layers):
            kin = Din if layer == 0 else Hp
            flops += 2 * T * B_pad * kin * 3 * Hp             # hoisted projection
            flops += 2 * T * B_pad * Hp * 3 * Hp              # recurrent matmul
        flops += 2 * B_pad * Hp * Op                          # fc_mu
        transcendentals = self.n_layers * T * B_pad * 3 * Hp
        bytes_accessed = (T * B_pad * Din * 4 + B_pad * 4 + B_pad * Op * 4
                          + sum(int(w.size) * w.dtype.itemsize
                                for w in self.kernel_gru_params)
                          + int(self.w_mu_p.size) * self.w_mu_p.dtype.itemsize
                          + int(self.b_mu_p.size) * 4)
        return pl.CostEstimate(flops=int(flops),
                               transcendentals=int(transcendentals),
                               bytes_accessed=int(bytes_accessed))

    # --- forward --------------------------------------------------------------
    def _forward(self, x, lengths):
        B, T, Din = x.shape
        Hp, Op = self.H_pad, self.O_pad

        # batch tile: pad B up to a multiple of the tile; grid over tiles.
        BT = max(_SUBLANE, min(self.batch_tile, _round_up(B, _SUBLANE)))
        BT = _round_up(BT, _SUBLANE)
        B_pad = _round_up(B, BT)
        num_b_tiles = B_pad // BT
        t_chunk = max(1, min(T, max(1, 256 // BT)))

        # batch-first -> time-major; pad ONLY the batch dim (feature dim keeps
        # its true size: full-extent block dims are exempt from (8,128), and we
        # avoid a 16x HBM blow-up for small input_dim).
        x_tm = jnp.transpose(x, (1, 0, 2)).astype(jnp.float32)
        x_pad = jnp.zeros((T, B_pad, Din), jnp.float32).at[:, :B, :].set(x_tm)
        lens_pad = (jnp.zeros((B_pad, 1), jnp.int32)
                    .at[:B, 0].set(lengths.astype(jnp.int32)))

        kernel = _make_encoder_kernel(self.n_layers, T, BT, Hp, Din,
                                      self.mxu_dtype, self.store_dtype, t_chunk)

        def bcast(shape):  # whole-array block, revisited across the batch grid
            nd = len(shape)
            return pl.BlockSpec(shape, lambda b, nd=nd: (0,) * nd)

        in_specs = [pl.BlockSpec((T, BT, Din), lambda b: (0, b, 0)),
                    pl.BlockSpec((BT, 1), lambda b: (b, 0))]
        for w in self.kernel_gru_params:
            in_specs.append(bcast(w.shape))
        in_specs.append(bcast(self.w_mu_p.shape))
        in_specs.append(bcast(self.b_mu_p.shape))

        grid_spec = pltpu.PrefetchScalarGridSpec(
            num_scalar_prefetch=0,
            grid=(num_b_tiles,),
            in_specs=in_specs,
            out_specs=pl.BlockSpec((BT, Op), lambda b: (b, 0)),
            scratch_shapes=[
                pltpu.VMEM((T, BT, 3 * Hp), self.store_dtype),  # hoisted gates
                pltpu.VMEM((T, BT, Hp), self.store_dtype),      # inter-layer seq
            ])

        mu_pad = pl.pallas_call(
            kernel,
            out_shape=jax.ShapeDtypeStruct((B_pad, Op), jnp.float32),
            grid_spec=grid_spec,
            compiler_params=pltpu.CompilerParams(
                dimension_semantics=("parallel",),   # batch tiles -> 2 TCs on v7x
                vmem_limit_bytes=self._vmem_bytes(T, BT, Din)),
            cost_estimate=self._cost_estimate(T, B_pad, Din),
        )(x_pad, lens_pad, *self.kernel_gru_params, self.w_mu_p, self.b_mu_p)
        # hidden[-1].squeeze() -> (B, H); fc_mu -> (B, output_dim).
        # NOTE: padded batch rows are bias-only garbage; the slice removes them.
        return mu_pad[:B, :self.output_dim]

    def __call__(self, x, lengths):
        """x: (B, T, input_dim) f32 padded sequences (batch_first, like torch);
        lengths: (B,) int32 valid lengths (sorted descending)."""
        return self._fwd(x, lengths)


# ----------------------------------------------------------------------------
# Pure-JAX reference (same math / op order / cast points as the kernel)
# ----------------------------------------------------------------------------
def gru_encoder_ref(enc, x, lengths):
    B, T, _ = x.shape
    H = enc.hidden_dim
    cd = enc.mxu_dtype
    sd = enc.store_dtype
    seq = x.astype(jnp.float32)
    h = None
    for (w_ih, w_hh, b_ih, b_hh) in enc.gru_params:
        wih_t = jnp.transpose(w_ih).astype(cd)
        whh_t = jnp.transpose(w_hh).astype(cd)
        # same bias folding as the kernel
        b_fold = b_ih.at[:2 * H].add(b_hh[:2 * H])
        b_hn = b_hh[2 * H:]
        h = jnp.zeros((B, H), jnp.float32)
        outs = []
        for t in range(T):
            x_t = seq[:, t, :]
            gx = jnp.dot(x_t.astype(cd), wih_t,
                         preferred_element_type=jnp.float32) + b_fold
            gx = gx.astype(sd).astype(jnp.float32)       # gx scratch-dtype round
            gh = jnp.dot(h.astype(cd), whh_t, preferred_element_type=jnp.float32)
            r = jax.nn.sigmoid(gx[:, :H] + gh[:, :H])
            z = jax.nn.sigmoid(gx[:, H:2 * H] + gh[:, H:2 * H])
            n = jnp.tanh(gx[:, 2 * H:] + r * (gh[:, 2 * H:] + b_hn))
            h_cand = (1.0 - z) * n + z * h
            h = jnp.where((t < lengths)[:, None], h_cand, h)
            outs.append(h)
        seq = jnp.stack(outs, axis=1)
    return (jnp.dot(h.astype(cd), jnp.transpose(enc.w_mu).astype(cd),
                    preferred_element_type=jnp.float32) + enc.b_mu)


# ----------------------------------------------------------------------------
if __name__ == "__main__":
    input_dim, hidden_dim, output_dim, n_layers = 8, 32, 16, 2
    key = jax.random.PRNGKey(0)
    k_x, k_x2, k_p = jax.random.split(key, 3)

    # --- case 1: B=2, T=8, f32 MXU operands (tight numerical check) ----------
    B, T = 2, 8
    x = jax.random.normal(k_x, (B, T, input_dim), jnp.float32)
    lengths = jnp.array([8, 5], jnp.int32)   # sorted desc (pack_padded_sequence)
    t_idx = jnp.arange(T)[None, :, None]
    x = jnp.where(t_idx < lengths[:, None, None], x, 0.0)

    enc = EncoderPallas(input_dim, hidden_dim, output_dim, n_layers, k_p,
                        mxu_dtype=jnp.float32)
    mu = jax.block_until_ready(enc(x, lengths))
    mu_ref = gru_encoder_ref(enc, x, lengths)
    assert mu.shape == (B, output_dim)
    assert jnp.allclose(mu, mu_ref, atol=1e-5, rtol=1e-5), "f32 mismatch"

    # --- case 2: bf16 MXU operands + bf16 gx/seq scratches (default path) ----
    enc_bf16 = EncoderPallas(input_dim, hidden_dim, output_dim, n_layers, k_p,
                             mxu_dtype=jnp.bfloat16)
    mu_b = jax.block_until_ready(enc_bf16(x, lengths))
    mu_b_ref = gru_encoder_ref(enc_bf16, x, lengths)
    assert jnp.allclose(mu_b, mu_b_ref, atol=1e-2, rtol=1e-2), "bf16 mismatch"

    # --- case 3: multi-tile batch grid (exercises the "parallel" batch axis) -
    B2 = 20
    x2 = jax.random.normal(k_x2, (B2, T, input_dim), jnp.float32)
    lengths2 = jnp.sort(
        jax.random.randint(k_x2, (B2,), 1, T + 1, jnp.int32))[::-1]
    t_idx2 = jnp.arange(T)[None, :, None]
    x2 = jnp.where(t_idx2 < lengths2[:, None, None], x2, 0.0)

    enc_grid = EncoderPallas(input_dim, hidden_dim, output_dim, n_layers, k_p,
                             mxu_dtype=jnp.float32, batch_tile=8)
    mu_g = jax.block_until_ready(enc_grid(x2, lengths2))
    mu_g_ref = gru_encoder_ref(enc_grid, x2, lengths2)
    assert mu_g.shape == (B2, output_dim)
    assert jnp.allclose(mu_g, mu_g_ref, atol=1e-5, rtol=1e-5), "grid mismatch"

    print("KERNEL_OK")
</pallas_src>

<mosaic_0001>
module attributes {stable_mosaic.version = 11 : i64} {
  func.func @kernel(%arg0: i32, %arg1: memref<8x8x8xf32, #tpu.memory_space<vmem>>, %arg2: memref<8x1xi32, #tpu.memory_space<vmem>>, %arg3: memref<8x384xf32, #tpu.memory_space<vmem>>, %arg4: memref<128x384xf32, #tpu.memory_space<vmem>>, %arg5: memref<1x384xf32, #tpu.memory_space<vmem>>, %arg6: memref<1x128xf32, #tpu.memory_space<vmem>>, %arg7: memref<128x384xf32, #tpu.memory_space<vmem>>, %arg8: memref<128x384xf32, #tpu.memory_space<vmem>>, %arg9: memref<1x384xf32, #tpu.memory_space<vmem>>, %arg10: memref<1x128xf32, #tpu.memory_space<vmem>>, %arg11: memref<128x128xf32, #tpu.memory_space<vmem>>, %arg12: memref<1x128xf32, #tpu.memory_space<vmem>>, %arg13: memref<8x128xf32, #tpu.memory_space<vmem>>, %arg14: memref<8x8x384xf32, #tpu.memory_space<vmem>>, %arg15: memref<8x8x128xf32, #tpu.memory_space<vmem>>) attributes {dimension_semantics = [#tpu.dimension_semantics<parallel>], iteration_bounds = array<i64: 1>, scalar_prefetch = 0 : i64, scratch_operands = 2 : i64, tpu.core_type = #tpu.core_type<tc>, window_params = [{transform_indices = @transform_0, window_bounds = array<i64: 8, 8, 8>}, {transform_indices = @transform_1, window_bounds = array<i64: 8, 1>}, {pipeline_mode = #tpu.pipeline_mode<synchronous>, transform_indices = @transform_2, window_bounds = array<i64: 8, 384>}, {pipeline_mode = #tpu.pipeline_mode<synchronous>, transform_indices = @transform_3, window_bounds = array<i64: 128, 384>}, {pipeline_mode = #tpu.pipeline_mode<synchronous>, transform_indices = @transform_4, window_bounds = array<i64: 1, 384>}, {pipeline_mode = #tpu.pipeline_mode<synchronous>, transform_indices = @transform_5, window_bounds = array<i64: 1, 128>}, {pipeline_mode = #tpu.pipeline_mode<synchronous>, transform_indices = @transform_6, window_bounds = array<i64: 128, 384>}, {pipeline_mode = #tpu.pipeline_mode<synchronous>, transform_indices = @transform_7, window_bounds = array<i64: 128, 384>}, {pipeline_mode = #tpu.pipeline_mode<synchronous>, transform_indices = @transform_8, window_bounds = array<i64: 1, 384>}, {pipeline_mode = #tpu.pipeline_mode<synchronous>, transform_indices = @transform_9, window_bounds = array<i64: 1, 128>}, {pipeline_mode = #tpu.pipeline_mode<synchronous>, transform_indices = @transform_10, window_bounds = array<i64: 128, 128>}, {pipeline_mode = #tpu.pipeline_mode<synchronous>, transform_indices = @transform_11, window_bounds = array<i64: 1, 128>}, {transform_indices = @transform_12, window_bounds = array<i64: 8, 128>}]} {
    %c0 = arith.constant 0 : index
    %c0_0 = arith.constant 0 : index
    %0 = vector.load %arg2[%c0, %c0_0] : memref<8x1xi32, #tpu.memory_space<vmem>>, vector<8x1xi32>
    %c0_1 = arith.constant 0 : index
    %c0_2 = arith.constant 0 : index
    %c0_3 = arith.constant 0 : index
    %1 = vector.load %arg1[%c0_1, %c0_2, %c0_3] : memref<8x8x8xf32, #tpu.memory_space<vmem>>, vector<8x8x8xf32>
    %2 = vector.shape_cast %1 : vector<8x8x8xf32> to vector<64x8xf32>
    %c0_4 = arith.constant 0 : index
    %c0_5 = arith.constant 0 : index
    %3 = vector.load %arg3[%c0_4, %c0_5] : memref<8x384xf32, #tpu.memory_space<vmem>>, vector<8x384xf32>
    %cst = arith.constant dense<0.000000e+00> : vector<64x384xf32>
    %4 = tpu.matmul %2, %3, %cst {dimension_numbers = #tpu.dot_dimension_numbers<[1], [0], [0], [1], [0, 0, 1, 1], [], []>} : vector<64x8xf32>, vector<8x384xf32>, vector<64x384xf32> -> vector<64x384xf32>
    %c0_6 = arith.constant 0 : index
    %c0_7 = arith.constant 0 : index
    %5 = vector.load %arg5[%c0_6, %c0_7] : memref<1x384xf32, #tpu.memory_space<vmem>>, vector<1x384xf32>
    %6 = vector.broadcast %5 : vector<1x384xf32> to vector<64x384xf32>
    %7 = arith.addf %4, %6 : vector<64x384xf32>
    %8 = vector.shape_cast %7 : vector<64x384xf32> to vector<8x8x384xf32>
    %c0_8 = arith.constant 0 : index
    %c0_9 = arith.constant 0 : index
    %c0_10 = arith.constant 0 : index
    %9 = vector.load %arg14[%c0_8, %c0_9, %c0_10] : memref<8x8x384xf32, #tpu.memory_space<vmem>>, vector<8x8x384xf32>
    tpu.vector_store %arg14[%c0_8, %c0_9, %c0_10], %8 {strides = array<i32>} : memref<8x8x384xf32, #tpu.memory_space<vmem>>, vector<8x8x384xf32>,
    %cst_11 = arith.constant 0.000000e+00 : f32
    %10 = vector.broadcast %cst_11 : f32 to vector<8x128xf32>
    %c0_i32 = arith.constant 0 : i32
    %11 = arith.index_cast %c0_i32 : i32 to index
    %c0_12 = arith.constant 0 : index
    %c0_13 = arith.constant 0 : index
    %12 = vector.load %arg14[%11, %c0_12, %c0_13] : memref<8x8x384xf32, #tpu.memory_space<vmem>>, vector<1x8x384xf32>
    %13 = vector.shape_cast %12 : vector<1x8x384xf32> to vector<8x384xf32>
    %c0_14 = arith.constant 0 : index
    %c0_15 = arith.constant 0 : index
    %14 = vector.load %arg4[%c0_14, %c0_15] : memref<128x384xf32, #tpu.memory_space<vmem>>, vector<128x384xf32>
    %cst_16 = arith.constant dense<0.000000e+00> : vector<8x384xf32>
    %15 = tpu.matmul %10, %14, %cst_16 {dimension_numbers = #tpu.dot_dimension_numbers<[1], [0], [0], [1], [0, 0, 1, 1], [], []>} : vector<8x128xf32>, vector<128x384xf32>, vector<8x384xf32> -> vector<8x384xf32>
    %16 = vector.extract_strided_slice %13 {offsets = [0, 0], sizes = [8, 128], strides = [1, 1]} : vector<8x384xf32> to vector<8x128xf32>
    %17 = vector.extract_strided_slice %15 {offsets = [0, 0], sizes = [8, 128], strides = [1, 1]} : vector<8x384xf32> to vector<8x128xf32>
    %18 = arith.addf %16, %17 : vector<8x128xf32>
    %19 = arith.negf %18 : vector<8x128xf32>
    %20 = math.exp %19 : vector<8x128xf32>
    %cst_17 = arith.constant 1.000000e+00 : f32
    %21 = vector.broadcast %cst_17 : f32 to vector<8x128xf32>
    %22 = arith.addf %21, %20 : vector<8x128xf32>
    %23 = arith.divf %21, %22 : vector<8x128xf32>
    %24 = vector.extract_strided_slice %13 {offsets = [0, 128], sizes = [8, 128], strides = [1, 1]} : vector<8x384xf32> to vector<8x128xf32>
    %25 = vector.extract_strided_slice %15 {offsets = [0, 128], sizes = [8, 128], strides = [1, 1]} : vector<8x384xf32> to vector<8x128xf32>
    %26 = arith.addf %24, %25 : vector<8x128xf32>
    %27 = arith.negf %26 : vector<8x128xf32>
    %28 = math.exp %27 : vector<8x128xf32>
    %cst_18 = arith.constant 1.000000e+00 : f32
    %29 = vector.broadcast %cst_18 : f32 to vector<8x128xf32>
    %30 = arith.addf %29, %28 : vector<8x128xf32>
    %31 = arith.divf %29, %30 : vector<8x128xf32>
    %32 = vector.extract_strided_slice %13 {offsets = [0, 256], sizes = [8, 128], strides = [1, 1]} : vector<8x384xf32> to vector<8x128xf32>
    %33 = vector.extract_strided_slice %15 {offsets = [0, 256], sizes = [8, 128], strides = [1, 1]} : vector<8x384xf32> to vector<8x128xf32>
    %c0_19 = arith.constant 0 : index
    %c0_20 = arith.constant 0 : index
    %34 = vector.load %arg6[%c0_19, %c0_20] : memref<1x128xf32, #tpu.memory_space<vmem>>, vector<1x128xf32>
    %35 = vector.broadcast %34 : vector<1x128xf32> to vector<8x128xf32>
    %36 = arith.addf %33, %35 : vector<8x128xf32>
    %37 = arith.mulf %23, %36 : vector<8x128xf32>
    %38 = arith.addf %32, %37 : vector<8x128xf32>
    %39 = math.tanh %38 : vector<8x128xf32>
    %cst_21 = arith.constant 1.000000e+00 : f32
    %40 = vector.broadcast %cst_21 : f32 to vector<8x128xf32>
    %41 = arith.subf %40, %31 : vector<8x128xf32>
    %42 = arith.mulf %41, %39 : vector<8x128xf32>
    %43 = arith.mulf %31, %10 : vector<8x128xf32>
    %44 = arith.addf %42, %43 : vector<8x128xf32>
    %45 = vector.broadcast %c0_i32 : i32 to vector<8x1xi32>
    %46 = arith.cmpi slt, %45, %0 : vector<8x1xi32>
    %47 = vector.shape_cast %46 : vector<8x1xi1> to vector<8x1xi1>
    %48 = vector.broadcast %47 : vector<8x1xi1> to vector<8x128xi1>
    %49 = arith.select %48, %44, %10 : vector<8x128xi1>, vector<8x128xf32>
    %50 = arith.index_cast %c0_i32 : i32 to index
    %c0_22 = arith.constant 0 : index
    %c0_23 = arith.constant 0 : index
    %51 = vector.load %arg15[%50, %c0_22, %c0_23] : memref<8x8x128xf32, #tpu.memory_space<vmem>>, vector<1x8x128xf32>
    %52 = vector.shape_cast %51 : vector<1x8x128xf32> to vector<8x128xf32>
    %53 = vector.shape_cast %49 : vector<8x128xf32> to vector<1x8x128xf32>
    tpu.vector_store %arg15[%50, %c0_22, %c0_23], %53 {strides = array<i32>} : memref<8x8x128xf32, #tpu.memory_space<vmem>>, vector<1x8x128xf32>,
    %c1_i32 = arith.constant 1 : i32
    %54 = arith.index_cast %c1_i32 : i32 to index
    %c0_24 = arith.constant 0 : index
    %c0_25 = arith.constant 0 : index
    %55 = vector.load %arg14[%54, %c0_24, %c0_25] : memref<8x8x384xf32, #tpu.memory_space<vmem>>, vector<1x8x384xf32>
    %56 = vector.shape_cast %55 : vector<1x8x384xf32> to vector<8x384xf32>
    %c0_26 = arith.constant 0 : index
    %c0_27 = arith.constant 0 : index
    %57 = vector.load %arg4[%c0_26, %c0_27] : memref<128x384xf32, #tpu.memory_space<vmem>>, vector<128x384xf32>
    %cst_28 = arith.constant dense<0.000000e+00> : vector<8x384xf32>
    %58 = tpu.matmul %49, %57, %cst_28 {dimension_numbers = #tpu.dot_dimension_numbers<[1], [0], [0], [1], [0, 0, 1, 1], [], []>} : vector<8x128xf32>, vector<128x384xf32>, vector<8x384xf32> -> vector<8x384xf32>
    %59 = vector.extract_strided_slice %56 {offsets = [0, 0], sizes = [8, 128], strides = [1, 1]} : vector<8x384xf32> to vector<8x128xf32>
    %60 = vector.extract_strided_slice %58 {offsets = [0, 0], sizes = [8, 128], strides = [1, 1]} : vector<8x384xf32> to vector<8x128xf32>
    %61 = arith.addf %59, %60 : vector<8x128xf32>
    %62 = arith.negf %61 : vector<8x128xf32>
    %63 = math.exp %62 : vector<8x128xf32>
    %cst_29 = arith.constant 1.000000e+00 : f32
    %64 = vector.broadcast %cst_29 : f32 to vector<8x128xf32>
    %65 = arith.addf %64, %63 : vector<8x128xf32>
    %66 = arith.divf %64, %65 : vector<8x128xf32>
    %67 = vector.extract_strided_slice %56 {offsets = [0, 128], sizes = [8, 128], strides = [1, 1]} : vector<8x384xf32> to vector<8x128xf32>
    %68 = vector.extract_strided_slice %58 {offsets = [0, 128], sizes = [8, 128], strides = [1, 1]} : vector<8x384xf32> to vector<8x128xf32>
    %69 = arith.addf %67, %68 : vector<8x128xf32>
    %70 = arith.negf %69 : vector<8x128xf32>
    %71 = math.exp %70 : vector<8x128xf32>
    %cst_30 = arith.constant 1.000000e+00 : f32
    %72 = vector.broadcast %cst_30 : f32 to vector<8x128xf32>
    %73 = arith.addf %72, %71 : vector<8x128xf32>
    %74 = arith.divf %72, %73 : vector<8x128xf32>
    %75 = vector.extract_strided_slice %56 {offsets = [0, 256], sizes = [8, 128], strides = [1, 1]} : vector<8x384xf32> to vector<8x128xf32>
    %76 = vector.extract_strided_slice %58 {offsets = [0, 256], sizes = [8, 128], strides = [1, 1]} : vector<8x384xf32> to vector<8x128xf32>
    %c0_31 = arith.constant 0 : index
    %c0_32 = arith.constant 0 : index
    %77 = vector.load %arg6[%c0_31, %c0_32] : memref<1x128xf32, #tpu.memory_space<vmem>>, vector<1x128xf32>
    %78 = vector.broadcast %77 : vector<1x128xf32> to vector<8x128xf32>
    %79 = arith.addf %76, %78 : vector<8x128xf32>
    %80 = arith.mulf %66, %79 : vector<8x128xf32>
    %81 = arith.addf %75, %80 : vector<8x128xf32>
    %82 = math.tanh %81 : vector<8x128xf32>
    %cst_33 = arith.constant 1.000000e+00 : f32
    %83 = vector.broadcast %cst_33 : f32 to vector<8x128xf32>
    %84 = arith.subf %83, %74 : vector<8x128xf32>
    %85 = arith.mulf %84, %82 : vector<8x128xf32>
    %86 = arith.mulf %74, %49 : vector<8x128xf32>
    %87 = arith.addf %85, %86 : vector<8x128xf32>
    %88 = vector.broadcast %c1_i32 : i32 to vector<8x1xi32>
    %89 = arith.cmpi slt, %88, %0 : vector<8x1xi32>
    %90 = vector.shape_cast %89 : vector<8x1xi1> to vector<8x1xi1>
    %91 = vector.broadcast %90 : vector<8x1xi1> to vector<8x128xi1>
    %92 = arith.select %91, %87, %49 : vector<8x128xi1>, vector<8x128xf32>
    %93 = arith.index_cast %c1_i32 : i32 to index
    %c0_34 = arith.constant 0 : index
    %c0_35 = arith.constant 0 : index
    %94 = vector.load %arg15[%93, %c0_34, %c0_35] : memref<8x8x128xf32, #tpu.memory_space<vmem>>, vector<1x8x128xf32>
    %95 = vector.shape_cast %94 : vector<1x8x128xf32> to vector<8x128xf32>
    %96 = vector.shape_cast %92 : vector<8x128xf32> to vector<1x8x128xf32>
    tpu.vector_store %arg15[%93, %c0_34, %c0_35], %96 {strides = array<i32>} : memref<8x8x128xf32, #tpu.memory_space<vmem>>, vector<1x8x128xf32>,
    %c2_i32 = arith.constant 2 : i32
    %97 = arith.index_cast %c2_i32 : i32 to index
    %c0_36 = arith.constant 0 : index
    %c0_37 = arith.constant 0 : index
    %98 = vector.load %arg14[%97, %c0_36, %c0_37] : memref<8x8x384xf32, #tpu.memory_space<vmem>>, vector<1x8x384xf32>
    %99 = vector.shape_cast %98 : vector<1x8x384xf32> to vector<8x384xf32>
    %c0_38 = arith.constant 0 : index
    %c0_39 = arith.constant 0 : index
    %100 = vector.load %arg4[%c0_38, %c0_39] : memref<128x384xf32, #tpu.memory_space<vmem>>, vector<128x384xf32>
    %cst_40 = arith.constant dense<0.000000e+00> : vector<8x384xf32>
    %101 = tpu.matmul %92, %100, %cst_40 {dimension_numbers = #tpu.dot_dimension_numbers<[1], [0], [0], [1], [0, 0, 1, 1], [], []>} : vector<8x128xf32>, vector<128x384xf32>, vector<8x384xf32> -> vector<8x384xf32>
    %102 = vector.extract_strided_slice %99 {offsets = [0, 0], sizes = [8, 128], strides = [1, 1]} : vector<8x384xf32> to vector<8x128xf32>
    %103 = vector.extract_strided_slice %101 {offsets = [0, 0], sizes = [8, 128], strides = [1, 1]} : vector<8x384xf32> to vector<8x128xf32>
    %104 = arith.addf %102, %103 : vector<8x128xf32>
    %105 = arith.negf %104 : vector<8x128xf32>
    %106 = math.exp %105 : vector<8x128xf32>
    %cst_41 = arith.constant 1.000000e+00 : f32
    %107 = vector.broadcast %cst_41 : f32 to vector<8x128xf32>
    %108 = arith.addf %107, %106 : vector<8x128xf32>
    %109 = arith.divf %107, %108 : vector<8x128xf32>
    %110 = vector.extract_strided_slice %99 {offsets = [0, 128], sizes = [8, 128], strides = [1, 1]} : vector<8x384xf32> to vector<8x128xf32>
    %111 = vector.extract_strided_slice %101 {offsets = [0, 128], sizes = [8, 128], strides = [1, 1]} : vector<8x384xf32> to vector<8x128xf32>
    %112 = arith.addf %110, %111 : vector<8x128xf32>
    %113 = arith.negf %112 : vector<8x128xf32>
    %114 = math.exp %113 : vector<8x128xf32>
    %cst_42 = arith.constant 1.000000e+00 : f32
    %115 = vector.broadcast %cst_42 : f32 to vector<8x128xf32>
    %116 = arith.addf %115, %114 : vector<8x128xf32>
    %117 = arith.divf %115, %116 : vector<8x128xf32>
    %118 = vector.extract_strided_slice %99 {offsets = [0, 256], sizes = [8, 128], strides = [1, 1]} : vector<8x384xf32> to vector<8x128xf32>
    %119 = vector.extract_strided_slice %101 {offsets = [0, 256], sizes = [8, 128], strides = [1, 1]} : vector<8x384xf32> to vector<8x128xf32>
    %c0_43 = arith.constant 0 : index
    %c0_44 = arith.constant 0 : index
    %120 = vector.load %arg6[%c0_43, %c0_44] : memref<1x128xf32, #tpu.memory_space<vmem>>, vector<1x128xf32>
    %121 = vector.broadcast %120 : vector<1x128xf32> to vector<8x128xf32>
    %122 = arith.addf %119, %121 : vector<8x128xf32>
    %123 = arith.mulf %109, %122 : vector<8x128xf32>
    %124 = arith.addf %118, %123 : vector<8x128xf32>
    %125 = math.tanh %124 : vector<8x128xf32>
    %cst_45 = arith.constant 1.000000e+00 : f32
    %126 = vector.broadcast %cst_45 : f32 to vector<8x128xf32>
    %127 = arith.subf %126, %117 : vector<8x128xf32>
    %128 = arith.mulf %127, %125 : vector<8x128xf32>
    %129 = arith.mulf %117, %92 : vector<8x128xf32>
    %130 = arith.addf %128, %129 : vector<8x128xf32>
    %131 = vector.broadcast %c2_i32 : i32 to vector<8x1xi32>
    %132 = arith.cmpi slt, %131, %0 : vector<8x1xi32>
    %133 = vector.shape_cast %132 : vector<8x1xi1> to vector<8x1xi1>
    %134 = vector.broadcast %133 : vector<8x1xi1> to vector<8x128xi1>
    %135 = arith.select %134, %130, %92 : vector<8x128xi1>, vector<8x128xf32>
    %136 = arith.index_cast %c2_i32 : i32 to index
    %c0_46 = arith.constant 0 : index
    %c0_47 = arith.constant 0 : index
    %137 = vector.load %arg15[%136, %c0_46, %c0_47] : memref<8x8x128xf32, #tpu.memory_space<vmem>>, vector<1x8x128xf32>
    %138 = vector.shape_cast %137 : vector<1x8x128xf32> to vector<8x128xf32>
    %139 = vector.shape_cast %135 : vector<8x128xf32> to vector<1x8x128xf32>
    tpu.vector_store %arg15[%136, %c0_46, %c0_47], %139 {strides = array<i32>} : memref<8x8x128xf32, #tpu.memory_space<vmem>>, vector<1x8x128xf32>,
    %c3_i32 = arith.constant 3 : i32
    %140 = arith.index_cast %c3_i32 : i32 to index
    %c0_48 = arith.constant 0 : index
    %c0_49 = arith.constant 0 : index
    %141 = vector.load %arg14[%140, %c0_48, %c0_49] : memref<8x8x384xf32, #tpu.memory_space<vmem>>, vector<1x8x384xf32>
    %142 = vector.shape_cast %141 : vector<1x8x384xf32> to vector<8x384xf32>
    %c0_50 = arith.constant 0 : index
    %c0_51 = arith.constant 0 : index
    %143 = vector.load %arg4[%c0_50, %c0_51] : memref<128x384xf32, #tpu.memory_space<vmem>>, vector<128x384xf32>
    %cst_52 = arith.constant dense<0.000000e+00> : vector<8x384xf32>
    %144 = tpu.matmul %135, %143, %cst_52 {dimension_numbers = #tpu.dot_dimension_numbers<[1], [0], [0], [1], [0, 0, 1, 1], [], []>} : vector<8x128xf32>, vector<128x384xf32>, vector<8x384xf32> -> vector<8x384xf32>
    %145 = vector.extract_strided_slice %142 {offsets = [0, 0], sizes = [8, 128], strides = [1, 1]} : vector<8x384xf32> to vector<8x128xf32>
    %146 = vector.extract_strided_slice %144 {offsets = [0, 0], sizes = [8, 128], strides = [1, 1]} : vector<8x384xf32> to vector<8x128xf32>
    %147 = arith.addf %145, %146 : vector<8x128xf32>
    %148 = arith.negf %147 : vector<8x128xf32>
    %149 = math.exp %148 : vector<8x128xf32>
    %cst_53 = arith.constant 1.000000e+00 : f32
    %150 = vector.broadcast %cst_53 : f32 to vector<8x128xf32>
    %151 = arith.addf %150, %149 : vector<8x128xf32>
    %152 = arith.divf %150, %151 : vector<8x128xf32>
    %153 = vector.extract_strided_slice %142 {offsets = [0, 128], sizes = [8, 128], strides = [1, 1]} : vector<8x384xf32> to vector<8x128xf32>
    %154 = vector.extract_strided_slice %144 {offsets = [0, 128], sizes = [8, 128], strides = [1, 1]} : vector<8x384xf32> to vector<8x128xf32>
    %155 = arith.addf %153, %154 : vector<8x128xf32>
    %156 = arith.negf %155 : vector<8x128xf32>
    %157 = math.exp %156 : vector<8x128xf32>
    %cst_54 = arith.constant 1.000000e+00 : f32
    %158 = vector.broadcast %cst_54 : f32 to vector<8x128xf32>
    %159 = arith.addf %158, %157 : vector<8x128xf32>
    %160 = arith.divf %158, %159 : vector<8x128xf32>
    %161 = vector.extract_strided_slice %142 {offsets = [0, 256], sizes = [8, 128], strides = [1, 1]} : vector<8x384xf32> to vector<8x128xf32>
    %162 = vector.extract_strided_slice %144 {offsets = [0, 256], sizes = [8, 128], strides = [1, 1]} : vector<8x384xf32> to vector<8x128xf32>
    %c0_55 = arith.constant 0 : index
    %c0_56 = arith.constant 0 : index
    %163 = vector.load %arg6[%c0_55, %c0_56] : memref<1x128xf32, #tpu.memory_space<vmem>>, vector<1x128xf32>
    %164 = vector.broadcast %163 : vector<1x128xf32> to vector<8x128xf32>
    %165 = arith.addf %162, %164 : vector<8x128xf32>
    %166 = arith.mulf %152, %165 : vector<8x128xf32>
    %167 = arith.addf %161, %166 : vector<8x128xf32>
    %168 = math.tanh %167 : vector<8x128xf32>
    %cst_57 = arith.constant 1.000000e+00 : f32
    %169 = vector.broadcast %cst_57 : f32 to vector<8x128xf32>
    %170 = arith.subf %169, %160 : vector<8x128xf32>
    %171 = arith.mulf %170, %168 : vector<8x128xf32>
    %172 = arith.mulf %160, %135 : vector<8x128xf32>
    %173 = arith.addf %171, %172 : vector<8x128xf32>
    %174 = vector.broadcast %c3_i32 : i32 to vector<8x1xi32>
    %175 = arith.cmpi slt, %174, %0 : vector<8x1xi32>
    %176 = vector.shape_cast %175 : vector<8x1xi1> to vector<8x1xi1>
    %177 = vector.broadcast %176 : vector<8x1xi1> to vector<8x128xi1>
    %178 = arith.select %177, %173, %135 : vector<8x128xi1>, vector<8x128xf32>
    %179 = arith.index_cast %c3_i32 : i32 to index
    %c0_58 = arith.constant 0 : index
    %c0_59 = arith.constant 0 : index
    %180 = vector.load %arg15[%179, %c0_58, %c0_59] : memref<8x8x128xf32, #tpu.memory_space<vmem>>, vector<1x8x128xf32>
    %181 = vector.shape_cast %180 : vector<1x8x128xf32> to vector<8x128xf32>
    %182 = vector.shape_cast %178 : vector<8x128xf32> to vector<1x8x128xf32>
    tpu.vector_store %arg15[%179, %c0_58, %c0_59], %182 {strides = array<i32>} : memref<8x8x128xf32, #tpu.memory_space<vmem>>, vector<1x8x128xf32>,
    %c4_i32 = arith.constant 4 : i32
    %183 = arith.index_cast %c4_i32 : i32 to index
    %c0_60 = arith.constant 0 : index
    %c0_61 = arith.constant 0 : index
    %184 = vector.load %arg14[%183, %c0_60, %c0_61] : memref<8x8x384xf32, #tpu.memory_space<vmem>>, vector<1x8x384xf32>
    %185 = vector.shape_cast %184 : vector<1x8x384xf32> to vector<8x384xf32>
    %c0_62 = arith.constant 0 : index
    %c0_63 = arith.constant 0 : index
    %186 = vector.load %arg4[%c0_62, %c0_63] : memref<128x384xf32, #tpu.memory_space<vmem>>, vector<128x384xf32>
    %cst_64 = arith.constant dense<0.000000e+00> : vector<8x384xf32>
    %187 = tpu.matmul %178, %186, %cst_64 {dimension_numbers = #tpu.dot_dimension_numbers<[1], [0], [0], [1], [0, 0, 1, 1], [], []>} : vector<8x128xf32>, vector<128x384xf32>, vector<8x384xf32> -> vector<8x384xf32>
    %188 = vector.extract_strided_slice %185 {offsets = [0, 0], sizes = [8, 128], strides = [1, 1]} : vector<8x384xf32> to vector<8x128xf32>
    %189 = vector.extract_strided_slice %187 {offsets = [0, 0], sizes = [8, 128], strides = [1, 1]} : vector<8x384xf32> to vector<8x128xf32>
    %190 = arith.addf %188, %189 : vector<8x128xf32>
    %191 = arith.negf %190 : vector<8x128xf32>
    %192 = math.exp %191 : vector<8x128xf32>
    %cst_65 = arith.constant 1.000000e+00 : f32
    %193 = vector.broadcast %cst_65 : f32 to vector<8x128xf32>
    %194 = arith.addf %193, %192 : vector<8x128xf32>
    %195 = arith.divf %193, %194 : vector<8x128xf32>
    %196 = vector.extract_strided_slice %185 {offsets = [0, 128], sizes = [8, 128], strides = [1, 1]} : vector<8x384xf32> to vector<8x128xf32>
    %197 = vector.extract_strided_slice %187 {offsets = [0, 128], sizes = [8, 128], strides = [1, 1]} : vector<8x384xf32> to vector<8x128xf32>
    %198 = arith.addf %196, %197 : vector<8x128xf32>
    %199 = arith.negf %198 : vector<8x128xf32>
    %200 = math.exp %199 : vector<8x128xf32>
    %cst_66 = arith.constant 1.000000e+00 : f32
    %201 = vector.broadcast %cst_66 : f32 to vector<8x128xf32>
    %202 = arith.addf %201, %200 : vector<8x128xf32>
    %203 = arith.divf %201, %202 : vector<8x128xf32>
    %204 = vector.extract_strided_slice %185 {offsets = [0, 256], sizes = [8, 128], strides = [1, 1]} : vector<8x384xf32> to vector<8x128xf32>
    %205 = vector.extract_strided_slice %187 {offsets = [0, 256], sizes = [8, 128], strides = [1, 1]} : vector<8x384xf32> to vector<8x128xf32>
    %c0_67 = arith.constant 0 : index
    %c0_68 = arith.constant 0 : index
    %206 = vector.load %arg6[%c0_67, %c0_68] : memref<1x128xf32, #tpu.memory_space<vmem>>, vector<1x128xf32>
    %207 = vector.broadcast %206 : vector<1x128xf32> to vector<8x128xf32>
    %208 = arith.addf %205, %207 : vector<8x128xf32>
    %209 = arith.mulf %195, %208 : vector<8x128xf32>
    %210 = arith.addf %204, %209 : vector<8x128xf32>
    %211 = math.tanh %210 : vector<8x128xf32>
    %cst_69 = arith.constant 1.000000e+00 : f32
    %212 = vector.broadcast %cst_69 : f32 to vector<8x128xf32>
    %213 = arith.subf %212, %203 : vector<8x128xf32>
    %214 = arith.mulf %213, %211 : vector<8x128xf32>
    %215 = arith.mulf %203, %178 : vector<8x128xf32>
    %216 = arith.addf %214, %215 : vector<8x128xf32>
    %217 = vector.broadcast %c4_i32 : i32 to vector<8x1xi32>
    %218 = arith.cmpi slt, %217, %0 : vector<8x1xi32>
    %219 = vector.shape_cast %218 : vector<8x1xi1> to vector<8x1xi1>
    %220 = vector.broadcast %219 : vector<8x1xi1> to vector<8x128xi1>
    %221 = arith.select %220, %216, %178 : vector<8x128xi1>, vector<8x128xf32>
    %222 = arith.index_cast %c4_i32 : i32 to index
    %c0_70 = arith.constant 0 : index
    %c0_71 = arith.constant 0 : index
    %223 = vector.load %arg15[%222, %c0_70, %c0_71] : memref<8x8x128xf32, #tpu.memory_space<vmem>>, vector<1x8x128xf32>
    %224 = vector.shape_cast %223 : vector<1x8x128xf32> to vector<8x128xf32>
    %225 = vector.shape_cast %221 : vector<8x128xf32> to vector<1x8x128xf32>
    tpu.vector_store %arg15[%222, %c0_70, %c0_71], %225 {strides = array<i32>} : memref<8x8x128xf32, #tpu.memory_space<vmem>>, vector<1x8x128xf32>,
    %c5_i32 = arith.constant 5 : i32
    %226 = arith.index_cast %c5_i32 : i32 to index
    %c0_72 = arith.constant 0 : index
    %c0_73 = arith.constant 0 : index
    %227 = vector.load %arg14[%226, %c0_72, %c0_73] : memref<8x8x384xf32, #tpu.memory_space<vmem>>, vector<1x8x384xf32>
    %228 = vector.shape_cast %227 : vector<1x8x384xf32> to vector<8x384xf32>
    %c0_74 = arith.constant 0 : index
    %c0_75 = arith.constant 0 : index
    %229 = vector.load %arg4[%c0_74, %c0_75] : memref<128x384xf32, #tpu.memory_space<vmem>>, vector<128x384xf32>
    %cst_76 = arith.constant dense<0.000000e+00> : vector<8x384xf32>
    %230 = tpu.matmul %221, %229, %cst_76 {dimension_numbers = #tpu.dot_dimension_numbers<[1], [0], [0], [1], [0, 0, 1, 1], [], []>} : vector<8x128xf32>, vector<128x384xf32>, vector<8x384xf32> -> vector<8x384xf32>
    %231 = vector.extract_strided_slice %228 {offsets = [0, 0], sizes = [8, 128], strides = [1, 1]} : vector<8x384xf32> to vector<8x128xf32>
    %232 = vector.extract_strided_slice %230 {offsets = [0, 0], sizes = [8, 128], strides = [1, 1]} : vector<8x384xf32> to vector<8x128xf32>
    %233 = arith.addf %231, %232 : vector<8x128xf32>
    %234 = arith.negf %233 : vector<8x128xf32>
    %235 = math.exp %234 : vector<8x128xf32>
    %cst_77 = arith.constant 1.000000e+00 : f32
    %236 = vector.broadcast %cst_77 : f32 to vector<8x128xf32>
    %237 = arith.addf %236, %235 : vector<8x128xf32>
    %238 = arith.divf %236, %237 : vector<8x128xf32>
    %239 = vector.extract_strided_slice %228 {offsets = [0, 128], sizes = [8, 128], strides = [1, 1]} : vector<8x384xf32> to vector<8x128xf32>
    %240 = vector.extract_strided_slice %230 {offsets = [0, 128], sizes = [8, 128], strides = [1, 1]} : vector<8x384xf32> to vector<8x128xf32>
    %241 = arith.addf %239, %240 : vector<8x128xf32>
    %242 = arith.negf %241 : vector<8x128xf32>
    %243 = math.exp %242 : vector<8x128xf32>
    %cst_78 = arith.constant 1.000000e+00 : f32
    %244 = vector.broadcast %cst_78 : f32 to vector<8x128xf32>
    %245 = arith.addf %244, %243 : vector<8x128xf32>
    %246 = arith.divf %244, %245 : vector<8x128xf32>
    %247 = vector.extract_strided_slice %228 {offsets = [0, 256], sizes = [8, 128], strides = [1, 1]} : vector<8x384xf32> to vector<8x128xf32>
    %248 = vector.extract_strided_slice %230 {offsets = [0, 256], sizes = [8, 128], strides = [1, 1]} : vector<8x384xf32> to vector<8x128xf32>
    %c0_79 = arith.constant 0 : index
    %c0_80 = arith.constant 0 : index
    %249 = vector.load %arg6[%c0_79, %c0_80] : memref<1x128xf32, #tpu.memory_space<vmem>>, vector<1x128xf32>
    %250 = vector.broadcast %249 : vector<1x128xf32> to vector<8x128xf32>
    %251 = arith.addf %248, %250 : vector<8x128xf32>
    %252 = arith.mulf %238, %251 : vector<8x128xf32>
    %253 = arith.addf %247, %252 : vector<8x128xf32>
    %254 = math.tanh %253 : vector<8x128xf32>
    %cst_81 = arith.constant 1.000000e+00 : f32
    %255 = vector.broadcast %cst_81 : f32 to vector<8x128xf32>
    %256 = arith.subf %255, %246 : vector<8x128xf32>
    %257 = arith.mulf %256, %254 : vector<8x128xf32>
    %258 = arith.mulf %246, %221 : vector<8x128xf32>
    %259 = arith.addf %257, %258 : vector<8x128xf32>
    %260 = vector.broadcast %c5_i32 : i32 to vector<8x1xi32>
    %261 = arith.cmpi slt, %260, %0 : vector<8x1xi32>
    %262 = vector.shape_cast %261 : vector<8x1xi1> to vector<8x1xi1>
    %263 = vector.broadcast %262 : vector<8x1xi1> to vector<8x128xi1>
    %264 = arith.select %263, %259, %221 : vector<8x128xi1>, vector<8x128xf32>
    %265 = arith.index_cast %c5_i32 : i32 to index
    %c0_82 = arith.constant 0 : index
    %c0_83 = arith.constant 0 : index
    %266 = vector.load %arg15[%265, %c0_82, %c0_83] : memref<8x8x128xf32, #tpu.memory_space<vmem>>, vector<1x8x128xf32>
    %267 = vector.shape_cast %266 : vector<1x8x128xf32> to vector<8x128xf32>
    %268 = vector.shape_cast %264 : vector<8x128xf32> to vector<1x8x128xf32>
    tpu.vector_store %arg15[%265, %c0_82, %c0_83], %268 {strides = array<i32>} : memref<8x8x128xf32, #tpu.memory_space<vmem>>, vector<1x8x128xf32>,
    %c6_i32 = arith.constant 6 : i32
    %269 = arith.index_cast %c6_i32 : i32 to index
    %c0_84 = arith.constant 0 : index
    %c0_85 = arith.constant 0 : index
    %270 = vector.load %arg14[%269, %c0_84, %c0_85] : memref<8x8x384xf32, #tpu.memory_space<vmem>>, vector<1x8x384xf32>
    %271 = vector.shape_cast %270 : vector<1x8x384xf32> to vector<8x384xf32>
    %c0_86 = arith.constant 0 : index
    %c0_87 = arith.constant 0 : index
    %272 = vector.load %arg4[%c0_86, %c0_87] : memref<128x384xf32, #tpu.memory_space<vmem>>, vector<128x384xf32>
    %cst_88 = arith.constant dense<0.000000e+00> : vector<8x384xf32>
    %273 = tpu.matmul %264, %272, %cst_88 {dimension_numbers = #tpu.dot_dimension_numbers<[1], [0], [0], [1], [0, 0, 1, 1], [], []>} : vector<8x128xf32>, vector<128x384xf32>, vector<8x384xf32> -> vector<8x384xf32>
    %274 = vector.extract_strided_slice %271 {offsets = [0, 0], sizes = [8, 128], strides = [1, 1]} : vector<8x384xf32> to vector<8x128xf32>
    %275 = vector.extract_strided_slice %273 {offsets = [0, 0], sizes = [8, 128], strides = [1, 1]} : vector<8x384xf32> to vector<8x128xf32>
    %276 = arith.addf %274, %275 : vector<8x128xf32>
    %277 = arith.negf %276 : vector<8x128xf32>
    %278 = math.exp %277 : vector<8x128xf32>
    %cst_89 = arith.constant 1.000000e+00 : f32
    %279 = vector.broadcast %cst_89 : f32 to vector<8x128xf32>
    %280 = arith.addf %279, %278 : vector<8x128xf32>
    %281 = arith.divf %279, %280 : vector<8x128xf32>
    %282 = vector.extract_strided_slice %271 {offsets = [0, 128], sizes = [8, 128], strides = [1, 1]} : vector<8x384xf32> to vector<8x128xf32>
    %283 = vector.extract_strided_slice %273 {offsets = [0, 128], sizes = [8, 128], strides = [1, 1]} : vector<8x384xf32> to vector<8x128xf32>
    %284 = arith.addf %282, %283 : vector<8x128xf32>
    %285 = arith.negf %284 : vector<8x128xf32>
    %286 = math.exp %285 : vector<8x128xf32>
    %cst_90 = arith.constant 1.000000e+00 : f32
    %287 = vector.broadcast %cst_90 : f32 to vector<8x128xf32>
    %288 = arith.addf %287, %286 : vector<8x128xf32>
    %289 = arith.divf %287, %288 : vector<8x128xf32>
    %290 = vector.extract_strided_slice %271 {offsets = [0, 256], sizes = [8, 128], strides = [1, 1]} : vector<8x384xf32> to vector<8x128xf32>
    %291 = vector.extract_strided_slice %273 {offsets = [0, 256], sizes = [8, 128], strides = [1, 1]} : vector<8x384xf32> to vector<8x128xf32>
    %c0_91 = arith.constant 0 : index
    %c0_92 = arith.constant 0 : index
    %292 = vector.load %arg6[%c0_91, %c0_92] : memref<1x128xf32, #tpu.memory_space<vmem>>, vector<1x128xf32>
    %293 = vector.broadcast %292 : vector<1x128xf32> to vector<8x128xf32>
    %294 = arith.addf %291, %293 : vector<8x128xf32>
    %295 = arith.mulf %281, %294 : vector<8x128xf32>
    %296 = arith.addf %290, %295 : vector<8x128xf32>
    %297 = math.tanh %296 : vector<8x128xf32>
    %cst_93 = arith.constant 1.000000e+00 : f32
    %298 = vector.broadcast %cst_93 : f32 to vector<8x128xf32>
    %299 = arith.subf %298, %289 : vector<8x128xf32>
    %300 = arith.mulf %299, %297 : vector<8x128xf32>
    %301 = arith.mulf %289, %264 : vector<8x128xf32>
    %302 = arith.addf %300, %301 : vector<8x128xf32>
    %303 = vector.broadcast %c6_i32 : i32 to vector<8x1xi32>
    %304 = arith.cmpi slt, %303, %0 : vector<8x1xi32>
    %305 = vector.shape_cast %304 : vector<8x1xi1> to vector<8x1xi1>
    %306 = vector.broadcast %305 : vector<8x1xi1> to vector<8x128xi1>
    %307 = arith.select %306, %302, %264 : vector<8x128xi1>, vector<8x128xf32>
    %308 = arith.index_cast %c6_i32 : i32 to index
    %c0_94 = arith.constant 0 : index
    %c0_95 = arith.constant 0 : index
    %309 = vector.load %arg15[%308, %c0_94, %c0_95] : memref<8x8x128xf32, #tpu.memory_space<vmem>>, vector<1x8x128xf32>
    %310 = vector.shape_cast %309 : vector<1x8x128xf32> to vector<8x128xf32>
    %311 = vector.shape_cast %307 : vector<8x128xf32> to vector<1x8x128xf32>
    tpu.vector_store %arg15[%308, %c0_94, %c0_95], %311 {strides = array<i32>} : memref<8x8x128xf32, #tpu.memory_space<vmem>>, vector<1x8x128xf32>,
    %c7_i32 = arith.constant 7 : i32
    %312 = arith.index_cast %c7_i32 : i32 to index
    %c0_96 = arith.constant 0 : index
    %c0_97 = arith.constant 0 : index
    %313 = vector.load %arg14[%312, %c0_96, %c0_97] : memref<8x8x384xf32, #tpu.memory_space<vmem>>, vector<1x8x384xf32>
    %314 = vector.shape_cast %313 : vector<1x8x384xf32> to vector<8x384xf32>
    %c0_98 = arith.constant 0 : index
    %c0_99 = arith.constant 0 : index
    %315 = vector.load %arg4[%c0_98, %c0_99] : memref<128x384xf32, #tpu.memory_space<vmem>>, vector<128x384xf32>
    %cst_100 = arith.constant dense<0.000000e+00> : vector<8x384xf32>
    %316 = tpu.matmul %307, %315, %cst_100 {dimension_numbers = #tpu.dot_dimension_numbers<[1], [0], [0], [1], [0, 0, 1, 1], [], []>} : vector<8x128xf32>, vector<128x384xf32>, vector<8x384xf32> -> vector<8x384xf32>
    %317 = vector.extract_strided_slice %314 {offsets = [0, 0], sizes = [8, 128], strides = [1, 1]} : vector<8x384xf32> to vector<8x128xf32>
    %318 = vector.extract_strided_slice %316 {offsets = [0, 0], sizes = [8, 128], strides = [1, 1]} : vector<8x384xf32> to vector<8x128xf32>
    %319 = arith.addf %317, %318 : vector<8x128xf32>
    %320 = arith.negf %319 : vector<8x128xf32>
    %321 = math.exp %320 : vector<8x128xf32>
    %cst_101 = arith.constant 1.000000e+00 : f32
    %322 = vector.broadcast %cst_101 : f32 to vector<8x128xf32>
    %323 = arith.addf %322, %321 : vector<8x128xf32>
    %324 = arith.divf %322, %323 : vector<8x128xf32>
    %325 = vector.extract_strided_slice %314 {offsets = [0, 128], sizes = [8, 128], strides = [1, 1]} : vector<8x384xf32> to vector<8x128xf32>
    %326 = vector.extract_strided_slice %316 {offsets = [0, 128], sizes = [8, 128], strides = [1, 1]} : vector<8x384xf32> to vector<8x128xf32>
    %327 = arith.addf %325, %326 : vector<8x128xf32>
    %328 = arith.negf %327 : vector<8x128xf32>
    %329 = math.exp %328 : vector<8x128xf32>
    %cst_102 = arith.constant 1.000000e+00 : f32
    %330 = vector.broadcast %cst_102 : f32 to vector<8x128xf32>
    %331 = arith.addf %330, %329 : vector<8x128xf32>
    %332 = arith.divf %330, %331 : vector<8x128xf32>
    %333 = vector.extract_strided_slice %314 {offsets = [0, 256], sizes = [8, 128], strides = [1, 1]} : vector<8x384xf32> to vector<8x128xf32>
    %334 = vector.extract_strided_slice %316 {offsets = [0, 256], sizes = [8, 128], strides = [1, 1]} : vector<8x384xf32> to vector<8x128xf32>
    %c0_103 = arith.constant 0 : index
    %c0_104 = arith.constant 0 : index
    %335 = vector.load %arg6[%c0_103, %c0_104] : memref<1x128xf32, #tpu.memory_space<vmem>>, vector<1x128xf32>
    %336 = vector.broadcast %335 : vector<1x128xf32> to vector<8x128xf32>
    %337 = arith.addf %334, %336 : vector<8x128xf32>
    %338 = arith.mulf %324, %337 : vector<8x128xf32>
    %339 = arith.addf %333, %338 : vector<8x128xf32>
    %340 = math.tanh %339 : vector<8x128xf32>
    %cst_105 = arith.constant 1.000000e+00 : f32
    %341 = vector.broadcast %cst_105 : f32 to vector<8x128xf32>
    %342 = arith.subf %341, %332 : vector<8x128xf32>
    %343 = arith.mulf %342, %340 : vector<8x128xf32>
    %344 = arith.mulf %332, %307 : vector<8x128xf32>
    %345 = arith.addf %343, %344 : vector<8x128xf32>
    %346 = vector.broadcast %c7_i32 : i32 to vector<8x1xi32>
    %347 = arith.cmpi slt, %346, %0 : vector<8x1xi32>
    %348 = vector.shape_cast %347 : vector<8x1xi1> to vector<8x1xi1>
    %349 = vector.broadcast %348 : vector<8x1xi1> to vector<8x128xi1>
    %350 = arith.select %349, %345, %307 : vector<8x128xi1>, vector<8x128xf32>
    %351 = arith.index_cast %c7_i32 : i32 to index
    %c0_106 = arith.constant 0 : index
    %c0_107 = arith.constant 0 : index
    %352 = vector.load %arg15[%351, %c0_106, %c0_107] : memref<8x8x128xf32, #tpu.memory_space<vmem>>, vector<1x8x128xf32>
    %353 = vector.shape_cast %352 : vector<1x8x128xf32> to vector<8x128xf32>
    %354 = vector.shape_cast %350 : vector<8x128xf32> to vector<1x8x128xf32>
    tpu.vector_store %arg15[%351, %c0_106, %c0_107], %354 {strides = array<i32>} : memref<8x8x128xf32, #tpu.memory_space<vmem>>, vector<1x8x128xf32>,
    %c8_i32 = arith.constant 8 : i32
    %c0_108 = arith.constant 0 : index
    %c0_109 = arith.constant 0 : index
    %c0_110 = arith.constant 0 : index
    %355 = vector.load %arg15[%c0_108, %c0_109, %c0_110] : memref<8x8x128xf32, #tpu.memory_space<vmem>>, vector<8x8x128xf32>
    %356 = vector.shape_cast %355 : vector<8x8x128xf32> to vector<64x128xf32>
    %c0_111 = arith.constant 0 : index
    %c0_112 = arith.constant 0 : index
    %357 = vector.load %arg7[%c0_111, %c0_112] : memref<128x384xf32, #tpu.memory_space<vmem>>, vector<128x384xf32>
    %cst_113 = arith.constant dense<0.000000e+00> : vector<64x384xf32>
    %358 = tpu.matmul %356, %357, %cst_113 {dimension_numbers = #tpu.dot_dimension_numbers<[1], [0], [0], [1], [0, 0, 1, 1], [], []>} : vector<64x128xf32>, vector<128x384xf32>, vector<64x384xf32> -> vector<64x384xf32>
    %c0_114 = arith.constant 0 : index
    %c0_115 = arith.constant 0 : index
    %359 = vector.load %arg9[%c0_114, %c0_115] : memref<1x384xf32, #tpu.memory_space<vmem>>, vector<1x384xf32>
    %360 = vector.broadcast %359 : vector<1x384xf32> to vector<64x384xf32>
    %361 = arith.addf %358, %360 : vector<64x384xf32>
    %362 = vector.shape_cast %361 : vector<64x384xf32> to vector<8x8x384xf32>
    %c0_116 = arith.constant 0 : index
    %c0_117 = arith.constant 0 : index
    %c0_118 = arith.constant 0 : index
    %363 = vector.load %arg14[%c0_116, %c0_117, %c0_118] : memref<8x8x384xf32, #tpu.memory_space<vmem>>, vector<8x8x384xf32>
    tpu.vector_store %arg14[%c0_116, %c0_117, %c0_118], %362 {strides = array<i32>} : memref<8x8x384xf32, #tpu.memory_space<vmem>>, vector<8x8x384xf32>,
    %cst_119 = arith.constant 0.000000e+00 : f32
    %364 = vector.broadcast %cst_119 : f32 to vector<8x128xf32>
    %c0_i32_120 = arith.constant 0 : i32
    %365 = arith.index_cast %c0_i32_120 : i32 to index
    %c0_121 = arith.constant 0 : index
    %c0_122 = arith.constant 0 : index
    %366 = vector.load %arg14[%365, %c0_121, %c0_122] : memref<8x8x384xf32, #tpu.memory_space<vmem>>, vector<1x8x384xf32>
    %367 = vector.shape_cast %366 : vector<1x8x384xf32> to vector<8x384xf32>
    %c0_123 = arith.constant 0 : index
    %c0_124 = arith.constant 0 : index
    %368 = vector.load %arg8[%c0_123, %c0_124] : memref<128x384xf32, #tpu.memory_space<vmem>>, vector<128x384xf32>
    %cst_125 = arith.constant dense<0.000000e+00> : vector<8x384xf32>
    %369 = tpu.matmul %364, %368, %cst_125 {dimension_numbers = #tpu.dot_dimension_numbers<[1], [0], [0], [1], [0, 0, 1, 1], [], []>} : vector<8x128xf32>, vector<128x384xf32>, vector<8x384xf32> -> vector<8x384xf32>
    %370 = vector.extract_strided_slice %367 {offsets = [0, 0], sizes = [8, 128], strides = [1, 1]} : vector<8x384xf32> to vector<8x128xf32>
    %371 = vector.extract_strided_slice %369 {offsets = [0, 0], sizes = [8, 128], strides = [1, 1]} : vector<8x384xf32> to vector<8x128xf32>
    %372 = arith.addf %370, %371 : vector<8x128xf32>
    %373 = arith.negf %372 : vector<8x128xf32>
    %374 = math.exp %373 : vector<8x128xf32>
    %cst_126 = arith.constant 1.000000e+00 : f32
    %375 = vector.broadcast %cst_126 : f32 to vector<8x128xf32>
    %376 = arith.addf %375, %374 : vector<8x128xf32>
    %377 = arith.divf %375, %376 : vector<8x128xf32>
    %378 = vector.extract_strided_slice %367 {offsets = [0, 128], sizes = [8, 128], strides = [1, 1]} : vector<8x384xf32> to vector<8x128xf32>
    %379 = vector.extract_strided_slice %369 {offsets = [0, 128], sizes = [8, 128], strides = [1, 1]} : vector<8x384xf32> to vector<8x128xf32>
    %380 = arith.addf %378, %379 : vector<8x128xf32>
    %381 = arith.negf %380 : vector<8x128xf32>
    %382 = math.exp %381 : vector<8x128xf32>
    %cst_127 = arith.constant 1.000000e+00 : f32
    %383 = vector.broadcast %cst_127 : f32 to vector<8x128xf32>
    %384 = arith.addf %383, %382 : vector<8x128xf32>
    %385 = arith.divf %383, %384 : vector<8x128xf32>
    %386 = vector.extract_strided_slice %367 {offsets = [0, 256], sizes = [8, 128], strides = [1, 1]} : vector<8x384xf32> to vector<8x128xf32>
    %387 = vector.extract_strided_slice %369 {offsets = [0, 256], sizes = [8, 128], strides = [1, 1]} : vector<8x384xf32> to vector<8x128xf32>
    %c0_128 = arith.constant 0 : index
    %c0_129 = arith.constant 0 : index
    %388 = vector.load %arg10[%c0_128, %c0_129] : memref<1x128xf32, #tpu.memory_space<vmem>>, vector<1x128xf32>
    %389 = vector.broadcast %388 : vector<1x128xf32> to vector<8x128xf32>
    %390 = arith.addf %387, %389 : vector<8x128xf32>
    %391 = arith.mulf %377, %390 : vector<8x128xf32>
    %392 = arith.addf %386, %391 : vector<8x128xf32>
    %393 = math.tanh %392 : vector<8x128xf32>
    %cst_130 = arith.constant 1.000000e+00 : f32
    %394 = vector.broadcast %cst_130 : f32 to vector<8x128xf32>
    %395 = arith.subf %394, %385 : vector<8x128xf32>
    %396 = arith.mulf %395, %393 : vector<8x128xf32>
    %397 = arith.mulf %385, %364 : vector<8x128xf32>
    %398 = arith.addf %396, %397 : vector<8x128xf32>
    %399 = vector.broadcast %c0_i32_120 : i32 to vector<8x1xi32>
    %400 = arith.cmpi slt, %399, %0 : vector<8x1xi32>
    %401 = vector.shape_cast %400 : vector<8x1xi1> to vector<8x1xi1>
    %402 = vector.broadcast %401 : vector<8x1xi1> to vector<8x128xi1>
    %403 = arith.select %402, %398, %364 : vector<8x128xi1>, vector<8x128xf32>
    %c1_i32_131 = arith.constant 1 : i32
    %404 = arith.index_cast %c1_i32_131 : i32 to index
    %c0_132 = arith.constant 0 : index
    %c0_133 = arith.constant 0 : index
    %405 = vector.load %arg14[%404, %c0_132, %c0_133] : memref<8x8x384xf32, #tpu.memory_space<vmem>>, vector<1x8x384xf32>
    %406 = vector.shape_cast %405 : vector<1x8x384xf32> to vector<8x384xf32>
    %c0_134 = arith.constant 0 : index
    %c0_135 = arith.constant 0 : index
    %407 = vector.load %arg8[%c0_134, %c0_135] : memref<128x384xf32, #tpu.memory_space<vmem>>, vector<128x384xf32>
    %cst_136 = arith.constant dense<0.000000e+00> : vector<8x384xf32>
    %408 = tpu.matmul %403, %407, %cst_136 {dimension_numbers = #tpu.dot_dimension_numbers<[1], [0], [0], [1], [0, 0, 1, 1], [], []>} : vector<8x128xf32>, vector<128x384xf32>, vector<8x384xf32> -> vector<8x384xf32>
    %409 = vector.extract_strided_slice %406 {offsets = [0, 0], sizes = [8, 128], strides = [1, 1]} : vector<8x384xf32> to vector<8x128xf32>
    %410 = vector.extract_strided_slice %408 {offsets = [0, 0], sizes = [8, 128], strides = [1, 1]} : vector<8x384xf32> to vector<8x128xf32>
    %411 = arith.addf %409, %410 : vector<8x128xf32>
    %412 = arith.negf %411 : vector<8x128xf32>
    %413 = math.exp %412 : vector<8x128xf32>
    %cst_137 = arith.constant 1.000000e+00 : f32
    %414 = vector.broadcast %cst_137 : f32 to vector<8x128xf32>
    %415 = arith.addf %414, %413 : vector<8x128xf32>
    %416 = arith.divf %414, %415 : vector<8x128xf32>
    %417 = vector.extract_strided_slice %406 {offsets = [0, 128], sizes = [8, 128], strides = [1, 1]} : vector<8x384xf32> to vector<8x128xf32>
    %418 = vector.extract_strided_slice %408 {offsets = [0, 128], sizes = [8, 128], strides = [1, 1]} : vector<8x384xf32> to vector<8x128xf32>
    %419 = arith.addf %417, %418 : vector<8x128xf32>
    %420 = arith.negf %419 : vector<8x128xf32>
    %421 = math.exp %420 : vector<8x128xf32>
    %cst_138 = arith.constant 1.000000e+00 : f32
    %422 = vector.broadcast %cst_138 : f32 to vector<8x128xf32>
    %423 = arith.addf %422, %421 : vector<8x128xf32>
    %424 = arith.divf %422, %423 : vector<8x128xf32>
    %425 = vector.extract_strided_slice %406 {offsets = [0, 256], sizes = [8, 128], strides = [1, 1]} : vector<8x384xf32> to vector<8x128xf32>
    %426 = vector.extract_strided_slice %408 {offsets = [0, 256], sizes = [8, 128], strides = [1, 1]} : vector<8x384xf32> to vector<8x128xf32>
    %c0_139 = arith.constant 0 : index
    %c0_140 = arith.constant 0 : index
    %427 = vector.load %arg10[%c0_139, %c0_140] : memref<1x128xf32, #tpu.memory_space<vmem>>, vector<1x128xf32>
    %428 = vector.broadcast %427 : vector<1x128xf32> to vector<8x128xf32>
    %429 = arith.addf %426, %428 : vector<8x128xf32>
    %430 = arith.mulf %416, %429 : vector<8x128xf32>
    %431 = arith.addf %425, %430 : vector<8x128xf32>
    %432 = math.tanh %431 : vector<8x128xf32>
    %cst_141 = arith.constant 1.000000e+00 : f32
    %433 = vector.broadcast %cst_141 : f32 to vector<8x128xf32>
    %434 = arith.subf %433, %424 : vector<8x128xf32>
    %435 = arith.mulf %434, %432 : vector<8x128xf32>
    %436 = arith.mulf %424, %403 : vector<8x128xf32>
    %437 = arith.addf %435, %436 : vector<8x128xf32>
    %438 = vector.broadcast %c1_i32_131 : i32 to vector<8x1xi32>
    %439 = arith.cmpi slt, %438, %0 : vector<8x1xi32>
    %440 = vector.shape_cast %439 : vector<8x1xi1> to vector<8x1xi1>
    %441 = vector.broadcast %440 : vector<8x1xi1> to vector<8x128xi1>
    %442 = arith.select %441, %437, %403 : vector<8x128xi1>, vector<8x128xf32>
    %c2_i32_142 = arith.constant 2 : i32
    %443 = arith.index_cast %c2_i32_142 : i32 to index
    %c0_143 = arith.constant 0 : index
    %c0_144 = arith.constant 0 : index
    %444 = vector.load %arg14[%443, %c0_143, %c0_144] : memref<8x8x384xf32, #tpu.memory_space<vmem>>, vector<1x8x384xf32>
    %445 = vector.shape_cast %444 : vector<1x8x384xf32> to vector<8x384xf32>
    %c0_145 = arith.constant 0 : index
    %c0_146 = arith.constant 0 : index
    %446 = vector.load %arg8[%c0_145, %c0_146] : memref<128x384xf32, #tpu.memory_space<vmem>>, vector<128x384xf32>
    %cst_147 = arith.constant dense<0.000000e+00> : vector<8x384xf32>
    %447 = tpu.matmul %442, %446, %cst_147 {dimension_numbers = #tpu.dot_dimension_numbers<[1], [0], [0], [1], [0, 0, 1, 1], [], []>} : vector<8x128xf32>, vector<128x384xf32>, vector<8x384xf32> -> vector<8x384xf32>
    %448 = vector.extract_strided_slice %445 {offsets = [0, 0], sizes = [8, 128], strides = [1, 1]} : vector<8x384xf32> to vector<8x128xf32>
    %449 = vector.extract_strided_slice %447 {offsets = [0, 0], sizes = [8, 128], strides = [1, 1]} : vector<8x384xf32> to vector<8x128xf32>
    %450 = arith.addf %448, %449 : vector<8x128xf32>
    %451 = arith.negf %450 : vector<8x128xf32>
    %452 = math.exp %451 : vector<8x128xf32>
    %cst_148 = arith.constant 1.000000e+00 : f32
    %453 = vector.broadcast %cst_148 : f32 to vector<8x128xf32>
    %454 = arith.addf %453, %452 : vector<8x128xf32>
    %455 = arith.divf %453, %454 : vector<8x128xf32>
    %456 = vector.extract_strided_slice %445 {offsets = [0, 128], sizes = [8, 128], strides = [1, 1]} : vector<8x384xf32> to vector<8x128xf32>
    %457 = vector.extract_strided_slice %447 {offsets = [0, 128], sizes = [8, 128], strides = [1, 1]} : vector<8x384xf32> to vector<8x128xf32>
    %458 = arith.addf %456, %457 : vector<8x128xf32>
    %459 = arith.negf %458 : vector<8x128xf32>
    %460 = math.exp %459 : vector<8x128xf32>
    %cst_149 = arith.constant 1.000000e+00 : f32
    %461 = vector.broadcast %cst_149 : f32 to vector<8x128xf32>
    %462 = arith.addf %461, %460 : vector<8x128xf32>
    %463 = arith.divf %461, %462 : vector<8x128xf32>
    %464 = vector.extract_strided_slice %445 {offsets = [0, 256], sizes = [8, 128], strides = [1, 1]} : vector<8x384xf32> to vector<8x128xf32>
    %465 = vector.extract_strided_slice %447 {offsets = [0, 256], sizes = [8, 128], strides = [1, 1]} : vector<8x384xf32> to vector<8x128xf32>
    %c0_150 = arith.constant 0 : index
    %c0_151 = arith.constant 0 : index
    %466 = vector.load %arg10[%c0_150, %c0_151] : memref<1x128xf32, #tpu.memory_space<vmem>>, vector<1x128xf32>
    %467 = vector.broadcast %466 : vector<1x128xf32> to vector<8x128xf32>
    %468 = arith.addf %465, %467 : vector<8x128xf32>
    %469 = arith.mulf %455, %468 : vector<8x128xf32>
    %470 = arith.addf %464, %469 : vector<8x128xf32>
    %471 = math.tanh %470 : vector<8x128xf32>
    %cst_152 = arith.constant 1.000000e+00 : f32
    %472 = vector.broadcast %cst_152 : f32 to vector<8x128xf32>
    %473 = arith.subf %472, %463 : vector<8x128xf32>
    %474 = arith.mulf %473, %471 : vector<8x128xf32>
    %475 = arith.mulf %463, %442 : vector<8x128xf32>
    %476 = arith.addf %474, %475 : vector<8x128xf32>
    %477 = vector.broadcast %c2_i32_142 : i32 to vector<8x1xi32>
    %478 = arith.cmpi slt, %477, %0 : vector<8x1xi32>
    %479 = vector.shape_cast %478 : vector<8x1xi1> to vector<8x1xi1>
    %480 = vector.broadcast %479 : vector<8x1xi1> to vector<8x128xi1>
    %481 = arith.select %480, %476, %442 : vector<8x128xi1>, vector<8x128xf32>
    %c3_i32_153 = arith.constant 3 : i32
    %482 = arith.index_cast %c3_i32_153 : i32 to index
    %c0_154 = arith.constant 0 : index
    %c0_155 = arith.constant 0 : index
    %483 = vector.load %arg14[%482, %c0_154, %c0_155] : memref<8x8x384xf32, #tpu.memory_space<vmem>>, vector<1x8x384xf32>
    %484 = vector.shape_cast %483 : vector<1x8x384xf32> to vector<8x384xf32>
    %c0_156 = arith.constant 0 : index
    %c0_157 = arith.constant 0 : index
    %485 = vector.load %arg8[%c0_156, %c0_157] : memref<128x384xf32, #tpu.memory_space<vmem>>, vector<128x384xf32>
    %cst_158 = arith.constant dense<0.000000e+00> : vector<8x384xf32>
    %486 = tpu.matmul %481, %485, %cst_158 {dimension_numbers = #tpu.dot_dimension_numbers<[1], [0], [0], [1], [0, 0, 1, 1], [], []>} : vector<8x128xf32>, vector<128x384xf32>, vector<8x384xf32> -> vector<8x384xf32>
    %487 = vector.extract_strided_slice %484 {offsets = [0, 0], sizes = [8, 128], strides = [1, 1]} : vector<8x384xf32> to vector<8x128xf32>
    %488 = vector.extract_strided_slice %486 {offsets = [0, 0], sizes = [8, 128], strides = [1, 1]} : vector<8x384xf32> to vector<8x128xf32>
    %489 = arith.addf %487, %488 : vector<8x128xf32>
    %490 = arith.negf %489 : vector<8x128xf32>
    %491 = math.exp %490 : vector<8x128xf32>
    %cst_159 = arith.constant 1.000000e+00 : f32
    %492 = vector.broadcast %cst_159 : f32 to vector<8x128xf32>
    %493 = arith.addf %492, %491 : vector<8x128xf32>
    %494 = arith.divf %492, %493 : vector<8x128xf32>
    %495 = vector.extract_strided_slice %484 {offsets = [0, 128], sizes = [8, 128], strides = [1, 1]} : vector<8x384xf32> to vector<8x128xf32>
    %496 = vector.extract_strided_slice %486 {offsets = [0, 128], sizes = [8, 128], strides = [1, 1]} : vector<8x384xf32> to vector<8x128xf32>
    %497 = arith.addf %495, %496 : vector<8x128xf32>
    %498 = arith.negf %497 : vector<8x128xf32>
    %499 = math.exp %498 : vector<8x128xf32>
    %cst_160 = arith.constant 1.000000e+00 : f32
    %500 = vector.broadcast %cst_160 : f32 to vector<8x128xf32>
    %501 = arith.addf %500, %499 : vector<8x128xf32>
    %502 = arith.divf %500, %501 : vector<8x128xf32>
    %503 = vector.extract_strided_slice %484 {offsets = [0, 256], sizes = [8, 128], strides = [1, 1]} : vector<8x384xf32> to vector<8x128xf32>
    %504 = vector.extract_strided_slice %486 {offsets = [0, 256], sizes = [8, 128], strides = [1, 1]} : vector<8x384xf32> to vector<8x128xf32>
    %c0_161 = arith.constant 0 : index
    %c0_162 = arith.constant 0 : index
    %505 = vector.load %arg10[%c0_161, %c0_162] : memref<1x128xf32, #tpu.memory_space<vmem>>, vector<1x128xf32>
    %506 = vector.broadcast %505 : vector<1x128xf32> to vector<8x128xf32>
    %507 = arith.addf %504, %506 : vector<8x128xf32>
    %508 = arith.mulf %494, %507 : vector<8x128xf32>
    %509 = arith.addf %503, %508 : vector<8x128xf32>
    %510 = math.tanh %509 : vector<8x128xf32>
    %cst_163 = arith.constant 1.000000e+00 : f32
    %511 = vector.broadcast %cst_163 : f32 to vector<8x128xf32>
    %512 = arith.subf %511, %502 : vector<8x128xf32>
    %513 = arith.mulf %512, %510 : vector<8x128xf32>
    %514 = arith.mulf %502, %481 : vector<8x128xf32>
    %515 = arith.addf %513, %514 : vector<8x128xf32>
    %516 = vector.broadcast %c3_i32_153 : i32 to vector<8x1xi32>
    %517 = arith.cmpi slt, %516, %0 : vector<8x1xi32>
    %518 = vector.shape_cast %517 : vector<8x1xi1> to vector<8x1xi1>
    %519 = vector.broadcast %518 : vector<8x1xi1> to vector<8x128xi1>
    %520 = arith.select %519, %515, %481 : vector<8x128xi1>, vector<8x128xf32>
    %c4_i32_164 = arith.constant 4 : i32
    %521 = arith.index_cast %c4_i32_164 : i32 to index
    %c0_165 = arith.constant 0 : index
    %c0_166 = arith.constant 0 : index
    %522 = vector.load %arg14[%521, %c0_165, %c0_166] : memref<8x8x384xf32, #tpu.memory_space<vmem>>, vector<1x8x384xf32>
    %523 = vector.shape_cast %522 : vector<1x8x384xf32> to vector<8x384xf32>
    %c0_167 = arith.constant 0 : index
    %c0_168 = arith.constant 0 : index
    %524 = vector.load %arg8[%c0_167, %c0_168] : memref<128x384xf32, #tpu.memory_space<vmem>>, vector<128x384xf32>
    %cst_169 = arith.constant dense<0.000000e+00> : vector<8x384xf32>
    %525 = tpu.matmul %520, %524, %cst_169 {dimension_numbers = #tpu.dot_dimension_numbers<[1], [0], [0], [1], [0, 0, 1, 1], [], []>} : vector<8x128xf32>, vector<128x384xf32>, vector<8x384xf32> -> vector<8x384xf32>
    %526 = vector.extract_strided_slice %523 {offsets = [0, 0], sizes = [8, 128], strides = [1, 1]} : vector<8x384xf32> to vector<8x128xf32>
    %527 = vector.extract_strided_slice %525 {offsets = [0, 0], sizes = [8, 128], strides = [1, 1]} : vector<8x384xf32> to vector<8x128xf32>
    %528 = arith.addf %526, %527 : vector<8x128xf32>
    %529 = arith.negf %528 : vector<8x128xf32>
    %530 = math.exp %529 : vector<8x128xf32>
    %cst_170 = arith.constant 1.000000e+00 : f32
    %531 = vector.broadcast %cst_170 : f32 to vector<8x128xf32>
    %532 = arith.addf %531, %530 : vector<8x128xf32>
    %533 = arith.divf %531, %532 : vector<8x128xf32>
    %534 = vector.extract_strided_slice %523 {offsets = [0, 128], sizes = [8, 128], strides = [1, 1]} : vector<8x384xf32> to vector<8x128xf32>
    %535 = vector.extract_strided_slice %525 {offsets = [0, 128], sizes = [8, 128], strides = [1, 1]} : vector<8x384xf32> to vector<8x128xf32>
    %536 = arith.addf %534, %535 : vector<8x128xf32>
    %537 = arith.negf %536 : vector<8x128xf32>
    %538 = math.exp %537 : vector<8x128xf32>
    %cst_171 = arith.constant 1.000000e+00 : f32
    %539 = vector.broadcast %cst_171 : f32 to vector<8x128xf32>
    %540 = arith.addf %539, %538 : vector<8x128xf32>
    %541 = arith.divf %539, %540 : vector<8x128xf32>
    %542 = vector.extract_strided_slice %523 {offsets = [0, 256], sizes = [8, 128], strides = [1, 1]} : vector<8x384xf32> to vector<8x128xf32>
    %543 = vector.extract_strided_slice %525 {offsets = [0, 256], sizes = [8, 128], strides = [1, 1]} : vector<8x384xf32> to vector<8x128xf32>
    %c0_172 = arith.constant 0 : index
    %c0_173 = arith.constant 0 : index
    %544 = vector.load %arg10[%c0_172, %c0_173] : memref<1x128xf32, #tpu.memory_space<vmem>>, vector<1x128xf32>
    %545 = vector.broadcast %544 : vector<1x128xf32> to vector<8x128xf32>
    %546 = arith.addf %543, %545 : vector<8x128xf32>
    %547 = arith.mulf %533, %546 : vector<8x128xf32>
    %548 = arith.addf %542, %547 : vector<8x128xf32>
    %549 = math.tanh %548 : vector<8x128xf32>
    %cst_174 = arith.constant 1.000000e+00 : f32
    %550 = vector.broadcast %cst_174 : f32 to vector<8x128xf32>
    %551 = arith.subf %550, %541 : vector<8x128xf32>
    %552 = arith.mulf %551, %549 : vector<8x128xf32>
    %553 = arith.mulf %541, %520 : vector<8x128xf32>
    %554 = arith.addf %552, %553 : vector<8x128xf32>
    %555 = vector.broadcast %c4_i32_164 : i32 to vector<8x1xi32>
    %556 = arith.cmpi slt, %555, %0 : vector<8x1xi32>
    %557 = vector.shape_cast %556 : vector<8x1xi1> to vector<8x1xi1>
    %558 = vector.broadcast %557 : vector<8x1xi1> to vector<8x128xi1>
    %559 = arith.select %558, %554, %520 : vector<8x128xi1>, vector<8x128xf32>
    %c5_i32_175 = arith.constant 5 : i32
    %560 = arith.index_cast %c5_i32_175 : i32 to index
    %c0_176 = arith.constant 0 : index
    %c0_177 = arith.constant 0 : index
    %561 = vector.load %arg14[%560, %c0_176, %c0_177] : memref<8x8x384xf32, #tpu.memory_space<vmem>>, vector<1x8x384xf32>
    %562 = vector.shape_cast %561 : vector<1x8x384xf32> to vector<8x384xf32>
    %c0_178 = arith.constant 0 : index
    %c0_179 = arith.constant 0 : index
    %563 = vector.load %arg8[%c0_178, %c0_179] : memref<128x384xf32, #tpu.memory_space<vmem>>, vector<128x384xf32>
    %cst_180 = arith.constant dense<0.000000e+00> : vector<8x384xf32>
    %564 = tpu.matmul %559, %563, %cst_180 {dimension_numbers = #tpu.dot_dimension_numbers<[1], [0], [0], [1], [0, 0, 1, 1], [], []>} : vector<8x128xf32>, vector<128x384xf32>, vector<8x384xf32> -> vector<8x384xf32>
    %565 = vector.extract_strided_slice %562 {offsets = [0, 0], sizes = [8, 128], strides = [1, 1]} : vector<8x384xf32> to vector<8x128xf32>
    %566 = vector.extract_strided_slice %564 {offsets = [0, 0], sizes = [8, 128], strides = [1, 1]} : vector<8x384xf32> to vector<8x128xf32>
    %567 = arith.addf %565, %566 : vector<8x128xf32>
    %568 = arith.negf %567 : vector<8x128xf32>
    %569 = math.exp %568 : vector<8x128xf32>
    %cst_181 = arith.constant 1.000000e+00 : f32
    %570 = vector.broadcast %cst_181 : f32 to vector<8x128xf32>
    %571 = arith.addf %570, %569 : vector<8x128xf32>
    %572 = arith.divf %570, %571 : vector<8x128xf32>
    %573 = vector.extract_strided_slice %562 {offsets = [0, 128], sizes = [8, 128], strides = [1, 1]} : vector<8x384xf32> to vector<8x128xf32>
    %574 = vector.extract_strided_slice %564 {offsets = [0, 128], sizes = [8, 128], strides = [1, 1]} : vector<8x384xf32> to vector<8x128xf32>
    %575 = arith.addf %573, %574 : vector<8x128xf32>
    %576 = arith.negf %575 : vector<8x128xf32>
    %577 = math.exp %576 : vector<8x128xf32>
    %cst_182 = arith.constant 1.000000e+00 : f32
    %578 = vector.broadcast %cst_182 : f32 to vector<8x128xf32>
    %579 = arith.addf %578, %577 : vector<8x128xf32>
    %580 = arith.divf %578, %579 : vector<8x128xf32>
    %581 = vector.extract_strided_slice %562 {offsets = [0, 256], sizes = [8, 128], strides = [1, 1]} : vector<8x384xf32> to vector<8x128xf32>
    %582 = vector.extract_strided_slice %564 {offsets = [0, 256], sizes = [8, 128], strides = [1, 1]} : vector<8x384xf32> to vector<8x128xf32>
    %c0_183 = arith.constant 0 : index
    %c0_184 = arith.constant 0 : index
    %583 = vector.load %arg10[%c0_183, %c0_184] : memref<1x128xf32, #tpu.memory_space<vmem>>, vector<1x128xf32>
    %584 = vector.broadcast %583 : vector<1x128xf32> to vector<8x128xf32>
    %585 = arith.addf %582, %584 : vector<8x128xf32>
    %586 = arith.mulf %572, %585 : vector<8x128xf32>
    %587 = arith.addf %581, %586 : vector<8x128xf32>
    %588 = math.tanh %587 : vector<8x128xf32>
    %cst_185 = arith.constant 1.000000e+00 : f32
    %589 = vector.broadcast %cst_185 : f32 to vector<8x128xf32>
    %590 = arith.subf %589, %580 : vector<8x128xf32>
    %591 = arith.mulf %590, %588 : vector<8x128xf32>
    %592 = arith.mulf %580, %559 : vector<8x128xf32>
    %593 = arith.addf %591, %592 : vector<8x128xf32>
    %594 = vector.broadcast %c5_i32_175 : i32 to vector<8x1xi32>
    %595 = arith.cmpi slt, %594, %0 : vector<8x1xi32>
    %596 = vector.shape_cast %595 : vector<8x1xi1> to vector<8x1xi1>
    %597 = vector.broadcast %596 : vector<8x1xi1> to vector<8x128xi1>
    %598 = arith.select %597, %593, %559 : vector<8x128xi1>, vector<8x128xf32>
    %c6_i32_186 = arith.constant 6 : i32
    %599 = arith.index_cast %c6_i32_186 : i32 to index
    %c0_187 = arith.constant 0 : index
    %c0_188 = arith.constant 0 : index
    %600 = vector.load %arg14[%599, %c0_187, %c0_188] : memref<8x8x384xf32, #tpu.memory_space<vmem>>, vector<1x8x384xf32>
    %601 = vector.shape_cast %600 : vector<1x8x384xf32> to vector<8x384xf32>
    %c0_189 = arith.constant 0 : index
    %c0_190 = arith.constant 0 : index
    %602 = vector.load %arg8[%c0_189, %c0_190] : memref<128x384xf32, #tpu.memory_space<vmem>>, vector<128x384xf32>
    %cst_191 = arith.constant dense<0.000000e+00> : vector<8x384xf32>
    %603 = tpu.matmul %598, %602, %cst_191 {dimension_numbers = #tpu.dot_dimension_numbers<[1], [0], [0], [1], [0, 0, 1, 1], [], []>} : vector<8x128xf32>, vector<128x384xf32>, vector<8x384xf32> -> vector<8x384xf32>
    %604 = vector.extract_strided_slice %601 {offsets = [0, 0], sizes = [8, 128], strides = [1, 1]} : vector<8x384xf32> to vector<8x128xf32>
    %605 = vector.extract_strided_slice %603 {offsets = [0, 0], sizes = [8, 128], strides = [1, 1]} : vector<8x384xf32> to vector<8x128xf32>
    %606 = arith.addf %604, %605 : vector<8x128xf32>
    %607 = arith.negf %606 : vector<8x128xf32>
    %608 = math.exp %607 : vector<8x128xf32>
    %cst_192 = arith.constant 1.000000e+00 : f32
    %609 = vector.broadcast %cst_192 : f32 to vector<8x128xf32>
    %610 = arith.addf %609, %608 : vector<8x128xf32>
    %611 = arith.divf %609, %610 : vector<8x128xf32>
    %612 = vector.extract_strided_slice %601 {offsets = [0, 128], sizes = [8, 128], strides = [1, 1]} : vector<8x384xf32> to vector<8x128xf32>
    %613 = vector.extract_strided_slice %603 {offsets = [0, 128], sizes = [8, 128], strides = [1, 1]} : vector<8x384xf32> to vector<8x128xf32>
    %614 = arith.addf %612, %613 : vector<8x128xf32>
    %615 = arith.negf %614 : vector<8x128xf32>
    %616 = math.exp %615 : vector<8x128xf32>
    %cst_193 = arith.constant 1.000000e+00 : f32
    %617 = vector.broadcast %cst_193 : f32 to vector<8x128xf32>
    %618 = arith.addf %617, %616 : vector<8x128xf32>
    %619 = arith.divf %617, %618 : vector<8x128xf32>
    %620 = vector.extract_strided_slice %601 {offsets = [0, 256], sizes = [8, 128], strides = [1, 1]} : vector<8x384xf32> to vector<8x128xf32>
    %621 = vector.extract_strided_slice %603 {offsets = [0, 256], sizes = [8, 128], strides = [1, 1]} : vector<8x384xf32> to vector<8x128xf32>
    %c0_194 = arith.constant 0 : index
    %c0_195 = arith.constant 0 : index
    %622 = vector.load %arg10[%c0_194, %c0_195] : memref<1x128xf32, #tpu.memory_space<vmem>>, vector<1x128xf32>
    %623 = vector.broadcast %622 : vector<1x128xf32> to vector<8x128xf32>
    %624 = arith.addf %621, %623 : vector<8x128xf32>
    %625 = arith.mulf %611, %624 : vector<8x128xf32>
    %626 = arith.addf %620, %625 : vector<8x128xf32>
    %627 = math.tanh %626 : vector<8x128xf32>
    %cst_196 = arith.constant 1.000000e+00 : f32
    %628 = vector.broadcast %cst_196 : f32 to vector<8x128xf32>
    %629 = arith.subf %628, %619 : vector<8x128xf32>
    %630 = arith.mulf %629, %627 : vector<8x128xf32>
    %631 = arith.mulf %619, %598 : vector<8x128xf32>
    %632 = arith.addf %630, %631 : vector<8x128xf32>
    %633 = vector.broadcast %c6_i32_186 : i32 to vector<8x1xi32>
    %634 = arith.cmpi slt, %633, %0 : vector<8x1xi32>
    %635 = vector.shape_cast %634 : vector<8x1xi1> to vector<8x1xi1>
    %636 = vector.broadcast %635 : vector<8x1xi1> to vector<8x128xi1>
    %637 = arith.select %636, %632, %598 : vector<8x128xi1>, vector<8x128xf32>
    %c7_i32_197 = arith.constant 7 : i32
    %638 = arith.index_cast %c7_i32_197 : i32 to index
    %c0_198 = arith.constant 0 : index
    %c0_199 = arith.constant 0 : index
    %639 = vector.load %arg14[%638, %c0_198, %c0_199] : memref<8x8x384xf32, #tpu.memory_space<vmem>>, vector<1x8x384xf32>
    %640 = vector.shape_cast %639 : vector<1x8x384xf32> to vector<8x384xf32>
    %c0_200 = arith.constant 0 : index
    %c0_201 = arith.constant 0 : index
    %641 = vector.load %arg8[%c0_200, %c0_201] : memref<128x384xf32, #tpu.memory_space<vmem>>, vector<128x384xf32>
    %cst_202 = arith.constant dense<0.000000e+00> : vector<8x384xf32>
    %642 = tpu.matmul %637, %641, %cst_202 {dimension_numbers = #tpu.dot_dimension_numbers<[1], [0], [0], [1], [0, 0, 1, 1], [], []>} : vector<8x128xf32>, vector<128x384xf32>, vector<8x384xf32> -> vector<8x384xf32>
    %643 = vector.extract_strided_slice %640 {offsets = [0, 0], sizes = [8, 128], strides = [1, 1]} : vector<8x384xf32> to vector<8x128xf32>
    %644 = vector.extract_strided_slice %642 {offsets = [0, 0], sizes = [8, 128], strides = [1, 1]} : vector<8x384xf32> to vector<8x128xf32>
    %645 = arith.addf %643, %644 : vector<8x128xf32>
    %646 = arith.negf %645 : vector<8x128xf32>
    %647 = math.exp %646 : vector<8x128xf32>
    %cst_203 = arith.constant 1.000000e+00 : f32
    %648 = vector.broadcast %cst_203 : f32 to vector<8x128xf32>
    %649 = arith.addf %648, %647 : vector<8x128xf32>
    %650 = arith.divf %648, %649 : vector<8x128xf32>
    %651 = vector.extract_strided_slice %640 {offsets = [0, 128], sizes = [8, 128], strides = [1, 1]} : vector<8x384xf32> to vector<8x128xf32>
    %652 = vector.extract_strided_slice %642 {offsets = [0, 128], sizes = [8, 128], strides = [1, 1]} : vector<8x384xf32> to vector<8x128xf32>
    %653 = arith.addf %651, %652 : vector<8x128xf32>
    %654 = arith.negf %653 : vector<8x128xf32>
    %655 = math.exp %654 : vector<8x128xf32>
    %cst_204 = arith.constant 1.000000e+00 : f32
    %656 = vector.broadcast %cst_204 : f32 to vector<8x128xf32>
    %657 = arith.addf %656, %655 : vector<8x128xf32>
    %658 = arith.divf %656, %657 : vector<8x128xf32>
    %659 = vector.extract_strided_slice %640 {offsets = [0, 256], sizes = [8, 128], strides = [1, 1]} : vector<8x384xf32> to vector<8x128xf32>
    %660 = vector.extract_strided_slice %642 {offsets = [0, 256], sizes = [8, 128], strides = [1, 1]} : vector<8x384xf32> to vector<8x128xf32>
    %c0_205 = arith.constant 0 : index
    %c0_206 = arith.constant 0 : index
    %661 = vector.load %arg10[%c0_205, %c0_206] : memref<1x128xf32, #tpu.memory_space<vmem>>, vector<1x128xf32>
    %662 = vector.broadcast %661 : vector<1x128xf32> to vector<8x128xf32>
    %663 = arith.addf %660, %662 : vector<8x128xf32>
    %664 = arith.mulf %650, %663 : vector<8x128xf32>
    %665 = arith.addf %659, %664 : vector<8x128xf32>
    %666 = math.tanh %665 : vector<8x128xf32>
    %cst_207 = arith.constant 1.000000e+00 : f32
    %667 = vector.broadcast %cst_207 : f32 to vector<8x128xf32>
    %668 = arith.subf %667, %658 : vector<8x128xf32>
    %669 = arith.mulf %668, %666 : vector<8x128xf32>
    %670 = arith.mulf %658, %637 : vector<8x128xf32>
    %671 = arith.addf %669, %670 : vector<8x128xf32>
    %672 = vector.broadcast %c7_i32_197 : i32 to vector<8x1xi32>
    %673 = arith.cmpi slt, %672, %0 : vector<8x1xi32>
    %674 = vector.shape_cast %673 : vector<8x1xi1> to vector<8x1xi1>
    %675 = vector.broadcast %674 : vector<8x1xi1> to vector<8x128xi1>
    %676 = arith.select %675, %671, %637 : vector<8x128xi1>, vector<8x128xf32>
    %c8_i32_208 = arith.constant 8 : i32
    %c0_209 = arith.constant 0 : index
    %c0_210 = arith.constant 0 : index
    %677 = vector.load %arg11[%c0_209, %c0_210] : memref<128x128xf32, #tpu.memory_space<vmem>>, vector<128x128xf32>
    %cst_211 = arith.constant dense<0.000000e+00> : vector<8x128xf32>
    %678 = tpu.matmul %676, %677, %cst_211 {dimension_numbers = #tpu.dot_dimension_numbers<[1], [0], [0], [1], [0, 0, 1, 1], [], []>} : vector<8x128xf32>, vector<128x128xf32>, vector<8x128xf32> -> vector<8x128xf32>
    %c0_212 = arith.constant 0 : index
    %c0_213 = arith.constant 0 : index
    %679 = vector.load %arg12[%c0_212, %c0_213] : memref<1x128xf32, #tpu.memory_space<vmem>>, vector<1x128xf32>
    %680 = vector.broadcast %679 : vector<1x128xf32> to vector<8x128xf32>
    %681 = arith.addf %678, %680 : vector<8x128xf32>
    %c0_214 = arith.constant 0 : index
    %c0_215 = arith.constant 0 : index
    %682 = vector.load %arg13[%c0_214, %c0_215] : memref<8x128xf32, #tpu.memory_space<vmem>>, vector<8x128xf32>
    tpu.vector_store %arg13[%c0_214, %c0_215], %681 {strides = array<i32>} : memref<8x128xf32, #tpu.memory_space<vmem>>, vector<8x128xf32>,
    return
  }
  func.func @transform_0(%arg0: i32) -> (i32, i32, i32) {
    %c0_i32 = arith.constant 0 : i32
    %c0_i32_0 = arith.constant 0 : i32
    %c0_i32_1 = arith.constant 0 : i32
    return %c0_i32, %arg0, %c0_i32_0 : i32, i32, i32
  }
  func.func @transform_1(%arg0: i32) -> (i32, i32) {
    %c0_i32 = arith.constant 0 : i32
    %c0_i32_0 = arith.constant 0 : i32
    return %arg0, %c0_i32 : i32, i32
  }
  func.func @transform_2(%arg0: i32) -> (i32, i32) {
    %c0_i32 = arith.constant 0 : i32
    %c0_i32_0 = arith.constant 0 : i32
    %c0_i32_1 = arith.constant 0 : i32
    return %c0_i32, %c0_i32_0 : i32, i32
  }
  func.func @transform_3(%arg0: i32) -> (i32, i32) {
    %c0_i32 = arith.constant 0 : i32
    %c0_i32_0 = arith.constant 0 : i32
    %c0_i32_1 = arith.constant 0 : i32
    return %c0_i32, %c0_i32_0 : i32, i32
  }
  func.func @transform_4(%arg0: i32) -> (i32, i32) {
    %c0_i32 = arith.constant 0 : i32
    %c0_i32_0 = arith.constant 0 : i32
    %c0_i32_1 = arith.constant 0 : i32
    return %c0_i32, %c0_i32_0 : i32, i32
  }
  func.func @transform_5(%arg0: i32) -> (i32, i32) {
    %c0_i32 = arith.constant 0 : i32
    %c0_i32_0 = arith.constant 0 : i32
    %c0_i32_1 = arith.constant 0 : i32
    return %c0_i32, %c0_i32_0 : i32, i32
  }
  func.func @transform_6(%arg0: i32) -> (i32, i32) {
    %c0_i32 = arith.constant 0 : i32
    %c0_i32_0 = arith.constant 0 : i32
    %c0_i32_1 = arith.constant 0 : i32
    return %c0_i32, %c0_i32_0 : i32, i32
  }
  func.func @transform_7(%arg0: i32) -> (i32, i32) {
    %c0_i32 = arith.constant 0 : i32
    %c0_i32_0 = arith.constant 0 : i32
    %c0_i32_1 = arith.constant 0 : i32
    return %c0_i32, %c0_i32_0 : i32, i32
  }
  func.func @transform_8(%arg0: i32) -> (i32, i32) {
    %c0_i32 = arith.constant 0 : i32
    %c0_i32_0 = arith.constant 0 : i32
    %c0_i32_1 = arith.constant 0 : i32
    return %c0_i32, %c0_i32_0 : i32, i32
  }
  func.func @transform_9(%arg0: i32) -> (i32, i32) {
    %c0_i32 = arith.constant 0 : i32
    %c0_i32_0 = arith.constant 0 : i32
    %c0_i32_1 = arith.constant 0 : i32
    return %c0_i32, %c0_i32_0 : i32, i32
  }
  func.func @transform_10(%arg0: i32) -> (i32, i32) {
    %c0_i32 = arith.constant 0 : i32
    %c0_i32_0 = arith.constant 0 : i32
    %c0_i32_1 = arith.constant 0 : i32
    return %c0_i32, %c0_i32_0 : i32, i32
  }
  func.func @transform_11(%arg0: i32) -> (i32, i32) {
    %c0_i32 = arith.constant 0 : i32
    %c0_i32_0 = arith.constant 0 : i32
    %c0_i32_1 = arith.constant 0 : i32
    return %c0_i32, %c0_i32_0 : i32, i32
  }
  func.func @transform_12(%arg0: i32) -> (i32, i32) {
    %c0_i32 = arith.constant 0 : i32
    %c0_i32_0 = arith.constant 0 : i32
    return %arg0, %c0_i32 : i32, i32
  }
}

</mosaic_0001>

<llo_original>
// kernel: _forward.1
$region0: #{_forward.1}
  #allocation0 [shape = 'u32[]', space=smem, size = 0x4, offset = 0x4, fixed_abs, tag = 'smem constant byte address 0x4 - core index']
  #allocation1 [shape = 'u32[144,128]{1,0:T(1,128)}', space=vmem, size = 0x12000, scoped, tag = 'internal scratch']
  #allocation2 [shape = 'f32[8,8,384]{2,1,0:T(8,128)}', space=vmem, size = 0x18000, scoped, tag = 'scratch operand']
  #allocation3 [shape = 'f32[8,8,128]{2,1,0:T(8,128)}', space=vmem, size = 0x8000, scoped, tag = 'scratch operand']
  %s0 = inlined_call_operand.vmem [shape: f32[8,8,8], index: 0, kind: input, shape index: {}]
  %s1 = inlined_call_operand.vmem [shape: s32[8,1], index: 1, kind: input, shape index: {}]
  %s2 = inlined_call_operand.vmem [shape: f32[8,384], index: 2, kind: input, shape index: {}]
  %s3 = inlined_call_operand.hbm [shape: f32[128,384], index: 3, kind: input, shape index: {}]
  %s4 = inlined_call_operand.vmem [shape: f32[1,384], index: 4, kind: input, shape index: {}]
  %s5 = inlined_call_operand.vmem [shape: f32[1,128], index: 5, kind: input, shape index: {}]
  %s6 = inlined_call_operand.hbm [shape: f32[128,384], index: 6, kind: input, shape index: {}]
  %s7 = inlined_call_operand.hbm [shape: f32[128,384], index: 7, kind: input, shape index: {}]
  %s8 = inlined_call_operand.hbm [shape: f32[1,384], index: 8, kind: input, shape index: {}]
  %s9 = inlined_call_operand.vmem [shape: f32[1,128], index: 9, kind: input, shape index: {}]
  %s10 = inlined_call_operand.vmem [shape: f32[128,128], index: 10, kind: input, shape index: {}]
  %s11 = inlined_call_operand.hbm [shape: f32[1,128], index: 11, kind: input, shape index: {}]
  %s12 = inlined_call_operand.vmem [shape: f32[8,128], index: 12, kind: output, shape index: {}]
  %s13 = sld [smem:[#allocation0]]
  $region78: #{_forward.1} parent=0
    _
  %s15 = ssub.s32 1, %s13
  %s16 = scalar_select 0, %s15, %s13
  $region1: #{_forward.1} parent=0
    #allocation4 [shape = 'u8[196608]{0}', space=vmem, size = 0x30000, scoped, tag = 'input window, operand 3, single buffered']
    #allocation5 [shape = 's32[1]{0}', space=sflag, size = 0x4, scoped, tag = 'scoped memory for _forward.1']
    #allocation6 [shape = 'u8[196608]{0}', space=vmem, size = 0x30000, scoped, tag = 'input window, operand 6, single buffered']
    #allocation7 [shape = 's32[1]{0}', space=sflag, size = 0x4, scoped, tag = 'scoped memory for _forward.1']
    #allocation8 [shape = 'u8[196608]{0}', space=vmem, size = 0x30000, scoped, tag = 'input window, operand 7, single buffered']
    #allocation9 [shape = 'u8[1536]{0}', space=vmem, size = 0x800, scoped, tag = 'input window, operand 8, single buffered']
    #allocation10 [shape = 's32[1]{0}', space=sflag, size = 0x4, scoped, tag = 'scoped memory for _forward.1']
    #allocation11 [shape = 'u8[512]{0}', space=vmem, size = 0x400, scoped, tag = 'input window, operand 11, single buffered']
    %17 = vsyncpa [#allocation5], 0
    %18 = vsyncpa [#allocation7], 0
    %19 = vsyncpa [#allocation10], 0
    // Predicated region
    $region2: #{_forward.1} parent=1 // pred_check
      _
    $region3: #{_forward.1} parent=1 // pred_check_branch
      %21 = sbr.rel (0) target = $region5
    $region4: #{_forward.1} parent=1 // pred_region
      _
    $region5: #{_forward.1} parent=1 // pred_fallthru
      _
    // Predicated region
    $region6: #{_forward.1} parent=1 // pred_check
      _
    $region7: #{_forward.1} parent=1 // pred_check_branch
      %23 = sbr.rel (0) target = $region9
    $region8: #{_forward.1} parent=1 // pred_region
      _
    $region9: #{_forward.1} parent=1 // pred_fallthru
      _
    // Predicated region
    $region10: #{_forward.1} parent=1 // pred_check
      _
    $region11: #{_forward.1} parent=1 // pred_check_branch
      %25 = sbr.rel (0) target = $region13
    $region12: #{_forward.1} parent=1 // pred_region
      _
    $region13: #{_forward.1} parent=1 // pred_fallthru
      _
    // Predicated region
    $region14: #{_forward.1} parent=1 // pred_check
      _
    $region15: #{_forward.1} parent=1 // pred_check_branch
      %27 = sbr.rel (0) target = $region17
    $region16: #{_forward.1} parent=1 // pred_region
      %s29 = ssub.s32 6144, 6144
      %30 = vsyncadd [#allocation5], %s29
      %s31 = sshll.u32 [#allocation4], 4
      %s32 = int_to_ptr.vmem [resolvable:$true] %s31
      %37 = dma.hbm_to_vmem [thread:$0]  %s3, 6144, %s32, [#allocation5], 384, 384, 24
    $region17: #{_forward.1} parent=1 // pred_fallthru
      _
    // Predicated region
    $region18: #{_forward.1} parent=1 // pred_check
      _
    $region19: #{_forward.1} parent=1 // pred_check_branch
      %39 = sbr.rel (0) target = $region21
    $region20: #{_forward.1} parent=1 // pred_region
      _
    $region21: #{_forward.1} parent=1 // pred_fallthru
      _
    // Predicated region
    $region22: #{_forward.1} parent=1 // pred_check
      _
    $region23: #{_forward.1} parent=1 // pred_check_branch
      %41 = sbr.rel (0) target = $region25
    $region24: #{_forward.1} parent=1 // pred_region
      _
    $region25: #{_forward.1} parent=1 // pred_fallthru
      _
    // Predicated region
    $region26: #{_forward.1} parent=1 // pred_check
      _
    $region27: #{_forward.1} parent=1 // pred_check_branch
      %43 = sbr.rel (0) target = $region29
    $region28: #{_forward.1} parent=1 // pred_region
      %s45 = ssub.s32 6144, 6144
      %46 = vsyncadd [#allocation7], %s45
      %s47 = sshll.u32 [#allocation6], 4
      %s48 = int_to_ptr.vmem [resolvable:$true] %s47
      %53 = dma.hbm_to_vmem [thread:$0]  %s6, 6144, %s48, [#allocation7], 384, 384, 24
    $region29: #{_forward.1} parent=1 // pred_fallthru
      _
    // Predicated region
    $region30: #{_forward.1} parent=1 // pred_check
      _
    $region31: #{_forward.1} parent=1 // pred_check_branch
      %55 = sbr.rel (0) target = $region33
    $region32: #{_forward.1} parent=1 // pred_region
      %s57 = ssub.s32 6144, 6144
      %58 = vsyncadd [#allocation7], %s57
      %s59 = sshll.u32 [#allocation8], 4
      %s60 = int_to_ptr.vmem [resolvable:$true] %s59
      %65 = dma.hbm_to_vmem [thread:$0]  %s7, 6144, %s60, [#allocation7], 384, 384, 24
    $region33: #{_forward.1} parent=1 // pred_fallthru
      _
    // Predicated region
    $region34: #{_forward.1} parent=1 // pred_check
      _
    $region35: #{_forward.1} parent=1 // pred_check_branch
      %67 = sbr.rel (0) target = $region37
    $region36: #{_forward.1} parent=1 // pred_region
      %s69 = ssub.s32 48, 48
      %70 = vsyncadd [#allocation10], %s69
      %s72 = sshll.u32 [#allocation9], 4
      %s73 = int_to_ptr.vmem [resolvable:$true] %s72
      %75 = dma.hbm_to_vmem [thread:$0]  %s8, 48, %s73, [#allocation10]
    $region37: #{_forward.1} parent=1 // pred_fallthru
      _
    // Predicated region
    $region38: #{_forward.1} parent=1 // pred_check
      _
    $region39: #{_forward.1} parent=1 // pred_check_branch
      %77 = sbr.rel (0) target = $region41
    $region40: #{_forward.1} parent=1 // pred_region
      _
    $region41: #{_forward.1} parent=1 // pred_fallthru
      _
    // Predicated region
    $region42: #{_forward.1} parent=1 // pred_check
      _
    $region43: #{_forward.1} parent=1 // pred_check_branch
      %79 = sbr.rel (0) target = $region45
    $region44: #{_forward.1} parent=1 // pred_region
      _
    $region45: #{_forward.1} parent=1 // pred_fallthru
      _
    // Predicated region
    $region46: #{_forward.1} parent=1 // pred_check
      _
    $region47: #{_forward.1} parent=1 // pred_check_branch
      %81 = sbr.rel (0) target = $region49
    $region48: #{_forward.1} parent=1 // pred_region
      %s83 = ssub.s32 16, 16
      %84 = vsyncadd [#allocation10], %s83
      %s86 = sshll.u32 [#allocation11], 4
      %s87 = int_to_ptr.vmem [resolvable:$true] %s86
      %89 = dma.hbm_to_vmem [thread:$0]  %s11, 16, %s87, [#allocation10]
    $region49: #{_forward.1} parent=1 // pred_fallthru
      _
    // Predicated region
    $region50: #{_forward.1} parent=1 // pred_check
      _
    $region51: #{_forward.1} parent=1 // pred_check_branch
      %91 = sbr.rel (0) target = $region53
    $region52: #{_forward.1} parent=1 // pred_region
      %92 = dma.done [#allocation5], 6144
    $region53: #{_forward.1} parent=1 // pred_fallthru
      _
    // Predicated region
    $region54: #{_forward.1} parent=1 // pred_check
      _
    $region55: #{_forward.1} parent=1 // pred_check_branch
      %94 = sbr.rel (0) target = $region57
    $region56: #{_forward.1} parent=1 // pred_region
      %95 = dma.done [#allocation7], 6144
    $region57: #{_forward.1} parent=1 // pred_fallthru
      _
    // Predicated region
    $region58: #{_forward.1} parent=1 // pred_check
      _
    $region59: #{_forward.1} parent=1 // pred_check_branch
      %97 = sbr.rel (0) target = $region61
    $region60: #{_forward.1} parent=1 // pred_region
      %98 = dma.done [#allocation7], 6144
    $region61: #{_forward.1} parent=1 // pred_fallthru
      _
    // Predicated region
    $region62: #{_forward.1} parent=1 // pred_check
      _
    $region63: #{_forward.1} parent=1 // pred_check_branch
      %100 = sbr.rel (0) target = $region65
    $region64: #{_forward.1} parent=1 // pred_region
      %101 = dma.done [#allocation10], 48
    $region65: #{_forward.1} parent=1 // pred_fallthru
      _
    // Predicated region
    $region66: #{_forward.1} parent=1 // pred_check
      _
    $region67: #{_forward.1} parent=1 // pred_check_branch
      %103 = sbr.rel (0) target = $region69
    $region68: #{_forward.1} parent=1 // pred_region
      %104 = dma.done [#allocation10], 16
    $region69: #{_forward.1} parent=1 // pred_fallthru
      _
    %v105 = vld [vmem:[%s1] sm:$0xff]
    %v106 = vld [vmem:[%s0] sm:$0xff]
    %v107 = vld [vmem:[%s0 + $0x8] sm:$0xff]
    %v108 = vld [vmem:[%s0 + $0x10] sm:$0xff]
    %v109 = vld [vmem:[%s0 + $0x18] sm:$0xff]
    %v110 = vld [vmem:[%s0 + $0x20] sm:$0xff]
    %v111 = vld [vmem:[%s0 + $0x28] sm:$0xff]
    %v112 = vld [vmem:[%s0 + $0x30] sm:$0xff]
    %v113 = vld [vmem:[%s0 + $0x38] sm:$0xff]
    %v114 = vld [vmem:[%s2] sm:$0xff]
    %v115 = vld [vmem:[%s2 + $0x8] sm:$0xff]
    %v116 = vld [vmem:[%s2 + $0x10] sm:$0xff]
    %v117 = vld [vmem:[%s4] sm:$0x7]
    %v119 = vlaneseq
    %v120 = vshrl.u32 %v119, 7
    %v121 = vsub.s32 0, %v120
    %v122 = vrot.slane %v117, %v121
    %v123 = vlaneseq
    %v124 = vshrl.u32 %v123, 7
    %v125 = vsub.s32 1, %v124
    %v126 = vrot.slane %v117, %v125
    %v127 = vlaneseq
    %v128 = vshrl.u32 %v127, 7
    %v129 = vsub.s32 2, %v128
    %v130 = vrot.slane %v117, %v129
    %vm134 = vcmask 64512
    %v136 = vsel %vm134, %v106, 0
    %v139 = vsel %vm134, %v107, 0
    %v142 = vsel %vm134, %v108, 0
    %v145 = vsel %vm134, %v109, 0
    %v148 = vsel %vm134, %v110, 0
    %v151 = vsel %vm134, %v111, 0
    %v154 = vsel %vm134, %v112, 0
    %v157 = vsel %vm134, %v113, 0
    %159 = vmatprep.subr.mxu0 %v115
    %160 = vmatpush1.msra.mxu0 %v114
    %161 = vmatprep.subr.mxu0 0.0
    %162 = vmatpush1.msra.mxu0 0.0
    %163 = vmatprep.subr.mxu0 0.0
    %164 = vmatpush1.msra.mxu0 0.0
    %165 = vmatprep.subr.mxu0 0.0
    %166 = vmatpush1.msra.mxu0 0.0
    %167 = vmatprep.subr.mxu0 0.0
    %168 = vmatpush1.msra.mxu0 0.0
    %169 = vmatprep.subr.mxu0 0.0
    %170 = vmatpush1.msra.mxu0 0.0
    %171 = vmatprep.subr.mxu0 0.0
    %172 = vmatpush1.msra.mxu0 0.0
    %173 = vmatprep.subr.mxu0 0.0
    %174 = vmatpush1.msra.mxu0 0.0
    %175 = vmatprep.subr.mxu0 0.0
    %176 = vmatpush1.msra.mxu0 0.0
    %177 = vmatprep.subr.mxu0 0.0
    %178 = vmatpush1.msra.mxu0 0.0
    %179 = vmatprep.subr.mxu0 0.0
    %180 = vmatpush1.msra.mxu0 0.0
    %181 = vmatprep.subr.mxu0 0.0
    %182 = vmatpush1.msra.mxu0 0.0
    %183 = vmatprep.subr.mxu0 0.0
    %184 = vmatpush1.msra.mxu0 0.0
    %185 = vmatprep.subr.mxu0 0.0
    %186 = vmatpush1.msra.mxu0 0.0
    %187 = vmatprep.subr.mxu0 0.0
    %188 = vmatpush1.msra.mxu0 0.0
    %189 = vmatprep.subr.mxu0 0.0
    %190 = vmatpush1.msra.mxu0 0.0
    %191 = vmatprep.subr.mxu0 0.0
    %192 = vmatpush1.msra.mxu0 0.0
    %193 = vmatprep.subr.mxu0 0.0
    %194 = vmatpush1.msra.mxu0 0.0
    %195 = vmatprep.subr.mxu0 0.0
    %196 = vmatpush1.msra.mxu0 0.0
    %197 = vmatprep.subr.mxu0 0.0
    %198 = vmatpush1.msra.mxu0 0.0
    %199 = vmatprep.subr.mxu0 0.0
    %200 = vmatpush1.msra.mxu0 0.0
    %201 = vmatprep.subr.mxu0 0.0
    %202 = vmatpush1.msra.mxu0 0.0
    %203 = vmatprep.subr.mxu0 0.0
    %204 = vmatpush1.msra.mxu0 0.0
    %205 = vmatprep.subr.mxu0 0.0
    %206 = vmatpush1.msra.mxu0 0.0
    %207 = vmatprep.subr.mxu0 0.0
    %208 = vmatpush1.msra.mxu0 0.0
    %209 = vmatprep.subr.mxu0 0.0
    %210 = vmatpush1.msra.mxu0 0.0
    %211 = vmatprep.subr.mxu0 0.0
    %212 = vmatpush1.msra.mxu0 0.0
    %213 = vmatprep.subr.mxu0 0.0
    %214 = vmatpush1.msra.mxu0 0.0
    %215 = vmatprep.subr.mxu0 0.0
    %216 = vmatpush1.msra.mxu0 0.0
    %217 = vmatprep.subr.mxu0 0.0
    %218 = vmatpush1.msra.mxu0 0.0
    %219 = vmatprep.subr.mxu0 0.0
    %220 = vmatpush1.msra.mxu0 0.0
    %221 = vmatprep.subr.mxu0 0.0
    %222 = vmatpush1.msra.mxu0 0.0
    %223 = vmatprep.mubr.f32.mxu0 0.0
    %224 = vmatmul.mubr.f32.gmra.mrb[0].mxu0 %v136
    %v225 = vpop.f32.mrb[0].mxu0
    %v226 = vadd.f32 %v122, %v225
    %v227 = vpop.f32.mrb[0].mxu0
    %v228 = vadd.f32 %v126, %v227
    %229 = vmatprep.mubr.f32.mxu0 0.0
    %230 = vmatmul.mubr.f32.gmra.mrb[0].mxu0 %v139
    %v231 = vpop.f32.mrb[0].mxu0
    %v232 = vadd.f32 %v122, %v231
    %v233 = vpop.f32.mrb[0].mxu0
    %v234 = vadd.f32 %v126, %v233
    %235 = vmatprep.mubr.f32.mxu0 0.0
    %236 = vmatmul.mubr.f32.gmra.mrb[0].mxu0 %v142
    %v237 = vpop.f32.mrb[0].mxu0
    %v238 = vadd.f32 %v122, %v237
    %v239 = vpop.f32.mrb[0].mxu0
    %v240 = vadd.f32 %v126, %v239
    %241 = vmatprep.mubr.f32.mxu0 0.0
    %242 = vmatmul.mubr.f32.gmra.mrb[0].mxu0 %v145
    %v243 = vpop.f32.mrb[0].mxu0
    %v244 = vadd.f32 %v122, %v243
    %v245 = vpop.f32.mrb[0].mxu0
    %v246 = vadd.f32 %v126, %v245
    %247 = vmatprep.mubr.f32.mxu0 0.0
    %248 = vmatmul.mubr.f32.gmra.mrb[0].mxu0 %v148
    %v249 = vpop.f32.mrb[0].mxu0
    %v250 = vadd.f32 %v122, %v249
    %v251 = vpop.f32.mrb[0].mxu0
    %v252 = vadd.f32 %v126, %v251
    %253 = vmatprep.mubr.f32.mxu0 0.0
    %254 = vmatmul.mubr.f32.gmra.mrb[0].mxu0 %v151
    %v255 = vpop.f32.mrb[0].mxu0
    %v256 = vadd.f32 %v122, %v255
    %v257 = vpop.f32.mrb[0].mxu0
    %v258 = vadd.f32 %v126, %v257
    %259 = vmatprep.mubr.f32.mxu0 0.0
    %260 = vmatmul.mubr.f32.gmra.mrb[0].mxu0 %v154
    %v261 = vpop.f32.mrb[0].mxu0
    %v262 = vadd.f32 %v122, %v261
    %v263 = vpop.f32.mrb[0].mxu0
    %v264 = vadd.f32 %v126, %v263
    %265 = vmatprep.mubr.f32.mxu0 0.0
    %266 = vmatmul.mubr.f32.gmra.mrb[0].mxu0 %v157
    %v267 = vpop.f32.mrb[0].mxu0
    %v268 = vadd.f32 %v122, %v267
    %v269 = vpop.f32.mrb[0].mxu0
    %v270 = vadd.f32 %v126, %v269
    %271 = vdwg.mxu0
    %272 = vmatprep.subr.mxu0 0.0
    %273 = vmatpush1.msra.mxu0 %v116
    %274 = vmatprep.subr.mxu0 0.0
    %275 = vmatpush1.msra.mxu0 0.0
    %276 = vmatprep.subr.mxu0 0.0
    %277 = vmatpush1.msra.mxu0 0.0
    %278 = vmatprep.subr.mxu0 0.0
    %279 = vmatpush1.msra.mxu0 0.0
    %280 = vmatprep.subr.mxu0 0.0
    %281 = vmatpush1.msra.mxu0 0.0
    %282 = vmatprep.subr.mxu0 0.0
    %283 = vmatpush1.msra.mxu0 0.0
    %284 = vmatprep.subr.mxu0 0.0
    %285 = vmatpush1.msra.mxu0 0.0
    %286 = vmatprep.subr.mxu0 0.0
    %287 = vmatpush1.msra.mxu0 0.0
    %288 = vmatprep.subr.mxu0 0.0
    %289 = vmatpush1.msra.mxu0 0.0
    %290 = vmatprep.subr.mxu0 0.0
    %291 = vmatpush1.msra.mxu0 0.0
    %292 = vmatprep.subr.mxu0 0.0
    %293 = vmatpush1.msra.mxu0 0.0
    %294 = vmatprep.subr.mxu0 0.0
    %295 = vmatpush1.msra.mxu0 0.0
    %296 = vmatprep.subr.mxu0 0.0
    %297 = vmatpush1.msra.mxu0 0.0
    %298 = vmatprep.subr.mxu0 0.0
    %299 = vmatpush1.msra.mxu0 0.0
    %300 = vmatprep.subr.mxu0 0.0
    %301 = vmatpush1.msra.mxu0 0.0
    %302 = vmatprep.subr.mxu0 0.0
    %303 = vmatpush1.msra.mxu0 0.0
    %304 = vmatprep.subr.mxu0 0.0
    %305 = vmatpush1.msra.mxu0 0.0
    %306 = vmatprep.subr.mxu0 0.0
    %307 = vmatpush1.msra.mxu0 0.0
    %308 = vmatprep.subr.mxu0 0.0
    %309 = vmatpush1.msra.mxu0 0.0
    %310 = vmatprep.subr.mxu0 0.0
    %311 = vmatpush1.msra.mxu0 0.0
    %312 = vmatprep.subr.mxu0 0.0
    %313 = vmatpush1.msra.mxu0 0.0
    %314 = vmatprep.subr.mxu0 0.0
    %315 = vmatpush1.msra.mxu0 0.0
    %316 = vmatprep.subr.mxu0 0.0
    %317 = vmatpush1.msra.mxu0 0.0
    %318 = vmatprep.subr.mxu0 0.0
    %319 = vmatpush1.msra.mxu0 0.0
    %320 = vmatprep.subr.mxu0 0.0
    %321 = vmatpush1.msra.mxu0 0.0
    %322 = vmatprep.subr.mxu0 0.0
    %323 = vmatpush1.msra.mxu0 0.0
    %324 = vmatprep.subr.mxu0 0.0
    %325 = vmatpush1.msra.mxu0 0.0
    %326 = vmatprep.subr.mxu0 0.0
    %327 = vmatpush1.msra.mxu0 0.0
    %328 = vmatprep.subr.mxu0 0.0
    %329 = vmatpush1.msra.mxu0 0.0
    %330 = vmatprep.subr.mxu0 0.0
    %331 = vmatpush1.msra.mxu0 0.0
    %332 = vmatprep.subr.mxu0 0.0
    %333 = vmatpush1.msra.mxu0 0.0
    %334 = vmatprep.subr.mxu0 0.0
    %335 = vmatpush1.msra.mxu0 0.0
    %336 = vmatprep.mubr.f32.mxu0 0.0
    %337 = vmatmul.mubr.f32.gmra.mrb[0].mxu0 %v136
    %v338 = vpop.f32.mrb[0].mxu0
    %v339 = vadd.f32 %v130, %v338
    %v340 = vpop.f32.mrb[0].mxu0
    %341 = vmatprep.mubr.f32.mxu0 0.0
    %342 = vmatmul.mubr.f32.gmra.mrb[0].mxu0 %v139
    %v343 = vpop.f32.mrb[0].mxu0
    %v344 = vadd.f32 %v130, %v343
    %v345 = vpop.f32.mrb[0].mxu0
    %346 = vmatprep.mubr.f32.mxu0 0.0
    %347 = vmatmul.mubr.f32.gmra.mrb[0].mxu0 %v142
    %v348 = vpop.f32.mrb[0].mxu0
    %v349 = vadd.f32 %v130, %v348
    %v350 = vpop.f32.mrb[0].mxu0
    %351 = vmatprep.mubr.f32.mxu0 0.0
    %352 = vmatmul.mubr.f32.gmra.mrb[0].mxu0 %v145
    %v353 = vpop.f32.mrb[0].mxu0
    %v354 = vadd.f32 %v130, %v353
    %v355 = vpop.f32.mrb[0].mxu0
    %356 = vmatprep.mubr.f32.mxu0 0.0
    %357 = vmatmul.mubr.f32.gmra.mrb[0].mxu0 %v148
    %v358 = vpop.f32.mrb[0].mxu0
    %v359 = vadd.f32 %v130, %v358
    %v360 = vpop.f32.mrb[0].mxu0
    %361 = vmatprep.mubr.f32.mxu0 0.0
    %362 = vmatmul.mubr.f32.gmra.mrb[0].mxu0 %v151
    %v363 = vpop.f32.mrb[0].mxu0
    %v364 = vadd.f32 %v130, %v363
    %v365 = vpop.f32.mrb[0].mxu0
    %366 = vmatprep.mubr.f32.mxu0 0.0
    %367 = vmatmul.mubr.f32.gmra.mrb[0].mxu0 %v154
    %v368 = vpop.f32.mrb[0].mxu0
    %v369 = vadd.f32 %v130, %v368
    %v370 = vpop.f32.mrb[0].mxu0
    %371 = vmatprep.mubr.f32.mxu0 0.0
    %372 = vmatmul.mubr.f32.gmra.mrb[0].mxu0 %v157
    %v373 = vpop.f32.mrb[0].mxu0
    %v374 = vadd.f32 %v130, %v373
    %v375 = vpop.f32.mrb[0].mxu0
    %376 = vdwg.mxu0
    %377 = vst [vmem:[#allocation2] sm:$0xff] %v226
    %378 = vst [vmem:[#allocation2 + $0x8] sm:$0xff] %v228
    %379 = vst [vmem:[#allocation2 + $0x10] sm:$0xff] %v339
    %380 = vst [vmem:[#allocation2 + $0x18] sm:$0xff] %v232
    %381 = vst [vmem:[#allocation2 + $0x20] sm:$0xff] %v234
    %382 = vst [vmem:[#allocation2 + $0x28] sm:$0xff] %v344
    %383 = vst [vmem:[#allocation2 + $0x30] sm:$0xff] %v238
    %384 = vst [vmem:[#allocation2 + $0x38] sm:$0xff] %v240
    %385 = vst [vmem:[#allocation2 + $0x40] sm:$0xff] %v349
    %386 = vst [vmem:[#allocation2 + $0x48] sm:$0xff] %v244
    %387 = vst [vmem:[#allocation2 + $0x50] sm:$0xff] %v246
    %388 = vst [vmem:[#allocation2 + $0x58] sm:$0xff] %v354
    %389 = vst [vmem:[#allocation2 + $0x60] sm:$0xff] %v250
    %390 = vst [vmem:[#allocation2 + $0x68] sm:$0xff] %v252
    %391 = vst [vmem:[#allocation2 + $0x70] sm:$0xff] %v359
    %392 = vst [vmem:[#allocation2 + $0x78] sm:$0xff] %v256
    %393 = vst [vmem:[#allocation2 + $0x80] sm:$0xff] %v258
    %394 = vst [vmem:[#allocation2 + $0x88] sm:$0xff] %v364
    %395 = vst [vmem:[#allocation2 + $0x90] sm:$0xff] %v262
    %396 = vst [vmem:[#allocation2 + $0x98] sm:$0xff] %v264
    %397 = vst [vmem:[#allocation2 + $0xa0] sm:$0xff] %v369
    %398 = vst [vmem:[#allocation2 + $0xa8] sm:$0xff] %v268
    %399 = vst [vmem:[#allocation2 + $0xb0] sm:$0xff] %v270
    %400 = vst [vmem:[#allocation2 + $0xb8] sm:$0xff] %v374
    %v401 = vld [vmem:[#allocation2] sm:$0xff]
    %v402 = vld [vmem:[#allocation2 + $0x8] sm:$0xff]
    %v403 = vld [vmem:[#allocation2 + $0x10] sm:$0xff]
    %v404 = vld [vmem:[#allocation4] sm:$0xff]
    %v405 = vld [vmem:[#allocation4 + $0x8] sm:$0xff]
    %v406 = vld [vmem:[#allocation4 + $0x10] sm:$0xff]
    %v407 = vld [vmem:[#allocation4 + $0x18] sm:$0xff]
    %v408 = vld [vmem:[#allocation4 + $0x20] sm:$0xff]
    %v409 = vld [vmem:[#allocation4 + $0x28] sm:$0xff]
    %v410 = vld [vmem:[#allocation4 + $0x30] sm:$0xff]
    %v411 = vld [vmem:[#allocation4 + $0x38] sm:$0xff]
    %v412 = vld [vmem:[#allocation4 + $0x40] sm:$0xff]
    %v413 = vld [vmem:[#allocation4 + $0x48] sm:$0xff]
    %v414 = vld [vmem:[#allocation4 + $0x50] sm:$0xff]
    %v415 = vld [vmem:[#allocation4 + $0x58] sm:$0xff]
    %v416 = vld [vmem:[#allocation4 + $0x60] sm:$0xff]
    %v417 = vld [vmem:[#allocation4 + $0x68] sm:$0xff]
    %v418 = vld [vmem:[#allocation4 + $0x70] sm:$0xff]
    %v419 = vld [vmem:[#allocation4 + $0x78] sm:$0xff]
    %v420 = vld [vmem:[#allocation4 + $0x80] sm:$0xff]
    %v421 = vld [vmem:[#allocation4 + $0x88] sm:$0xff]
    %v422 = vld [vmem:[#allocation4 + $0x90] sm:$0xff]
    %v423 = vld [vmem:[#allocation4 + $0x98] sm:$0xff]
    %v424 = vld [vmem:[#allocation4 + $0xa0] sm:$0xff]
    %v425 = vld [vmem:[#allocation4 + $0xa8] sm:$0xff]
    %v426 = vld [vmem:[#allocation4 + $0xb0] sm:$0xff]
    %v427 = vld [vmem:[#allocation4 + $0xb8] sm:$0xff]
    %v428 = vld [vmem:[#allocation4 + $0xc0] sm:$0xff]
    %v429 = vld [vmem:[#allocation4 + $0xc8] sm:$0xff]
    %v430 = vld [vmem:[#allocation4 + $0xd0] sm:$0xff]
    %v431 = vld [vmem:[#allocation4 + $0xd8] sm:$0xff]
    %v432 = vld [vmem:[#allocation4 + $0xe0] sm:$0xff]
    %v433 = vld [vmem:[#allocation4 + $0xe8] sm:$0xff]
    %v434 = vld [vmem:[#allocation4 + $0xf0] sm:$0xff]
    %v435 = vld [vmem:[#allocation4 + $0xf8] sm:$0xff]
    %v436 = vld [vmem:[#allocation4 + $0x100] sm:$0xff]
    %v437 = vld [vmem:[#allocation4 + $0x108] sm:$0xff]
    %v438 = vld [vmem:[#allocation4 + $0x110] sm:$0xff]
    %v439 = vld [vmem:[#allocation4 + $0x118] sm:$0xff]
    %v440 = vld [vmem:[#allocation4 + $0x120] sm:$0xff]
    %v441 = vld [vmem:[#allocation4 + $0x128] sm:$0xff]
    %v442 = vld [vmem:[#allocation4 + $0x130] sm:$0xff]
    %v443 = vld [vmem:[#allocation4 + $0x138] sm:$0xff]
    %v444 = vld [vmem:[#allocation4 + $0x140] sm:$0xff]
    %v445 = vld [vmem:[#allocation4 + $0x148] sm:$0xff]
    %v446 = vld [vmem:[#allocation4 + $0x150] sm:$0xff]
    %v447 = vld [vmem:[#allocation4 + $0x158] sm:$0xff]
    %v448 = vld [vmem:[#allocation4 + $0x160] sm:$0xff]
    %v449 = vld [vmem:[#allocation4 + $0x168] sm:$0xff]
    %v450 = vld [vmem:[#allocation4 + $0x170] sm:$0xff]
    %v451 = vld [vmem:[#allocation4 + $0x178] sm:$0xff]
    %452 = vmatprep.subr.mxu0 %v405
    %453 = vmatpush1.msra.mxu0 %v404
    %454 = vmatprep.subr.mxu0 %v408
    %455 = vmatpush1.msra.mxu0 %v407
    %456 = vmatprep.subr.mxu0 %v411
    %457 = vmatpush1.msra.mxu0 %v410
    %458 = vmatprep.subr.mxu0 %v414
    %459 = vmatpush1.msra.mxu0 %v413
    %460 = vmatprep.subr.mxu0 %v417
    %461 = vmatpush1.msra.mxu0 %v416
    %462 = vmatprep.subr.mxu0 %v420
    %463 = vmatpush1.msra.mxu0 %v419
    %464 = vmatprep.subr.mxu0 %v423
    %465 = vmatpush1.msra.mxu0 %v422
    %466 = vmatprep.subr.mxu0 %v426
    %467 = vmatpush1.msra.mxu0 %v425
    %468 = vmatprep.subr.mxu0 %v429
    %469 = vmatpush1.msra.mxu0 %v428
    %470 = vmatprep.subr.mxu0 %v432
    %471 = vmatpush1.msra.mxu0 %v431
    %472 = vmatprep.subr.mxu0 %v435
    %473 = vmatpush1.msra.mxu0 %v434
    %474 = vmatprep.subr.mxu0 %v438
    %475 = vmatpush1.msra.mxu0 %v437
    %476 = vmatprep.subr.mxu0 %v441
    %477 = vmatpush1.msra.mxu0 %v440
    %478 = vmatprep.subr.mxu0 %v444
    %479 = vmatpush1.msra.mxu0 %v443
    %480 = vmatprep.subr.mxu0 %v447
    %481 = vmatpush1.msra.mxu0 %v446
    %482 = vmatprep.subr.mxu0 %v450
    %483 = vmatpush1.msra.mxu0 %v449
    %484 = vmatprep.subr.mxu0 0.0
    %485 = vmatpush1.msra.mxu0 0.0
    %486 = vmatprep.subr.mxu0 0.0
    %487 = vmatpush1.msra.mxu0 0.0
    %488 = vmatprep.subr.mxu0 0.0
    %489 = vmatpush1.msra.mxu0 0.0
    %490 = vmatprep.subr.mxu0 0.0
    %491 = vmatpush1.msra.mxu0 0.0
    %492 = vmatprep.subr.mxu0 0.0
    %493 = vmatpush1.msra.mxu0 0.0
    %494 = vmatprep.subr.mxu0 0.0
    %495 = vmatpush1.msra.mxu0 0.0
    %496 = vmatprep.subr.mxu0 0.0
    %497 = vmatpush1.msra.mxu0 0.0
    %498 = vmatprep.subr.mxu0 0.0
    %499 = vmatpush1.msra.mxu0 0.0
    %500 = vmatprep.subr.mxu0 0.0
    %501 = vmatpush1.msra.mxu0 0.0
    %502 = vmatprep.subr.mxu0 0.0
    %503 = vmatpush1.msra.mxu0 0.0
    %504 = vmatprep.subr.mxu0 0.0
    %505 = vmatpush1.msra.mxu0 0.0
    %506 = vmatprep.subr.mxu0 0.0
    %507 = vmatpush1.msra.mxu0 0.0
    %508 = vmatprep.subr.mxu0 0.0
    %509 = vmatpush1.msra.mxu0 0.0
    %510 = vmatprep.subr.mxu0 0.0
    %511 = vmatpush1.msra.mxu0 0.0
    %512 = vmatprep.subr.mxu0 0.0
    %513 = vmatpush1.msra.mxu0 0.0
    %514 = vmatprep.subr.mxu0 0.0
    %515 = vmatpush1.msra.mxu0 0.0
    %516 = vmatprep.mubr.f32.mxu0 0.0
    %517 = vmatmul.mubr.f32.gmra.mrb[0].mxu0 0.0
    %v518 = vpop.f32.mrb[0].mxu0
    %v519 = vadd.f32 0.0, %v518
    %v520 = vpop.f32.mrb[0].mxu0
    %v521 = vadd.f32 0.0, %v520
    %522 = vdwg.mxu0
    %523 = vmatprep.subr.mxu0 0.0
    %524 = vmatpush1.msra.mxu0 %v406
    %525 = vmatprep.subr.mxu0 0.0
    %526 = vmatpush1.msra.mxu0 %v409
    %527 = vmatprep.subr.mxu0 0.0
    %528 = vmatpush1.msra.mxu0 %v412
    %529 = vmatprep.subr.mxu0 0.0
    %530 = vmatpush1.msra.mxu0 %v415
    %531 = vmatprep.subr.mxu0 0.0
    %532 = vmatpush1.msra.mxu0 %v418
    %533 = vmatprep.subr.mxu0 0.0
    %534 = vmatpush1.msra.mxu0 %v421
    %535 = vmatprep.subr.mxu0 0.0
    %536 = vmatpush1.msra.mxu0 %v424
    %537 = vmatprep.subr.mxu0 0.0
    %538 = vmatpush1.msra.mxu0 %v427
    %539 = vmatprep.subr.mxu0 0.0
    %540 = vmatpush1.msra.mxu0 %v430
    %541 = vmatprep.subr.mxu0 0.0
    %542 = vmatpush1.msra.mxu0 %v433
    %543 = vmatprep.subr.mxu0 0.0
    %544 = vmatpush1.msra.mxu0 %v436
    %545 = vmatprep.subr.mxu0 0.0
    %546 = vmatpush1.msra.mxu0 %v439
    %547 = vmatprep.subr.mxu0 0.0
    %548 = vmatpush1.msra.mxu0 %v442
    %549 = vmatprep.subr.mxu0 0.0
    %550 = vmatpush1.msra.mxu0 %v445
    %551 = vmatprep.subr.mxu0 0.0
    %552 = vmatpush1.msra.mxu0 %v448
    %553 = vmatprep.subr.mxu0 0.0
    %554 = vmatpush1.msra.mxu0 %v451
    %555 = vmatprep.subr.mxu0 0.0
    %556 = vmatpush1.msra.mxu0 0.0
    %557 = vmatprep.subr.mxu0 0.0
    %558 = vmatpush1.msra.mxu0 0.0
    %559 = vmatprep.subr.mxu0 0.0
    %560 = vmatpush1.msra.mxu0 0.0
    %561 = vmatprep.subr.mxu0 0.0
    %562 = vmatpush1.msra.mxu0 0.0
    %563 = vmatprep.subr.mxu0 0.0
    %564 = vmatpush1.msra.mxu0 0.0
    %565 = vmatprep.subr.mxu0 0.0
    %566 = vmatpush1.msra.mxu0 0.0
    %567 = vmatprep.subr.mxu0 0.0
    %568 = vmatpush1.msra.mxu0 0.0
    %569 = vmatprep.subr.mxu0 0.0
    %570 = vmatpush1.msra.mxu0 0.0
    %571 = vmatprep.subr.mxu0 0.0
    %572 = vmatpush1.msra.mxu0 0.0
    %573 = vmatprep.subr.mxu0 0.0
    %574 = vmatpush1.msra.mxu0 0.0
    %575 = vmatprep.subr.mxu0 0.0
    %576 = vmatpush1.msra.mxu0 0.0
    %577 = vmatprep.subr.mxu0 0.0
    %578 = vmatpush1.msra.mxu0 0.0
    %579 = vmatprep.subr.mxu0 0.0
    %580 = vmatpush1.msra.mxu0 0.0
    %581 = vmatprep.subr.mxu0 0.0
    %582 = vmatpush1.msra.mxu0 0.0
    %583 = vmatprep.subr.mxu0 0.0
    %584 = vmatpush1.msra.mxu0 0.0
    %585 = vmatprep.subr.mxu0 0.0
    %586 = vmatpush1.msra.mxu0 0.0
    %587 = vmatprep.mubr.f32.mxu0 0.0
    %588 = vmatmul.mubr.f32.gmra.mrb[0].mxu0 0.0
    %v589 = vpop.f32.mrb[0].mxu0
    %v590 = vadd.f32 0.0, %v589
    %v591 = vpop.f32.mrb[0].mxu0
    %592 = vdwg.mxu0
    %v593 = vadd.f32 %v401, %v519
    %v594 = vxor.u32 %v593, 2147483648
    %v595 = vmul.f32 %v594, 1.442695
    %v596 = vpow.pop %v595
    %v597 = vadd.f32 %v596, 1.0
    %v598 = vrcp.pop %v597
    %v599 = vmul.f32 1.0, %v598
    %v600 = vadd.f32 %v402, %v521
    %v601 = vxor.u32 %v600, 2147483648
    %v602 = vmul.f32 %v601, 1.442695
    %v603 = vpow.pop %v602
    %v604 = vadd.f32 %v603, 1.0
    %v605 = vrcp.pop %v604
    %v606 = vmul.f32 1.0, %v605
    %v607 = vld [vmem:[%s5] sm:$0x1]
    %v609 = vlaneseq
    %v610 = vshrl.u32 %v609, 7
    %v611 = vsub.s32 0, %v610
    %v612 = vrot.slane %v607, %v611
    %v614 = vadd.f32 %v590, %v612
    %v615 = vmul.f32 %v599, %v614
    %v616 = vadd.f32 %v403, %v615
    %v617 = vtanh.pop %v616
    %v618 = vsub.f32 1.0, %v606
    %v619 = vmul.f32 %v618, %v617
    %v620 = vmul.f32 %v606, 0.0
    %v621 = vadd.f32 %v619, %v620
    %vm622 = vcmp.gt.s32.totalorder %v105, 0
    %v623 = vsel %vm622, 1, 0
    %624 = vset.pattern.permute.xlu0 0
    %625 = vperm.xlu0 %624, %v623
    %v626 = vpop.permute.xlu0 %625
    %vm627 = vcmp.eq.s32.totalorder %v626, 1
    %v628 = vsel %vm627, %v621, 0.0
    %629 = vst [vmem:[#allocation3] sm:$0xff] %v628
    %s630 = scalar_lea.vmem [#allocation2], 24
    %v631 = vld [vmem:[%s630] sm:$0xff]
    %v632 = vld [vmem:[%s630 + $0x8] sm:$0xff]
    %v633 = vld [vmem:[%s630 + $0x10] sm:$0xff]
    %v634 = vld [vmem:[#allocation4] sm:$0xff]
    %v635 = vld [vmem:[#allocation4 + $0x8] sm:$0xff]
    %v636 = vld [vmem:[#allocation4 + $0x10] sm:$0xff]
    %v637 = vld [vmem:[#allocation4 + $0x18] sm:$0xff]
    %v638 = vld [vmem:[#allocation4 + $0x20] sm:$0xff]
    %v639 = vld [vmem:[#allocation4 + $0x28] sm:$0xff]
    %v640 = vld [vmem:[#allocation4 + $0x30] sm:$0xff]
    %v641 = vld [vmem:[#allocation4 + $0x38] sm:$0xff]
    %v642 = vld [vmem:[#allocation4 + $0x40] sm:$0xff]
    %v643 = vld [vmem:[#allocation4 + $0x48] sm:$0xff]
    %v644 = vld [vmem:[#allocation4 + $0x50] sm:$0xff]
    %v645 = vld [vmem:[#allocation4 + $0x58] sm:$0xff]
    %v646 = vld [vmem:[#allocation4 + $0x60] sm:$0xff]
    %v647 = vld [vmem:[#allocation4 + $0x68] sm:$0xff]
    %v648 = vld [vmem:[#allocation4 + $0x70] sm:$0xff]
    %v649 = vld [vmem:[#allocation4 + $0x78] sm:$0xff]
    %v650 = vld [vmem:[#allocation4 + $0x80] sm:$0xff]
    %v651 = vld [vmem:[#allocation4 + $0x88] sm:$0xff]
    %v652 = vld [vmem:[#allocation4 + $0x90] sm:$0xff]
    %v653 = vld [vmem:[#allocation4 + $0x98] sm:$0xff]
    %v654 = vld [vmem:[#allocation4 + $0xa0] sm:$0xff]
    %v655 = vld [vmem:[#allocation4 + $0xa8] sm:$0xff]
    %v656 = vld [vmem:[#allocation4 + $0xb0] sm:$0xff]
    %v657 = vld [vmem:[#allocation4 + $0xb8] sm:$0xff]
    %v658 = vld [vmem:[#allocation4 + $0xc0] sm:$0xff]
    %v659 = vld [vmem:[#allocation4 + $0xc8] sm:$0xff]
    %v660 = vld [vmem:[#allocation4 + $0xd0] sm:$0xff]
    %v661 = vld [vmem:[#allocation4 + $0xd8] sm:$0xff]
    %v662 = vld [vmem:[#allocation4 + $0xe0] sm:$0xff]
    %v663 = vld [vmem:[#allocation4 + $0xe8] sm:$0xff]
    %v664 = vld [vmem:[#allocation4 + $0xf0] sm:$0xff]
    %v665 = vld [vmem:[#allocation4 + $0xf8] sm:$0xff]
    %v666 = vld [vmem:[#allocation4 + $0x100] sm:$0xff]
    %v667 = vld [vmem:[#allocation4 + $0x108] sm:$0xff]
    %v668 = vld [vmem:[#allocation4 + $0x110] sm:$0xff]
    %v669 = vld [vmem:[#allocation4 + $0x118] sm:$0xff]
    %v670 = vld [vmem:[#allocation4 + $0x120] sm:$0xff]
    %v671 = vld [vmem:[#allocation4 + $0x128] sm:$0xff]
    %v672 = vld [vmem:[#allocation4 + $0x130] sm:$0xff]
    %v673 = vld [vmem:[#allocation4 + $0x138] sm:$0xff]
    %v674 = vld [vmem:[#allocation4 + $0x140] sm:$0xff]
    %v675 = vld [vmem:[#allocation4 + $0x148] sm:$0xff]
    %v676 = vld [vmem:[#allocation4 + $0x150] sm:$0xff]
    %v677 = vld [vmem:[#allocation4 + $0x158] sm:$0xff]
    %v678 = vld [vmem:[#allocation4 + $0x160] sm:$0xff]
    %v679 = vld [vmem:[#allocation4 + $0x168] sm:$0xff]
    %v680 = vld [vmem:[#allocation4 + $0x170] sm:$0xff]
    %v681 = vld [vmem:[#allocation4 + $0x178] sm:$0xff]
    %682 = vmatprep.subr.mxu0 %v635
    %683 = vmatpush1.msra.mxu0 %v634
    %684 = vmatprep.subr.mxu0 %v638
    %685 = vmatpush1.msra.mxu0 %v637
    %686 = vmatprep.subr.mxu0 %v641
    %687 = vmatpush1.msra.mxu0 %v640
    %688 = vmatprep.subr.mxu0 %v644
    %689 = vmatpush1.msra.mxu0 %v643
    %690 = vmatprep.subr.mxu0 %v647
    %691 = vmatpush1.msra.mxu0 %v646
    %692 = vmatprep.subr.mxu0 %v650
    %693 = vmatpush1.msra.mxu0 %v649
    %694 = vmatprep.subr.mxu0 %v653
    %695 = vmatpush1.msra.mxu0 %v652
    %696 = vmatprep.subr.mxu0 %v656
    %697 = vmatpush1.msra.mxu0 %v655
    %698 = vmatprep.subr.mxu0 %v659
    %699 = vmatpush1.msra.mxu0 %v658
    %700 = vmatprep.subr.mxu0 %v662
    %701 = vmatpush1.msra.mxu0 %v661
    %702 = vmatprep.subr.mxu0 %v665
    %703 = vmatpush1.msra.mxu0 %v664
    %704 = vmatprep.subr.mxu0 %v668
    %705 = vmatpush1.msra.mxu0 %v667
    %706 = vmatprep.subr.mxu0 %v671
    %707 = vmatpush1.msra.mxu0 %v670
    %708 = vmatprep.subr.mxu0 %v674
    %709 = vmatpush1.msra.mxu0 %v673
    %710 = vmatprep.subr.mxu0 %v677
    %711 = vmatpush1.msra.mxu0 %v676
    %712 = vmatprep.subr.mxu0 %v680
    %713 = vmatpush1.msra.mxu0 %v679
    %714 = vmatprep.subr.mxu0 0.0
    %715 = vmatpush1.msra.mxu0 0.0
    %716 = vmatprep.subr.mxu0 0.0
    %717 = vmatpush1.msra.mxu0 0.0
    %718 = vmatprep.subr.mxu0 0.0
    %719 = vmatpush1.msra.mxu0 0.0
    %720 = vmatprep.subr.mxu0 0.0
    %721 = vmatpush1.msra.mxu0 0.0
    %722 = vmatprep.subr.mxu0 0.0
    %723 = vmatpush1.msra.mxu0 0.0
    %724 = vmatprep.subr.mxu0 0.0
    %725 = vmatpush1.msra.mxu0 0.0
    %726 = vmatprep.subr.mxu0 0.0
    %727 = vmatpush1.msra.mxu0 0.0
    %728 = vmatprep.subr.mxu0 0.0
    %729 = vmatpush1.msra.mxu0 0.0
    %730 = vmatprep.subr.mxu0 0.0
    %731 = vmatpush1.msra.mxu0 0.0
    %732 = vmatprep.subr.mxu0 0.0
    %733 = vmatpush1.msra.mxu0 0.0
    %734 = vmatprep.subr.mxu0 0.0
    %735 = vmatpush1.msra.mxu0 0.0
    %736 = vmatprep.subr.mxu0 0.0
    %737 = vmatpush1.msra.mxu0 0.0
    %738 = vmatprep.subr.mxu0 0.0
    %739 = vmatpush1.msra.mxu0 0.0
    %740 = vmatprep.subr.mxu0 0.0
    %741 = vmatpush1.msra.mxu0 0.0
    %742 = vmatprep.subr.mxu0 0.0
    %743 = vmatpush1.msra.mxu0 0.0
    %744 = vmatprep.subr.mxu0 0.0
    %745 = vmatpush1.msra.mxu0 0.0
    %746 = vmatprep.mubr.f32.mxu0 0.0
    %747 = vmatmul.mubr.f32.gmra.mrb[0].mxu0 %v628
    %v748 = vpop.f32.mrb[0].mxu0
    %v749 = vadd.f32 0.0, %v748
    %v750 = vpop.f32.mrb[0].mxu0
    %v751 = vadd.f32 0.0, %v750
    %752 = vdwg.mxu0
    %753 = vmatprep.subr.mxu0 0.0
    %754 = vmatpush1.msra.mxu0 %v636
    %755 = vmatprep.subr.mxu0 0.0
    %756 = vmatpush1.msra.mxu0 %v639
    %757 = vmatprep.subr.mxu0 0.0
    %758 = vmatpush1.msra.mxu0 %v642
    %759 = vmatprep.subr.mxu0 0.0
    %760 = vmatpush1.msra.mxu0 %v645
    %761 = vmatprep.subr.mxu0 0.0
    %762 = vmatpush1.msra.mxu0 %v648
    %763 = vmatprep.subr.mxu0 0.0
    %764 = vmatpush1.msra.mxu0 %v651
    %765 = vmatprep.subr.mxu0 0.0
    %766 = vmatpush1.msra.mxu0 %v654
    %767 = vmatprep.subr.mxu0 0.0
    %768 = vmatpush1.msra.mxu0 %v657
    %769 = vmatprep.subr.mxu0 0.0
    %770 = vmatpush1.msra.mxu0 %v660
    %771 = vmatprep.subr.mxu0 0.0
    %772 = vmatpush1.msra.mxu0 %v663
    %773 = vmatprep.subr.mxu0 0.0
    %774 = vmatpush1.msra.mxu0 %v666
    %775 = vmatprep.subr.mxu0 0.0
    %776 = vmatpush1.msra.mxu0 %v669
    %777 = vmatprep.subr.mxu0 0.0
    %778 = vmatpush1.msra.mxu0 %v672
    %779 = vmatprep.subr.mxu0 0.0
    %780 = vmatpush1.msra.mxu0 %v675
    %781 = vmatprep.subr.mxu0 0.0
    %782 = vmatpush1.msra.mxu0 %v678
    %783 = vmatprep.subr.mxu0 0.0
    %784 = vmatpush1.msra.mxu0 %v681
    %785 = vmatprep.subr.mxu0 0.0
    %786 = vmatpush1.msra.mxu0 0.0
    %787 = vmatprep.subr.mxu0 0.0
    %788 = vmatpush1.msra.mxu0 0.0
    %789 = vmatprep.subr.mxu0 0.0
    %790 = vmatpush1.msra.mxu0 0.0
    %791 = vmatprep.subr.mxu0 0.0
    %792 = vmatpush1.msra.mxu0 0.0
    %793 = vmatprep.subr.mxu0 0.0
    %794 = vmatpush1.msra.mxu0 0.0
    %795 = vmatprep.subr.mxu0 0.0
    %796 = vmatpush1.msra.mxu0 0.0
    %797 = vmatprep.subr.mxu0 0.0
    %798 = vmatpush1.msra.mxu0 0.0
    %799 = vmatprep.subr.mxu0 0.0
    %800 = vmatpush1.msra.mxu0 0.0
    %801 = vmatprep.subr.mxu0 0.0
    %802 = vmatpush1.msra.mxu0 0.0
    %803 = vmatprep.subr.mxu0 0.0
    %804 = vmatpush1.msra.mxu0 0.0
    %805 = vmatprep.subr.mxu0 0.0
    %806 = vmatpush1.msra.mxu0 0.0
    %807 = vmatprep.subr.mxu0 0.0
    %808 = vmatpush1.msra.mxu0 0.0
    %809 = vmatprep.subr.mxu0 0.0
    %810 = vmatpush1.msra.mxu0 0.0
    %811 = vmatprep.subr.mxu0 0.0
    %812 = vmatpush1.msra.mxu0 0.0
    %813 = vmatprep.subr.mxu0 0.0
    %814 = vmatpush1.msra.mxu0 0.0
    %815 = vmatprep.subr.mxu0 0.0
    %816 = vmatpush1.msra.mxu0 0.0
    %817 = vmatprep.mubr.f32.mxu0 0.0
    %818 = vmatmul.mubr.f32.gmra.mrb[0].mxu0 %v628
    %v819 = vpop.f32.mrb[0].mxu0
    %v820 = vadd.f32 0.0, %v819
    %v821 = vpop.f32.mrb[0].mxu0
    %822 = vdwg.mxu0
    %v823 = vadd.f32 %v631, %v749
    %v824 = vxor.u32 %v823, 2147483648
    %v825 = vmul.f32 %v824, 1.442695
    %v826 = vpow.pop %v825
    %v827 = vadd.f32 %v826, 1.0
    %v828 = vrcp.pop %v827
    %v829 = vmul.f32 1.0, %v828
    %v830 = vadd.f32 %v632, %v751
    %v831 = vxor.u32 %v830, 2147483648
    %v832 = vmul.f32 %v831, 1.442695
    %v833 = vpow.pop %v832
    %v834 = vadd.f32 %v833, 1.0
    %v835 = vrcp.pop %v834
    %v836 = vmul.f32 1.0, %v835
    %v837 = vld [vmem:[%s5] sm:$0x1]
    %v839 = vlaneseq
    %v840 = vshrl.u32 %v839, 7
    %v841 = vsub.s32 0, %v840
    %v842 = vrot.slane %v837, %v841
    %v844 = vadd.f32 %v820, %v842
    %v845 = vmul.f32 %v829, %v844
    %v846 = vadd.f32 %v633, %v845
    %v847 = vtanh.pop %v846
    %v848 = vsub.f32 1.0, %v836
    %v849 = vmul.f32 %v848, %v847
    %v850 = vmul.f32 %v836, %v628
    %v851 = vadd.f32 %v849, %v850
    %vm852 = vcmp.gt.s32.totalorder %v105, 1
    %v853 = vsel %vm852, 1, 0
    %854 = vset.pattern.permute.xlu0 0
    %855 = vperm.xlu0 %854, %v853
    %v856 = vpop.permute.xlu0 %855
    %vm857 = vcmp.eq.s32.totalorder %v856, 1
    %v858 = vsel %vm857, %v851, %v628
    %s859 = scalar_lea.vmem [#allocation3], 8
    %860 = vst [vmem:[%s859] sm:$0xff] %v858
    %s861 = scalar_lea.vmem [#allocation2], 48
    %v862 = vld [vmem:[%s861] sm:$0xff]
    %v863 = vld [vmem:[%s861 + $0x8] sm:$0xff]
    %v864 = vld [vmem:[%s861 + $0x10] sm:$0xff]
    %v865 = vld [vmem:[#allocation4] sm:$0xff]
    %v866 = vld [vmem:[#allocation4 + $0x8] sm:$0xff]
    %v867 = vld [vmem:[#allocation4 + $0x10] sm:$0xff]
    %v868 = vld [vmem:[#allocation4 + $0x18] sm:$0xff]
    %v869 = vld [vmem:[#allocation4 + $0x20] sm:$0xff]
    %v870 = vld [vmem:[#allocation4 + $0x28] sm:$0xff]
    %v871 = vld [vmem:[#allocation4 + $0x30] sm:$0xff]
    %v872 = vld [vmem:[#allocation4 + $0x38] sm:$0xff]
    %v873 = vld [vmem:[#allocation4 + $0x40] sm:$0xff]
    %v874 = vld [vmem:[#allocation4 + $0x48] sm:$0xff]
    %v875 = vld [vmem:[#allocation4 + $0x50] sm:$0xff]
    %v876 = vld [vmem:[#allocation4 + $0x58] sm:$0xff]
    %v877 = vld [vmem:[#allocation4 + $0x60] sm:$0xff]
    %v878 = vld [vmem:[#allocation4 + $0x68] sm:$0xff]
    %v879 = vld [vmem:[#allocation4 + $0x70] sm:$0xff]
    %v880 = vld [vmem:[#allocation4 + $0x78] sm:$0xff]
    %v881 = vld [vmem:[#allocation4 + $0x80] sm:$0xff]
    %v882 = vld [vmem:[#allocation4 + $0x88] sm:$0xff]
    %v883 = vld [vmem:[#allocation4 + $0x90] sm:$0xff]
    %v884 = vld [vmem:[#allocation4 + $0x98] sm:$0xff]
    %v885 = vld [vmem:[#allocation4 + $0xa0] sm:$0xff]
    %v886 = vld [vmem:[#allocation4 + $0xa8] sm:$0xff]
    %v887 = vld [vmem:[#allocation4 + $0xb0] sm:$0xff]
    %v888 = vld [vmem:[#allocation4 + $0xb8] sm:$0xff]
    %v889 = vld [vmem:[#allocation4 + $0xc0] sm:$0xff]
    %v890 = vld [vmem:[#allocation4 + $0xc8] sm:$0xff]
    %v891 = vld [vmem:[#allocation4 + $0xd0] sm:$0xff]
    %v892 = vld [vmem:[#allocation4 + $0xd8] sm:$0xff]
    %v893 = vld [vmem:[#allocation4 + $0xe0] sm:$0xff]
    %v894 = vld [vmem:[#allocation4 + $0xe8] sm:$0xff]
    %v895 = vld [vmem:[#allocation4 + $0xf0] sm:$0xff]
    %v896 = vld [vmem:[#allocation4 + $0xf8] sm:$0xff]
    %v897 = vld [vmem:[#allocation4 + $0x100] sm:$0xff]
    %v898 = vld [vmem:[#allocation4 + $0x108] sm:$0xff]
    %v899 = vld [vmem:[#allocation4 + $0x110] sm:$0xff]
    %v900 = vld [vmem:[#allocation4 + $0x118] sm:$0xff]
    %v901 = vld [vmem:[#allocation4 + $0x120] sm:$0xff]
    %v902 = vld [vmem:[#allocation4 + $0x128] sm:$0xff]
    %v903 = vld [vmem:[#allocation4 + $0x130] sm:$0xff]
    %v904 = vld [vmem:[#allocation4 + $0x138] sm:$0xff]
    %v905 = vld [vmem:[#allocation4 + $0x140] sm:$0xff]
    %v906 = vld [vmem:[#allocation4 + $0x148] sm:$0xff]
    %v907 = vld [vmem:[#allocation4 + $0x150] sm:$0xff]
    %v908 = vld [vmem:[#allocation4 + $0x158] sm:$0xff]
    %v909 = vld [vmem:[#allocation4 + $0x160] sm:$0xff]
    %v910 = vld [vmem:[#allocation4 + $0x168] sm:$0xff]
    %v911 = vld [vmem:[#allocation4 + $0x170] sm:$0xff]
    %v912 = vld [vmem:[#allocation4 + $0x178] sm:$0xff]
    %913 = vmatprep.subr.mxu0 %v866
    %914 = vmatpush1.msra.mxu0 %v865
    %915 = vmatprep.subr.mxu0 %v869
    %916 = vmatpush1.msra.mxu0 %v868
    %917 = vmatprep.subr.mxu0 %v872
    %918 = vmatpush1.msra.mxu0 %v871
    %919 = vmatprep.subr.mxu0 %v875
    %920 = vmatpush1.msra.mxu0 %v874
    %921 = vmatprep.subr.mxu0 %v878
    %922 = vmatpush1.msra.mxu0 %v877
    %923 = vmatprep.subr.mxu0 %v881
    %924 = vmatpush1.msra.mxu0 %v880
    %925 = vmatprep.subr.mxu0 %v884
    %926 = vmatpush1.msra.mxu0 %v883
    %927 = vmatprep.subr.mxu0 %v887
    %928 = vmatpush1.msra.mxu0 %v886
    %929 = vmatprep.subr.mxu0 %v890
    %930 = vmatpush1.msra.mxu0 %v889
    %931 = vmatprep.subr.mxu0 %v893
    %932 = vmatpush1.msra.mxu0 %v892
    %933 = vmatprep.subr.mxu0 %v896
    %934 = vmatpush1.msra.mxu0 %v895
    %935 = vmatprep.subr.mxu0 %v899
    %936 = vmatpush1.msra.mxu0 %v898
    %937 = vmatprep.subr.mxu0 %v902
    %938 = vmatpush1.msra.mxu0 %v901
    %939 = vmatprep.subr.mxu0 %v905
    %940 = vmatpush1.msra.mxu0 %v904
    %941 = vmatprep.subr.mxu0 %v908
    %942 = vmatpush1.msra.mxu0 %v907
    %943 = vmatprep.subr.mxu0 %v911
    %944 = vmatpush1.msra.mxu0 %v910
    %945 = vmatprep.subr.mxu0 0.0
    %946 = vmatpush1.msra.mxu0 0.0
    %947 = vmatprep.subr.mxu0 0.0
    %948 = vmatpush1.msra.mxu0 0.0
    %949 = vmatprep.subr.mxu0 0.0
    %950 = vmatpush1.msra.mxu0 0.0
    %951 = vmatprep.subr.mxu0 0.0
    %952 = vmatpush1.msra.mxu0 0.0
    %953 = vmatprep.subr.mxu0 0.0
    %954 = vmatpush1.msra.mxu0 0.0
    %955 = vmatprep.subr.mxu0 0.0
    %956 = vmatpush1.msra.mxu0 0.0
    %957 = vmatprep.subr.mxu0 0.0
    %958 = vmatpush1.msra.mxu0 0.0
    %959 = vmatprep.subr.mxu0 0.0
    %960 = vmatpush1.msra.mxu0 0.0
    %961 = vmatprep.subr.mxu0 0.0
    %962 = vmatpush1.msra.mxu0 0.0
    %963 = vmatprep.subr.mxu0 0.0
    %964 = vmatpush1.msra.mxu0 0.0
    %965 = vmatprep.subr.mxu0 0.0
    %966 = vmatpush1.msra.mxu0 0.0
    %967 = vmatprep.subr.mxu0 0.0
    %968 = vmatpush1.msra.mxu0 0.0
    %969 = vmatprep.subr.mxu0 0.0
    %970 = vmatpush1.msra.mxu0 0.0
    %971 = vmatprep.subr.mxu0 0.0
    %972 = vmatpush1.msra.mxu0 0.0
    %973 = vmatprep.subr.mxu0 0.0
    %974 = vmatpush1.msra.mxu0 0.0
    %975 = vmatprep.subr.mxu0 0.0
    %976 = vmatpush1.msra.mxu0 0.0
    %977 = vmatprep.mubr.f32.mxu0 0.0
    %978 = vmatmul.mubr.f32.gmra.mrb[0].mxu0 %v858
    %v979 = vpop.f32.mrb[0].mxu0
    %v980 = vadd.f32 0.0, %v979
    %v981 = vpop.f32.mrb[0].mxu0
    %v982 = vadd.f32 0.0, %v981
    %983 = vdwg.mxu0
    %984 = vmatprep.subr.mxu0 0.0
    %985 = vmatpush1.msra.mxu0 %v867
    %986 = vmatprep.subr.mxu0 0.0
    %987 = vmatpush1.msra.mxu0 %v870
    %988 = vmatprep.subr.mxu0 0.0
    %989 = vmatpush1.msra.mxu0 %v873
    %990 = vmatprep.subr.mxu0 0.0
    %991 = vmatpush1.msra.mxu0 %v876
    %992 = vmatprep.subr.mxu0 0.0
    %993 = vmatpush1.msra.mxu0 %v879
    %994 = vmatprep.subr.mxu0 0.0
    %995 = vmatpush1.msra.mxu0 %v882
    %996 = vmatprep.subr.mxu0 0.0
    %997 = vmatpush1.msra.mxu0 %v885
    %998 = vmatprep.subr.mxu0 0.0
    %999 = vmatpush1.msra.mxu0 %v888
    %1000 = vmatprep.subr.mxu0 0.0
    %1001 = vmatpush1.msra.mxu0 %v891
    %1002 = vmatprep.subr.mxu0 0.0
    %1003 = vmatpush1.msra.mxu0 %v894
    %1004 = vmatprep.subr.mxu0 0.0
    %1005 = vmatpush1.msra.mxu0 %v897
    %1006 = vmatprep.subr.mxu0 0.0
    %1007 = vmatpush1.msra.mxu0 %v900
    %1008 = vmatprep.subr.mxu0 0.0
    %1009 = vmatpush1.msra.mxu0 %v903
    %1010 = vmatprep.subr.mxu0 0.0
    %1011 = vmatpush1.msra.mxu0 %v906
    %1012 = vmatprep.subr.mxu0 0.0
    %1013 = vmatpush1.msra.mxu0 %v909
    %1014 = vmatprep.subr.mxu0 0.0
    %1015 = vmatpush1.msra.mxu0 %v912
    %1016 = vmatprep.subr.mxu0 0.0
    %1017 = vmatpush1.msra.mxu0 0.0
    %1018 = vmatprep.subr.mxu0 0.0
    %1019 = vmatpush1.msra.mxu0 0.0
    %1020 = vmatprep.subr.mxu0 0.0
    %1021 = vmatpush1.msra.mxu0 0.0
    %1022 = vmatprep.subr.mxu0 0.0
    %1023 = vmatpush1.msra.mxu0 0.0
    %1024 = vmatprep.subr.mxu0 0.0
    %1025 = vmatpush1.msra.mxu0 0.0
    %1026 = vmatprep.subr.mxu0 0.0
    %1027 = vmatpush1.msra.mxu0 0.0
    %1028 = vmatprep.subr.mxu0 0.0
    %1029 = vmatpush1.msra.mxu0 0.0
    %1030 = vmatprep.subr.mxu0 0.0
    %1031 = vmatpush1.msra.mxu0 0.0
    %1032 = vmatprep.subr.mxu0 0.0
    %1033 = vmatpush1.msra.mxu0 0.0
    %1034 = vmatprep.subr.mxu0 0.0
    %1035 = vmatpush1.msra.mxu0 0.0
    %1036 = vmatprep.subr.mxu0 0.0
    %1037 = vmatpush1.msra.mxu0 0.0
    %1038 = vmatprep.subr.mxu0 0.0
    %1039 = vmatpush1.msra.mxu0 0.0
    %1040 = vmatprep.subr.mxu0 0.0
    %1041 = vmatpush1.msra.mxu0 0.0
    %1042 = vmatprep.subr.mxu0 0.0
    %1043 = vmatpush1.msra.mxu0 0.0
    %1044 = vmatprep.subr.mxu0 0.0
    %1045 = vmatpush1.msra.mxu0 0.0
    %1046 = vmatprep.subr.mxu0 0.0
    %1047 = vmatpush1.msra.mxu0 0.0
    %1048 = vmatprep.mubr.f32.mxu0 0.0
    %1049 = vmatmul.mubr.f32.gmra.mrb[0].mxu0 %v858
    %v1050 = vpop.f32.mrb[0].mxu0
    %v1051 = vadd.f32 0.0, %v1050
    %v1052 = vpop.f32.mrb[0].mxu0
    %1053 = vdwg.mxu0
    %v1054 = vadd.f32 %v862, %v980
    %v1055 = vxor.u32 %v1054, 2147483648
    %v1056 = vmul.f32 %v1055, 1.442695
    %v1057 = vpow.pop %v1056
    %v1058 = vadd.f32 %v1057, 1.0
    %v1059 = vrcp.pop %v1058
    %v1060 = vmul.f32 1.0, %v1059
    %v1061 = vadd.f32 %v863, %v982
    %v1062 = vxor.u32 %v1061, 2147483648
    %v1063 = vmul.f32 %v1062, 1.442695
    %v1064 = vpow.pop %v1063
    %v1065 = vadd.f32 %v1064, 1.0
    %v1066 = vrcp.pop %v1065
    %v1067 = vmul.f32 1.0, %v1066
    %v1068 = vld [vmem:[%s5] sm:$0x1]
    %v1070 = vlaneseq
    %v1071 = vshrl.u32 %v1070, 7
    %v1072 = vsub.s32 0, %v1071
    %v1073 = vrot.slane %v1068, %v1072
    %v1075 = vadd.f32 %v1051, %v1073
    %v1076 = vmul.f32 %v1060, %v1075
    %v1077 = vadd.f32 %v864, %v1076
    %v1078 = vtanh.pop %v1077
    %v1079 = vsub.f32 1.0, %v1067
    %v1080 = vmul.f32 %v1079, %v1078
    %v1081 = vmul.f32 %v1067, %v858
    %v1082 = vadd.f32 %v1080, %v1081
    %vm1083 = vcmp.gt.s32.totalorder %v105, 2
    %v1084 = vsel %vm1083, 1, 0
    %1085 = vset.pattern.permute.xlu0 0
    %1086 = vperm.xlu0 %1085, %v1084
    %v1087 = vpop.permute.xlu0 %1086
    %vm1088 = vcmp.eq.s32.totalorder %v1087, 1
    %v1089 = vsel %vm1088, %v1082, %v858
    %s1090 = scalar_lea.vmem [#allocation3], 16
    %1091 = vst [vmem:[%s1090] sm:$0xff] %v1089
    %s1092 = scalar_lea.vmem [#allocation2], 72
    %v1093 = vld [vmem:[%s1092] sm:$0xff]
    %v1094 = vld [vmem:[%s1092 + $0x8] sm:$0xff]
    %v1095 = vld [vmem:[%s1092 + $0x10] sm:$0xff]
    %v1096 = vld [vmem:[#allocation4] sm:$0xff]
    %v1097 = vld [vmem:[#allocation4 + $0x8] sm:$0xff]
    %v1098 = vld [vmem:[#allocation4 + $0x10] sm:$0xff]
    %v1099 = vld [vmem:[#allocation4 + $0x18] sm:$0xff]
    %v1100 = vld [vmem:[#allocation4 + $0x20] sm:$0xff]
    %v1101 = vld [vmem:[#allocation4 + $0x28] sm:$0xff]
    %v1102 = vld [vmem:[#allocation4 + $0x30] sm:$0xff]
    %v1103 = vld [vmem:[#allocation4 + $0x38] sm:$0xff]
    %v1104 = vld [vmem:[#allocation4 + $0x40] sm:$0xff]
    %v1105 = vld [vmem:[#allocation4 + $0x48] sm:$0xff]
    %v1106 = vld [vmem:[#allocation4 + $0x50] sm:$0xff]
    %v1107 = vld [vmem:[#allocation4 + $0x58] sm:$0xff]
    %v1108 = vld [vmem:[#allocation4 + $0x60] sm:$0xff]
    %v1109 = vld [vmem:[#allocation4 + $0x68] sm:$0xff]
    %v1110 = vld [vmem:[#allocation4 + $0x70] sm:$0xff]
    %v1111 = vld [vmem:[#allocation4 + $0x78] sm:$0xff]
    %v1112 = vld [vmem:[#allocation4 + $0x80] sm:$0xff]
    %v1113 = vld [vmem:[#allocation4 + $0x88] sm:$0xff]
    %v1114 = vld [vmem:[#allocation4 + $0x90] sm:$0xff]
    %v1115 = vld [vmem:[#allocation4 + $0x98] sm:$0xff]
    %v1116 = vld [vmem:[#allocation4 + $0xa0] sm:$0xff]
    %v1117 = vld [vmem:[#allocation4 + $0xa8] sm:$0xff]
    %v1118 = vld [vmem:[#allocation4 + $0xb0] sm:$0xff]
    %v1119 = vld [vmem:[#allocation4 + $0xb8] sm:$0xff]
    %v1120 = vld [vmem:[#allocation4 + $0xc0] sm:$0xff]
    %v1121 = vld [vmem:[#allocation4 + $0xc8] sm:$0xff]
    %v1122 = vld [vmem:[#allocation4 + $0xd0] sm:$0xff]
    %v1123 = vld [vmem:[#allocation4 + $0xd8] sm:$0xff]
    %v1124 = vld [vmem:[#allocation4 + $0xe0] sm:$0xff]
    %v1125 = vld [vmem:[#allocation4 + $0xe8] sm:$0xff]
    %v1126 = vld [vmem:[#allocation4 + $0xf0] sm:$0xff]
    %v1127 = vld [vmem:[#allocation4 + $0xf8] sm:$0xff]
    %v1128 = vld [vmem:[#allocation4 + $0x100] sm:$0xff]
    %v1129 = vld [vmem:[#allocation4 + $0x108] sm:$0xff]
    %v1130 = vld [vmem:[#allocation4 + $0x110] sm:$0xff]
    %v1131 = vld [vmem:[#allocation4 + $0x118] sm:$0xff]
    %v1132 = vld [vmem:[#allocation4 + $0x120] sm:$0xff]
    %v1133 = vld [vmem:[#allocation4 + $0x128] sm:$0xff]
    %v1134 = vld [vmem:[#allocation4 + $0x130] sm:$0xff]
    %v1135 = vld [vmem:[#allocation4 + $0x138] sm:$0xff]
    %v1136 = vld [vmem:[#allocation4 + $0x140] sm:$0xff]
    %v1137 = vld [vmem:[#allocation4 + $0x148] sm:$0xff]
    %v1138 = vld [vmem:[#allocation4 + $0x150] sm:$0xff]
    %v1139 = vld [vmem:[#allocation4 + $0x158] sm:$0xff]
    %v1140 = vld [vmem:[#allocation4 + $0x160] sm:$0xff]
    %v1141 = vld [vmem:[#allocation4 + $0x168] sm:$0xff]
    %v1142 = vld [vmem:[#allocation4 + $0x170] sm:$0xff]
    %v1143 = vld [vmem:[#allocation4 + $0x178] sm:$0xff]
    %1144 = vmatprep.subr.mxu0 %v1097
    %1145 = vmatpush1.msra.mxu0 %v1096
    %1146 = vmatprep.subr.mxu0 %v1100
    %1147 = vmatpush1.msra.mxu0 %v1099
    %1148 = vmatprep.subr.mxu0 %v1103
    %1149 = vmatpush1.msra.mxu0 %v1102
    %1150 = vmatprep.subr.mxu0 %v1106
    %1151 = vmatpush1.msra.mxu0 %v1105
    %1152 = vmatprep.subr.mxu0 %v1109
    %1153 = vmatpush1.msra.mxu0 %v1108
    %1154 = vmatprep.subr.mxu0 %v1112
    %1155 = vmatpush1.msra.mxu0 %v1111
    %1156 = vmatprep.subr.mxu0 %v1115
    %1157 = vmatpush1.msra.mxu0 %v1114
    %1158 = vmatprep.subr.mxu0 %v1118
    %1159 = vmatpush1.msra.mxu0 %v1117
    %1160 = vmatprep.subr.mxu0 %v1121
    %1161 = vmatpush1.msra.mxu0 %v1120
    %1162 = vmatprep.subr.mxu0 %v1124
    %1163 = vmatpush1.msra.mxu0 %v1123
    %1164 = vmatprep.subr.mxu0 %v1127
    %1165 = vmatpush1.msra.mxu0 %v1126
    %1166 = vmatprep.subr.mxu0 %v1130
    %1167 = vmatpush1.msra.mxu0 %v1129
    %1168 = vmatprep.subr.mxu0 %v1133
    %1169 = vmatpush1.msra.mxu0 %v1132
    %1170 = vmatprep.subr.mxu0 %v1136
    %1171 = vmatpush1.msra.mxu0 %v1135
    %1172 = vmatprep.subr.mxu0 %v1139
    %1173 = vmatpush1.msra.mxu0 %v1138
    %1174 = vmatprep.subr.mxu0 %v1142
    %1175 = vmatpush1.msra.mxu0 %v1141
    %1176 = vmatprep.subr.mxu0 0.0
    %1177 = vmatpush1.msra.mxu0 0.0
    %1178 = vmatprep.subr.mxu0 0.0
    %1179 = vmatpush1.msra.mxu0 0.0
    %1180 = vmatprep.subr.mxu0 0.0
    %1181 = vmatpush1.msra.mxu0 0.0
    %1182 = vmatprep.subr.mxu0 0.0
    %1183 = vmatpush1.msra.mxu0 0.0
    %1184 = vmatprep.subr.mxu0 0.0
    %1185 = vmatpush1.msra.mxu0 0.0
    %1186 = vmatprep.subr.mxu0 0.0
    %1187 = vmatpush1.msra.mxu0 0.0
    %1188 = vmatprep.subr.mxu0 0.0
    %1189 = vmatpush1.msra.mxu0 0.0
    %1190 = vmatprep.subr.mxu0 0.0
    %1191 = vmatpush1.msra.mxu0 0.0
    %1192 = vmatprep.subr.mxu0 0.0
    %1193 = vmatpush1.msra.mxu0 0.0
    %1194 = vmatprep.subr.mxu0 0.0
    %1195 = vmatpush1.msra.mxu0 0.0
    %1196 = vmatprep.subr.mxu0 0.0
    %1197 = vmatpush1.msra.mxu0 0.0
    %1198 = vmatprep.subr.mxu0 0.0
    %1199 = vmatpush1.msra.mxu0 0.0
    %1200 = vmatprep.subr.mxu0 0.0
    %1201 = vmatpush1.msra.mxu0 0.0
    %1202 = vmatprep.subr.mxu0 0.0
    %1203 = vmatpush1.msra.mxu0 0.0
    %1204 = vmatprep.subr.mxu0 0.0
    %1205 = vmatpush1.msra.mxu0 0.0
    %1206 = vmatprep.subr.mxu0 0.0
    %1207 = vmatpush1.msra.mxu0 0.0
    %1208 = vmatprep.mubr.f32.mxu0 0.0
    %1209 = vmatmul.mubr.f32.gmra.mrb[0].mxu0 %v1089
    %v1210 = vpop.f32.mrb[0].mxu0
    %v1211 = vadd.f32 0.0, %v1210
    %v1212 = vpop.f32.mrb[0].mxu0
    %v1213 = vadd.f32 0.0, %v1212
    %1214 = vdwg.mxu0
    %1215 = vmatprep.subr.mxu0 0.0
    %1216 = vmatpush1.msra.mxu0 %v1098
    %1217 = vmatprep.subr.mxu0 0.0
    %1218 = vmatpush1.msra.mxu0 %v1101
    %1219 = vmatprep.subr.mxu0 0.0
    %1220 = vmatpush1.msra.mxu0 %v1104
    %1221 = vmatprep.subr.mxu0 0.0
    %1222 = vmatpush1.msra.mxu0 %v1107
    %1223 = vmatprep.subr.mxu0 0.0
    %1224 = vmatpush1.msra.mxu0 %v1110
    %1225 = vmatprep.subr.mxu0 0.0
    %1226 = vmatpush1.msra.mxu0 %v1113
    %1227 = vmatprep.subr.mxu0 0.0
    %1228 = vmatpush1.msra.mxu0 %v1116
    %1229 = vmatprep.subr.mxu0 0.0
    %1230 = vmatpush1.msra.mxu0 %v1119
    %1231 = vmatprep.subr.mxu0 0.0
    %1232 = vmatpush1.msra.mxu0 %v1122
    %1233 = vmatprep.subr.mxu0 0.0
    %1234 = vmatpush1.msra.mxu0 %v1125
    %1235 = vmatprep.subr.mxu0 0.0
    %1236 = vmatpush1.msra.mxu0 %v1128
    %1237 = vmatprep.subr.mxu0 0.0
    %1238 = vmatpush1.msra.mxu0 %v1131
    %1239 = vmatprep.subr.mxu0 0.0
    %1240 = vmatpush1.msra.mxu0 %v1134
    %1241 = vmatprep.subr.mxu0 0.0
    %1242 = vmatpush1.msra.mxu0 %v1137
    %1243 = vmatprep.subr.mxu0 0.0
    %1244 = vmatpush1.msra.mxu0 %v1140
    %1245 = vmatprep.subr.mxu0 0.0
    %1246 = vmatpush1.msra.mxu0 %v1143
    %1247 = vmatprep.subr.mxu0 0.0
    %1248 = vmatpush1.msra.mxu0 0.0
    %1249 = vmatprep.subr.mxu0 0.0
    %1250 = vmatpush1.msra.mxu0 0.0
    %1251 = vmatprep.subr.mxu0 0.0
    %1252 = vmatpush1.msra.mxu0 0.0
    %1253 = vmatprep.subr.mxu0 0.0
    %1254 = vmatpush1.msra.mxu0 0.0
    %1255 = vmatprep.subr.mxu0 0.0
    %1256 = vmatpush1.msra.mxu0 0.0
    %1257 = vmatprep.subr.mxu0 0.0
    %1258 = vmatpush1.msra.mxu0 0.0
    %1259 = vmatprep.subr.mxu0 0.0
    %1260 = vmatpush1.msra.mxu0 0.0
    %1261 = vmatprep.subr.mxu0 0.0
    %1262 = vmatpush1.msra.mxu0 0.0
    %1263 = vmatprep.subr.mxu0 0.0
    %1264 = vmatpush1.msra.mxu0 0.0
    %1265 = vmatprep.subr.mxu0 0.0
    %1266 = vmatpush1.msra.mxu0 0.0
    %1267 = vmatprep.subr.mxu0 0.0
    %1268 = vmatpush1.msra.mxu0 0.0
    %1269 = vmatprep.subr.mxu0 0.0
    %1270 = vmatpush1.msra.mxu0 0.0
    %1271 = vmatprep.subr.mxu0 0.0
    %1272 = vmatpush1.msra.mxu0 0.0
    %1273 = vmatprep.subr.mxu0 0.0
    %1274 = vmatpush1.msra.mxu0 0.0
    %1275 = vmatprep.subr.mxu0 0.0
    %1276 = vmatpush1.msra.mxu0 0.0
    %1277 = vmatprep.subr.mxu0 0.0
    %1278 = vmatpush1.msra.mxu0 0.0
    %1279 = vmatprep.mubr.f32.mxu0 0.0
    %1280 = vmatmul.mubr.f32.gmra.mrb[0].mxu0 %v1089
    %v1281 = vpop.f32.mrb[0].mxu0
    %v1282 = vadd.f32 0.0, %v1281
    %v1283 = vpop.f32.mrb[0].mxu0
    %1284 = vdwg.mxu0
    %v1285 = vadd.f32 %v1093, %v1211
    %v1286 = vxor.u32 %v1285, 2147483648
    %v1287 = vmul.f32 %v1286, 1.442695
    %v1288 = vpow.pop %v1287
    %v1289 = vadd.f32 %v1288, 1.0
    %v1290 = vrcp.pop %v1289
    %v1291 = vmul.f32 1.0, %v1290
    %v1292 = vadd.f32 %v1094, %v1213
    %v1293 = vxor.u32 %v1292, 2147483648
    %v1294 = vmul.f32 %v1293, 1.442695
    %v1295 = vpow.pop %v1294
    %v1296 = vadd.f32 %v1295, 1.0
    %v1297 = vrcp.pop %v1296
    %v1298 = vmul.f32 1.0, %v1297
    %v1299 = vld [vmem:[%s5] sm:$0x1]
    %v1301 = vlaneseq
    %v1302 = vshrl.u32 %v1301, 7
    %v1303 = vsub.s32 0, %v1302
    %v1304 = vrot.slane %v1299, %v1303
    %v1306 = vadd.f32 %v1282, %v1304
    %v1307 = vmul.f32 %v1291, %v1306
    %v1308 = vadd.f32 %v1095, %v1307
    %v1309 = vtanh.pop %v1308
    %v1310 = vsub.f32 1.0, %v1298
    %v1311 = vmul.f32 %v1310, %v1309
    %v1312 = vmul.f32 %v1298, %v1089
    %v1313 = vadd.f32 %v1311, %v1312
    %vm1314 = vcmp.gt.s32.totalorder %v105, 3
    %v1315 = vsel %vm1314, 1, 0
    %1316 = vset.pattern.permute.xlu0 0
    %1317 = vperm.xlu0 %1316, %v1315
    %v1318 = vpop.permute.xlu0 %1317
    %vm1319 = vcmp.eq.s32.totalorder %v1318, 1
    %v1320 = vsel %vm1319, %v1313, %v1089
    %s1321 = scalar_lea.vmem [#allocation3], 24
    %1322 = vst [vmem:[%s1321] sm:$0xff] %v1320
    %s1323 = scalar_lea.vmem [#allocation2], 96
    %v1324 = vld [vmem:[%s1323] sm:$0xff]
    %v1325 = vld [vmem:[%s1323 + $0x8] sm:$0xff]
    %v1326 = vld [vmem:[%s1323 + $0x10] sm:$0xff]
    %v1327 = vld [vmem:[#allocation4] sm:$0xff]
    %v1328 = vld [vmem:[#allocation4 + $0x8] sm:$0xff]
    %v1329 = vld [vmem:[#allocation4 + $0x10] sm:$0xff]
    %v1330 = vld [vmem:[#allocation4 + $0x18] sm:$0xff]
    %v1331 = vld [vmem:[#allocation4 + $0x20] sm:$0xff]
    %v1332 = vld [vmem:[#allocation4 + $0x28] sm:$0xff]
    %v1333 = vld [vmem:[#allocation4 + $0x30] sm:$0xff]
    %v1334 = vld [vmem:[#allocation4 + $0x38] sm:$0xff]
    %v1335 = vld [vmem:[#allocation4 + $0x40] sm:$0xff]
    %v1336 = vld [vmem:[#allocation4 + $0x48] sm:$0xff]
    %v1337 = vld [vmem:[#allocation4 + $0x50] sm:$0xff]
    %v1338 = vld [vmem:[#allocation4 + $0x58] sm:$0xff]
    %v1339 = vld [vmem:[#allocation4 + $0x60] sm:$0xff]
    %v1340 = vld [vmem:[#allocation4 + $0x68] sm:$0xff]
    %v1341 = vld [vmem:[#allocation4 + $0x70] sm:$0xff]
    %v1342 = vld [vmem:[#allocation4 + $0x78] sm:$0xff]
    %v1343 = vld [vmem:[#allocation4 + $0x80] sm:$0xff]
    %v1344 = vld [vmem:[#allocation4 + $0x88] sm:$0xff]
    %v1345 = vld [vmem:[#allocation4 + $0x90] sm:$0xff]
    %v1346 = vld [vmem:[#allocation4 + $0x98] sm:$0xff]
    %v1347 = vld [vmem:[#allocation4 + $0xa0] sm:$0xff]
    %v1348 = vld [vmem:[#allocation4 + $0xa8] sm:$0xff]
    %v1349 = vld [vmem:[#allocation4 + $0xb0] sm:$0xff]
    %v1350 = vld [vmem:[#allocation4 + $0xb8] sm:$0xff]
    %v1351 = vld [vmem:[#allocation4 + $0xc0] sm:$0xff]
    %v1352 = vld [vmem:[#allocation4 + $0xc8] sm:$0xff]
    %v1353 = vld [vmem:[#allocation4 + $0xd0] sm:$0xff]
    %v1354 = vld [vmem:[#allocation4 + $0xd8] sm:$0xff]
    %v1355 = vld [vmem:[#allocation4 + $0xe0] sm:$0xff]
    %v1356 = vld [vmem:[#allocation4 + $0xe8] sm:$0xff]
    %v1357 = vld [vmem:[#allocation4 + $0xf0] sm:$0xff]
    %v1358 = vld [vmem:[#allocation4 + $0xf8] sm:$0xff]
    %v1359 = vld [vmem:[#allocation4 + $0x100] sm:$0xff]
    %v1360 = vld [vmem:[#allocation4 + $0x108] sm:$0xff]
    %v1361 = vld [vmem:[#allocation4 + $0x110] sm:$0xff]
    %v1362 = vld [vmem:[#allocation4 + $0x118] sm:$0xff]
    %v1363 = vld [vmem:[#allocation4 + $0x120] sm:$0xff]
    %v1364 = vld [vmem:[#allocation4 + $0x128] sm:$0xff]
    %v1365 = vld [vmem:[#allocation4 + $0x130] sm:$0xff]
    %v1366 = vld [vmem:[#allocation4 + $0x138] sm:$0xff]
    %v1367 = vld [vmem:[#allocation4 + $0x140] sm:$0xff]
    %v1368 = vld [vmem:[#allocation4 + $0x148] sm:$0xff]
    %v1369 = vld [vmem:[#allocation4 + $0x150] sm:$0xff]
    %v1370 = vld [vmem:[#allocation4 + $0x158] sm:$0xff]
    %v1371 = vld [vmem:[#allocation4 + $0x160] sm:$0xff]
    %v1372 = vld [vmem:[#allocation4 + $0x168] sm:$0xff]
    %v1373 = vld [vmem:[#allocation4 + $0x170] sm:$0xff]
    %v1374 = vld [vmem:[#allocation4 + $0x178] sm:$0xff]
    %1375 = vmatprep.subr.mxu0 %v1328
    %1376 = vmatpush1.msra.mxu0 %v1327
    %1377 = vmatprep.subr.mxu0 %v1331
    %1378 = vmatpush1.msra.mxu0 %v1330
    %1379 = vmatprep.subr.mxu0 %v1334
    %1380 = vmatpush1.msra.mxu0 %v1333
    %1381 = vmatprep.subr.mxu0 %v1337
    %1382 = vmatpush1.msra.mxu0 %v1336
    %1383 = vmatprep.subr.mxu0 %v1340
    %1384 = vmatpush1.msra.mxu0 %v1339
    %1385 = vmatprep.subr.mxu0 %v1343
    %1386 = vmatpush1.msra.mxu0 %v1342
    %1387 = vmatprep.subr.mxu0 %v1346
    %1388 = vmatpush1.msra.mxu0 %v1345
    %1389 = vmatprep.subr.mxu0 %v1349
    %1390 = vmatpush1.msra.mxu0 %v1348
    %1391 = vmatprep.subr.mxu0 %v1352
    %1392 = vmatpush1.msra.mxu0 %v1351
    %1393 = vmatprep.subr.mxu0 %v1355
    %1394 = vmatpush1.msra.mxu0 %v1354
    %1395 = vmatprep.subr.mxu0 %v1358
    %1396 = vmatpush1.msra.mxu0 %v1357
    %1397 = vmatprep.subr.mxu0 %v1361
    %1398 = vmatpush1.msra.mxu0 %v1360
    %1399 = vmatprep.subr.mxu0 %v1364
    %1400 = vmatpush1.msra.mxu0 %v1363
    %1401 = vmatprep.subr.mxu0 %v1367
    %1402 = vmatpush1.msra.mxu0 %v1366
    %1403 = vmatprep.subr.mxu0 %v1370
    %1404 = vmatpush1.msra.mxu0 %v1369
    %1405 = vmatprep.subr.mxu0 %v1373
    %1406 = vmatpush1.msra.mxu0 %v1372
    %1407 = vmatprep.subr.mxu0 0.0
    %1408 = vmatpush1.msra.mxu0 0.0
    %1409 = vmatprep.subr.mxu0 0.0
    %1410 = vmatpush1.msra.mxu0 0.0
    %1411 = vmatprep.subr.mxu0 0.0
    %1412 = vmatpush1.msra.mxu0 0.0
    %1413 = vmatprep.subr.mxu0 0.0
    %1414 = vmatpush1.msra.mxu0 0.0
    %1415 = vmatprep.subr.mxu0 0.0
    %1416 = vmatpush1.msra.mxu0 0.0
    %1417 = vmatprep.subr.mxu0 0.0
    %1418 = vmatpush1.msra.mxu0 0.0
    %1419 = vmatprep.subr.mxu0 0.0
    %1420 = vmatpush1.msra.mxu0 0.0
    %1421 = vmatprep.subr.mxu0 0.0
    %1422 = vmatpush1.msra.mxu0 0.0
    %1423 = vmatprep.subr.mxu0 0.0
    %1424 = vmatpush1.msra.mxu0 0.0
    %1425 = vmatprep.subr.mxu0 0.0
    %1426 = vmatpush1.msra.mxu0 0.0
    %1427 = vmatprep.subr.mxu0 0.0
    %1428 = vmatpush1.msra.mxu0 0.0
    %1429 = vmatprep.subr.mxu0 0.0
    %1430 = vmatpush1.msra.mxu0 0.0
    %1431 = vmatprep.subr.mxu0 0.0
    %1432 = vmatpush1.msra.mxu0 0.0
    %1433 = vmatprep.subr.mxu0 0.0
    %1434 = vmatpush1.msra.mxu0 0.0
    %1435 = vmatprep.subr.mxu0 0.0
    %1436 = vmatpush1.msra.mxu0 0.0
    %1437 = vmatprep.subr.mxu0 0.0
    %1438 = vmatpush1.msra.mxu0 0.0
    %1439 = vmatprep.mubr.f32.mxu0 0.0
    %1440 = vmatmul.mubr.f32.gmra.mrb[0].mxu0 %v1320
    %v1441 = vpop.f32.mrb[0].mxu0
    %v1442 = vadd.f32 0.0, %v1441
    %v1443 = vpop.f32.mrb[0].mxu0
    %v1444 = vadd.f32 0.0, %v1443
    %1445 = vdwg.mxu0
    %1446 = vmatprep.subr.mxu0 0.0
    %1447 = vmatpush1.msra.mxu0 %v1329
    %1448 = vmatprep.subr.mxu0 0.0
    %1449 = vmatpush1.msra.mxu0 %v1332
    %1450 = vmatprep.subr.mxu0 0.0
    %1451 = vmatpush1.msra.mxu0 %v1335
    %1452 = vmatprep.subr.mxu0 0.0
    %1453 = vmatpush1.msra.mxu0 %v1338
    %1454 = vmatprep.subr.mxu0 0.0
    %1455 = vmatpush1.msra.mxu0 %v1341
    %1456 = vmatprep.subr.mxu0 0.0
    %1457 = vmatpush1.msra.mxu0 %v1344
    %1458 = vmatprep.subr.mxu0 0.0
    %1459 = vmatpush1.msra.mxu0 %v1347
    %1460 = vmatprep.subr.mxu0 0.0
    %1461 = vmatpush1.msra.mxu0 %v1350
    %1462 = vmatprep.subr.mxu0 0.0
    %1463 = vmatpush1.msra.mxu0 %v1353
    %1464 = vmatprep.subr.mxu0 0.0
    %1465 = vmatpush1.msra.mxu0 %v1356
    %1466 = vmatprep.subr.mxu0 0.0
    %1467 = vmatpush1.msra.mxu0 %v1359
    %1468 = vmatprep.subr.mxu0 0.0
    %1469 = vmatpush1.msra.mxu0 %v1362
    %1470 = vmatprep.subr.mxu0 0.0
    %1471 = vmatpush1.msra.mxu0 %v1365
    %1472 = vmatprep.subr.mxu0 0.0
    %1473 = vmatpush1.msra.mxu0 %v1368
    %1474 = vmatprep.subr.mxu0 0.0
    %1475 = vmatpush1.msra.mxu0 %v1371
    %1476 = vmatprep.subr.mxu0 0.0
    %1477 = vmatpush1.msra.mxu0 %v1374
    %1478 = vmatprep.subr.mxu0 0.0
    %1479 = vmatpush1.msra.mxu0 0.0
    %1480 = vmatprep.subr.mxu0 0.0
    %1481 = vmatpush1.msra.mxu0 0.0
    %1482 = vmatprep.subr.mxu0 0.0
    %1483 = vmatpush1.msra.mxu0 0.0
    %1484 = vmatprep.subr.mxu0 0.0
    %1485 = vmatpush1.msra.mxu0 0.0
    %1486 = vmatprep.subr.mxu0 0.0
    %1487 = vmatpush1.msra.mxu0 0.0
    %1488 = vmatprep.subr.mxu0 0.0
    %1489 = vmatpush1.msra.mxu0 0.0
    %1490 = vmatprep.subr.mxu0 0.0
    %1491 = vmatpush1.msra.mxu0 0.0
    %1492 = vmatprep.subr.mxu0 0.0
    %1493 = vmatpush1.msra.mxu0 0.0
    %1494 = vmatprep.subr.mxu0 0.0
    %1495 = vmatpush1.msra.mxu0 0.0
    %1496 = vmatprep.subr.mxu0 0.0
    %1497 = vmatpush1.msra.mxu0 0.0
    %1498 = vmatprep.subr.mxu0 0.0
    %1499 = vmatpush1.msra.mxu0 0.0
    %1500 = vmatprep.subr.mxu0 0.0
    %1501 = vmatpush1.msra.mxu0 0.0
    %1502 = vmatprep.subr.mxu0 0.0
    %1503 = vmatpush1.msra.mxu0 0.0
    %1504 = vmatprep.subr.mxu0 0.0
    %1505 = vmatpush1.msra.mxu0 0.0
    %1506 = vmatprep.subr.mxu0 0.0
    %1507 = vmatpush1.msra.mxu0 0.0
    %1508 = vmatprep.subr.mxu0 0.0
    %1509 = vmatpush1.msra.mxu0 0.0
    %1510 = vmatprep.mubr.f32.mxu0 0.0
    %1511 = vmatmul.mubr.f32.gmra.mrb[0].mxu0 %v1320
    %v1512 = vpop.f32.mrb[0].mxu0
    %v1513 = vadd.f32 0.0, %v1512
    %v1514 = vpop.f32.mrb[0].mxu0
    %1515 = vdwg.mxu0
    %v1516 = vadd.f32 %v1324, %v1442
    %v1517 = vxor.u32 %v1516, 2147483648
    %v1518 = vmul.f32 %v1517, 1.442695
    %v1519 = vpow.pop %v1518
    %v1520 = vadd.f32 %v1519, 1.0
    %v1521 = vrcp.pop %v1520
    %v1522 = vmul.f32 1.0, %v1521
    %v1523 = vadd.f32 %v1325, %v1444
    %v1524 = vxor.u32 %v1523, 2147483648
    %v1525 = vmul.f32 %v1524, 1.442695
    %v1526 = vpow.pop %v1525
    %v1527 = vadd.f32 %v1526, 1.0
    %v1528 = vrcp.pop %v1527
    %v1529 = vmul.f32 1.0, %v1528
    %v1530 = vld [vmem:[%s5] sm:$0x1]
    %v1532 = vlaneseq
    %v1533 = vshrl.u32 %v1532, 7
    %v1534 = vsub.s32 0, %v1533
    %v1535 = vrot.slane %v1530, %v1534
    %v1537 = vadd.f32 %v1513, %v1535
    %v1538 = vmul.f32 %v1522, %v1537
    %v1539 = vadd.f32 %v1326, %v1538
    %v1540 = vtanh.pop %v1539
    %v1541 = vsub.f32 1.0, %v1529
    %v1542 = vmul.f32 %v1541, %v1540
    %v1543 = vmul.f32 %v1529, %v1320
    %v1544 = vadd.f32 %v1542, %v1543
    %vm1545 = vcmp.gt.s32.totalorder %v105, 4
    %v1546 = vsel %vm1545, 1, 0
    %1547 = vset.pattern.permute.xlu0 0
    %1548 = vperm.xlu0 %1547, %v1546
    %v1549 = vpop.permute.xlu0 %1548
    %vm1550 = vcmp.eq.s32.totalorder %v1549, 1
    %v1551 = vsel %vm1550, %v1544, %v1320
    %s1552 = scalar_lea.vmem [#allocation3], 32
    %1553 = vst [vmem:[%s1552] sm:$0xff] %v1551
    %s1554 = scalar_lea.vmem [#allocation2], 120
    %v1555 = vld [vmem:[%s1554] sm:$0xff]
    %v1556 = vld [vmem:[%s1554 + $0x8] sm:$0xff]
    %v1557 = vld [vmem:[%s1554 + $0x10] sm:$0xff]
    %v1558 = vld [vmem:[#allocation4] sm:$0xff]
    %v1559 = vld [vmem:[#allocation4 + $0x8] sm:$0xff]
    %v1560 = vld [vmem:[#allocation4 + $0x10] sm:$0xff]
    %v1561 = vld [vmem:[#allocation4 + $0x18] sm:$0xff]
    %v1562 = vld [vmem:[#allocation4 + $0x20] sm:$0xff]
    %v1563 = vld [vmem:[#allocation4 + $0x28] sm:$0xff]
    %v1564 = vld [vmem:[#allocation4 + $0x30] sm:$0xff]
    %v1565 = vld [vmem:[#allocation4 + $0x38] sm:$0xff]
    %v1566 = vld [vmem:[#allocation4 + $0x40] sm:$0xff]
    %v1567 = vld [vmem:[#allocation4 + $0x48] sm:$0xff]
    %v1568 = vld [vmem:[#allocation4 + $0x50] sm:$0xff]
    %v1569 = vld [vmem:[#allocation4 + $0x58] sm:$0xff]
    %v1570 = vld [vmem:[#allocation4 + $0x60] sm:$0xff]
    %v1571 = vld [vmem:[#allocation4 + $0x68] sm:$0xff]
    %v1572 = vld [vmem:[#allocation4 + $0x70] sm:$0xff]
    %v1573 = vld [vmem:[#allocation4 + $0x78] sm:$0xff]
    %v1574 = vld [vmem:[#allocation4 + $0x80] sm:$0xff]
    %v1575 = vld [vmem:[#allocation4 + $0x88] sm:$0xff]
    %v1576 = vld [vmem:[#allocation4 + $0x90] sm:$0xff]
    %v1577 = vld [vmem:[#allocation4 + $0x98] sm:$0xff]
    %v1578 = vld [vmem:[#allocation4 + $0xa0] sm:$0xff]
    %v1579 = vld [vmem:[#allocation4 + $0xa8] sm:$0xff]
    %v1580 = vld [vmem:[#allocation4 + $0xb0] sm:$0xff]
    %v1581 = vld [vmem:[#allocation4 + $0xb8] sm:$0xff]
    %v1582 = vld [vmem:[#allocation4 + $0xc0] sm:$0xff]
    %v1583 = vld [vmem:[#allocation4 + $0xc8] sm:$0xff]
    %v1584 = vld [vmem:[#allocation4 + $0xd0] sm:$0xff]
    %v1585 = vld [vmem:[#allocation4 + $0xd8] sm:$0xff]
    %v1586 = vld [vmem:[#allocation4 + $0xe0] sm:$0xff]
    %v1587 = vld [vmem:[#allocation4 + $0xe8] sm:$0xff]
    %v1588 = vld [vmem:[#allocation4 + $0xf0] sm:$0xff]
    %v1589 = vld [vmem:[#allocation4 + $0xf8] sm:$0xff]
    %v1590 = vld [vmem:[#allocation4 + $0x100] sm:$0xff]
    %v1591 = vld [vmem:[#allocation4 + $0x108] sm:$0xff]
    %v1592 = vld [vmem:[#allocation4 + $0x110] sm:$0xff]
    %v1593 = vld [vmem:[#allocation4 + $0x118] sm:$0xff]
    %v1594 = vld [vmem:[#allocation4 + $0x120] sm:$0xff]
    %v1595 = vld [vmem:[#allocation4 + $0x128] sm:$0xff]
    %v1596 = vld [vmem:[#allocation4 + $0x130] sm:$0xff]
    %v1597 = vld [vmem:[#allocation4 + $0x138] sm:$0xff]
    %v1598 = vld [vmem:[#allocation4 + $0x140] sm:$0xff]
    %v1599 = vld [vmem:[#allocation4 + $0x148] sm:$0xff]
    %v1600 = vld [vmem:[#allocation4 + $0x150] sm:$0xff]
    %v1601 = vld [vmem:[#allocation4 + $0x158] sm:$0xff]
    %v1602 = vld [vmem:[#allocation4 + $0x160] sm:$0xff]
    %v1603 = vld [vmem:[#allocation4 + $0x168] sm:$0xff]
    %v1604 = vld [vmem:[#allocation4 + $0x170] sm:$0xff]
    %v1605 = vld [vmem:[#allocation4 + $0x178] sm:$0xff]
    %1606 = vmatprep.subr.mxu0 %v1559
    %1607 = vmatpush1.msra.mxu0 %v1558
    %1608 = vmatprep.subr.mxu0 %v1562
    %1609 = vmatpush1.msra.mxu0 %v1561
    %1610 = vmatprep.subr.mxu0 %v1565
    %1611 = vmatpush1.msra.mxu0 %v1564
    %1612 = vmatprep.subr.mxu0 %v1568
    %1613 = vmatpush1.msra.mxu0 %v1567
    %1614 = vmatprep.subr.mxu0 %v1571
    %1615 = vmatpush1.msra.mxu0 %v1570
    %1616 = vmatprep.subr.mxu0 %v1574
    %1617 = vmatpush1.msra.mxu0 %v1573
    %1618 = vmatprep.subr.mxu0 %v1577
    %1619 = vmatpush1.msra.mxu0 %v1576
    %1620 = vmatprep.subr.mxu0 %v1580
    %1621 = vmatpush1.msra.mxu0 %v1579
    %1622 = vmatprep.subr.mxu0 %v1583
    %1623 = vmatpush1.msra.mxu0 %v1582
    %1624 = vmatprep.subr.mxu0 %v1586
    %1625 = vmatpush1.msra.mxu0 %v1585
    %1626 = vmatprep.subr.mxu0 %v1589
    %1627 = vmatpush1.msra.mxu0 %v1588
    %1628 = vmatprep.subr.mxu0 %v1592
    %1629 = vmatpush1.msra.mxu0 %v1591
    %1630 = vmatprep.subr.mxu0 %v1595
    %1631 = vmatpush1.msra.mxu0 %v1594
    %1632 = vmatprep.subr.mxu0 %v1598
    %1633 = vmatpush1.msra.mxu0 %v1597
    %1634 = vmatprep.subr.mxu0 %v1601
    %1635 = vmatpush1.msra.mxu0 %v1600
    %1636 = vmatprep.subr.mxu0 %v1604
    %1637 = vmatpush1.msra.mxu0 %v1603
    %1638 = vmatprep.subr.mxu0 0.0
    %1639 = vmatpush1.msra.mxu0 0.0
    %1640 = vmatprep.subr.mxu0 0.0
    %1641 = vmatpush1.msra.mxu0 0.0
    %1642 = vmatprep.subr.mxu0 0.0
    %1643 = vmatpush1.msra.mxu0 0.0
    %1644 = vmatprep.subr.mxu0 0.0
    %1645 = vmatpush1.msra.mxu0 0.0
    %1646 = vmatprep.subr.mxu0 0.0
    %1647 = vmatpush1.msra.mxu0 0.0
    %1648 = vmatprep.subr.mxu0 0.0
    %1649 = vmatpush1.msra.mxu0 0.0
    %1650 = vmatprep.subr.mxu0 0.0
    %1651 = vmatpush1.msra.mxu0 0.0
    %1652 = vmatprep.subr.mxu0 0.0
    %1653 = vmatpush1.msra.mxu0 0.0
    %1654 = vmatprep.subr.mxu0 0.0
    %1655 = vmatpush1.msra.mxu0 0.0
    %1656 = vmatprep.subr.mxu0 0.0
    %1657 = vmatpush1.msra.mxu0 0.0
    %1658 = vmatprep.subr.mxu0 0.0
    %1659 = vmatpush1.msra.mxu0 0.0
    %1660 = vmatprep.subr.mxu0 0.0
    %1661 = vmatpush1.msra.mxu0 0.0
    %1662 = vmatprep.subr.mxu0 0.0
    %1663 = vmatpush1.msra.mxu0 0.0
    %1664 = vmatprep.subr.mxu0 0.0
    %1665 = vmatpush1.msra.mxu0 0.0
    %1666 = vmatprep.subr.mxu0 0.0
    %1667 = vmatpush1.msra.mxu0 0.0
    %1668 = vmatprep.subr.mxu0 0.0
    %1669 = vmatpush1.msra.mxu0 0.0
    %1670 = vmatprep.mubr.f32.mxu0 0.0
    %1671 = vmatmul.mubr.f32.gmra.mrb[0].mxu0 %v1551
    %v1672 = vpop.f32.mrb[0].mxu0
    %v1673 = vadd.f32 0.0, %v1672
    %v1674 = vpop.f32.mrb[0].mxu0
    %v1675 = vadd.f32 0.0, %v1674
    %1676 = vdwg.mxu0
    %1677 = vmatprep.subr.mxu0 0.0
    %1678 = vmatpush1.msra.mxu0 %v1560
    %1679 = vmatprep.subr.mxu0 0.0
    %1680 = vmatpush1.msra.mxu0 %v1563
    %1681 = vmatprep.subr.mxu0 0.0
    %1682 = vmatpush1.msra.mxu0 %v1566
    %1683 = vmatprep.subr.mxu0 0.0
    %1684 = vmatpush1.msra.mxu0 %v1569
    %1685 = vmatprep.subr.mxu0 0.0
    %1686 = vmatpush1.msra.mxu0 %v1572
    %1687 = vmatprep.subr.mxu0 0.0
    %1688 = vmatpush1.msra.mxu0 %v1575
    %1689 = vmatprep.subr.mxu0 0.0
    %1690 = vmatpush1.msra.mxu0 %v1578
    %1691 = vmatprep.subr.mxu0 0.0
    %1692 = vmatpush1.msra.mxu0 %v1581
    %1693 = vmatprep.subr.mxu0 0.0
    %1694 = vmatpush1.msra.mxu0 %v1584
    %1695 = vmatprep.subr.mxu0 0.0
    %1696 = vmatpush1.msra.mxu0 %v1587
    %1697 = vmatprep.subr.mxu0 0.0
    %1698 = vmatpush1.msra.mxu0 %v1590
    %1699 = vmatprep.subr.mxu0 0.0
    %1700 = vmatpush1.msra.mxu0 %v1593
    %1701 = vmatprep.subr.mxu0 0.0
    %1702 = vmatpush1.msra.mxu0 %v1596
    %1703 = vmatprep.subr.mxu0 0.0
    %1704 = vmatpush1.msra.mxu0 %v1599
    %1705 = vmatprep.subr.mxu0 0.0
    %1706 = vmatpush1.msra.mxu0 %v1602
    %1707 = vmatprep.subr.mxu0 0.0
    %1708 = vmatpush1.msra.mxu0 %v1605
    %1709 = vmatprep.subr.mxu0 0.0
    %1710 = vmatpush1.msra.mxu0 0.0
    %1711 = vmatprep.subr.mxu0 0.0
    %1712 = vmatpush1.msra.mxu0 0.0
    %1713 = vmatprep.subr.mxu0 0.0
    %1714 = vmatpush1.msra.mxu0 0.0
    %1715 = vmatprep.subr.mxu0 0.0
    %1716 = vmatpush1.msra.mxu0 0.0
    %1717 = vmatprep.subr.mxu0 0.0
    %1718 = vmatpush1.msra.mxu0 0.0
    %1719 = vmatprep.subr.mxu0 0.0
    %1720 = vmatpush1.msra.mxu0 0.0
    %1721 = vmatprep.subr.mxu0 0.0
    %1722 = vmatpush1.msra.mxu0 0.0
    %1723 = vmatprep.subr.mxu0 0.0
    %1724 = vmatpush1.msra.mxu0 0.0
    %1725 = vmatprep.subr.mxu0 0.0
    %1726 = vmatpush1.msra.mxu0 0.0
    %1727 = vmatprep.subr.mxu0 0.0
    %1728 = vmatpush1.msra.mxu0 0.0
    %1729 = vmatprep.subr.mxu0 0.0
    %1730 = vmatpush1.msra.mxu0 0.0
    %1731 = vmatprep.subr.mxu0 0.0
    %1732 = vmatpush1.msra.mxu0 0.0
    %1733 = vmatprep.subr.mxu0 0.0
    %1734 = vmatpush1.msra.mxu0 0.0
    %1735 = vmatprep.subr.mxu0 0.0
    %1736 = vmatpush1.msra.mxu0 0.0
    %1737 = vmatprep.subr.mxu0 0.0
    %1738 = vmatpush1.msra.mxu0 0.0
    %1739 = vmatprep.subr.mxu0 0.0
    %1740 = vmatpush1.msra.mxu0 0.0
    %1741 = vmatprep.mubr.f32.mxu0 0.0
    %1742 = vmatmul.mubr.f32.gmra.mrb[0].mxu0 %v1551
    %v1743 = vpop.f32.mrb[0].mxu0
    %v1744 = vadd.f32 0.0, %v1743
    %v1745 = vpop.f32.mrb[0].mxu0
    %1746 = vdwg.mxu0
    %v1747 = vadd.f32 %v1555, %v1673
    %v1748 = vxor.u32 %v1747, 2147483648
    %v1749 = vmul.f32 %v1748, 1.442695
    %v1750 = vpow.pop %v1749
    %v1751 = vadd.f32 %v1750, 1.0
    %v1752 = vrcp.pop %v1751
    %v1753 = vmul.f32 1.0, %v1752
    %v1754 = vadd.f32 %v1556, %v1675
    %v1755 = vxor.u32 %v1754, 2147483648
    %v1756 = vmul.f32 %v1755, 1.442695
    %v1757 = vpow.pop %v1756
    %v1758 = vadd.f32 %v1757, 1.0
    %v1759 = vrcp.pop %v1758
    %v1760 = vmul.f32 1.0, %v1759
    %v1761 = vld [vmem:[%s5] sm:$0x1]
    %v1763 = vlaneseq
    %v1764 = vshrl.u32 %v1763, 7
    %v1765 = vsub.s32 0, %v1764
    %v1766 = vrot.slane %v1761, %v1765
    %v1768 = vadd.f32 %v1744, %v1766
    %v1769 = vmul.f32 %v1753, %v1768
    %v1770 = vadd.f32 %v1557, %v1769
    %v1771 = vtanh.pop %v1770
    %v1772 = vsub.f32 1.0, %v1760
    %v1773 = vmul.f32 %v1772, %v1771
    %v1774 = vmul.f32 %v1760, %v1551
    %v1775 = vadd.f32 %v1773, %v1774
    %vm1776 = vcmp.gt.s32.totalorder %v105, 5
    %v1777 = vsel %vm1776, 1, 0
    %1778 = vset.pattern.permute.xlu0 0
    %1779 = vperm.xlu0 %1778, %v1777
    %v1780 = vpop.permute.xlu0 %1779
    %vm1781 = vcmp.eq.s32.totalorder %v1780, 1
    %v1782 = vsel %vm1781, %v1775, %v1551
    %s1783 = scalar_lea.vmem [#allocation3], 40
    %1784 = vst [vmem:[%s1783] sm:$0xff] %v1782
    %s1785 = scalar_lea.vmem [#allocation2], 144
    %v1786 = vld [vmem:[%s1785] sm:$0xff]
    %v1787 = vld [vmem:[%s1785 + $0x8] sm:$0xff]
    %v1788 = vld [vmem:[%s1785 + $0x10] sm:$0xff]
    %v1789 = vld [vmem:[#allocation4] sm:$0xff]
    %v1790 = vld [vmem:[#allocation4 + $0x8] sm:$0xff]
    %v1791 = vld [vmem:[#allocation4 + $0x10] sm:$0xff]
    %v1792 = vld [vmem:[#allocation4 + $0x18] sm:$0xff]
    %v1793 = vld [vmem:[#allocation4 + $0x20] sm:$0xff]
    %v1794 = vld [vmem:[#allocation4 + $0x28] sm:$0xff]
    %v1795 = vld [vmem:[#allocation4 + $0x30] sm:$0xff]
    %v1796 = vld [vmem:[#allocation4 + $0x38] sm:$0xff]
    %v1797 = vld [vmem:[#allocation4 + $0x40] sm:$0xff]
    %v1798 = vld [vmem:[#allocation4 + $0x48] sm:$0xff]
    %v1799 = vld [vmem:[#allocation4 + $0x50] sm:$0xff]
    %v1800 = vld [vmem:[#allocation4 + $0x58] sm:$0xff]
    %v1801 = vld [vmem:[#allocation4 + $0x60] sm:$0xff]
    %v1802 = vld [vmem:[#allocation4 + $0x68] sm:$0xff]
    %v1803 = vld [vmem:[#allocation4 + $0x70] sm:$0xff]
    %v1804 = vld [vmem:[#allocation4 + $0x78] sm:$0xff]
    %v1805 = vld [vmem:[#allocation4 + $0x80] sm:$0xff]
    %v1806 = vld [vmem:[#allocation4 + $0x88] sm:$0xff]
    %v1807 = vld [vmem:[#allocation4 + $0x90] sm:$0xff]
    %v1808 = vld [vmem:[#allocation4 + $0x98] sm:$0xff]
    %v1809 = vld [vmem:[#allocation4 + $0xa0] sm:$0xff]
    %v1810 = vld [vmem:[#allocation4 + $0xa8] sm:$0xff]
    %v1811 = vld [vmem:[#allocation4 + $0xb0] sm:$0xff]
    %v1812 = vld [vmem:[#allocation4 + $0xb8] sm:$0xff]
    %v1813 = vld [vmem:[#allocation4 + $0xc0] sm:$0xff]
    %v1814 = vld [vmem:[#allocation4 + $0xc8] sm:$0xff]
    %v1815 = vld [vmem:[#allocation4 + $0xd0] sm:$0xff]
    %v1816 = vld [vmem:[#allocation4 + $0xd8] sm:$0xff]
    %v1817 = vld [vmem:[#allocation4 + $0xe0] sm:$0xff]
    %v1818 = vld [vmem:[#allocation4 + $0xe8] sm:$0xff]
    %v1819 = vld [vmem:[#allocation4 + $0xf0] sm:$0xff]
    %v1820 = vld [vmem:[#allocation4 + $0xf8] sm:$0xff]
    %v1821 = vld [vmem:[#allocation4 + $0x100] sm:$0xff]
    %v1822 = vld [vmem:[#allocation4 + $0x108] sm:$0xff]
    %v1823 = vld [vmem:[#allocation4 + $0x110] sm:$0xff]
    %v1824 = vld [vmem:[#allocation4 + $0x118] sm:$0xff]
    %v1825 = vld [vmem:[#allocation4 + $0x120] sm:$0xff]
    %v1826 = vld [vmem:[#allocation4 + $0x128] sm:$0xff]
    %v1827 = vld [vmem:[#allocation4 + $0x130] sm:$0xff]
    %v1828 = vld [vmem:[#allocation4 + $0x138] sm:$0xff]
    %v1829 = vld [vmem:[#allocation4 + $0x140] sm:$0xff]
    %v1830 = vld [vmem:[#allocation4 + $0x148] sm:$0xff]
    %v1831 = vld [vmem:[#allocation4 + $0x150] sm:$0xff]
    %v1832 = vld [vmem:[#allocation4 + $0x158] sm:$0xff]
    %v1833 = vld [vmem:[#allocation4 + $0x160] sm:$0xff]
    %v1834 = vld [vmem:[#allocation4 + $0x168] sm:$0xff]
    %v1835 = vld [vmem:[#allocation4 + $0x170] sm:$0xff]
    %v1836 = vld [vmem:[#allocation4 + $0x178] sm:$0xff]
    %1837 = vmatprep.subr.mxu0 %v1790
    %1838 = vmatpush1.msra.mxu0 %v1789
    %1839 = vmatprep.subr.mxu0 %v1793
    %1840 = vmatpush1.msra.mxu0 %v1792
    %1841 = vmatprep.subr.mxu0 %v1796
    %1842 = vmatpush1.msra.mxu0 %v1795
    %1843 = vmatprep.subr.mxu0 %v1799
    %1844 = vmatpush1.msra.mxu0 %v1798
    %1845 = vmatprep.subr.mxu0 %v1802
    %1846 = vmatpush1.msra.mxu0 %v1801
    %1847 = vmatprep.subr.mxu0 %v1805
    %1848 = vmatpush1.msra.mxu0 %v1804
    %1849 = vmatprep.subr.mxu0 %v1808
    %1850 = vmatpush1.msra.mxu0 %v1807
    %1851 = vmatprep.subr.mxu0 %v1811
    %1852 = vmatpush1.msra.mxu0 %v1810
    %1853 = vmatprep.subr.mxu0 %v1814
    %1854 = vmatpush1.msra.mxu0 %v1813
    %1855 = vmatprep.subr.mxu0 %v1817
    %1856 = vmatpush1.msra.mxu0 %v1816
    %1857 = vmatprep.subr.mxu0 %v1820
    %1858 = vmatpush1.msra.mxu0 %v1819
    %1859 = vmatprep.subr.mxu0 %v1823
    %1860 = vmatpush1.msra.mxu0 %v1822
    %1861 = vmatprep.subr.mxu0 %v1826
    %1862 = vmatpush1.msra.mxu0 %v1825
    %1863 = vmatprep.subr.mxu0 %v1829
    %1864 = vmatpush1.msra.mxu0 %v1828
    %1865 = vmatprep.subr.mxu0 %v1832
    %1866 = vmatpush1.msra.mxu0 %v1831
    %1867 = vmatprep.subr.mxu0 %v1835
    %1868 = vmatpush1.msra.mxu0 %v1834
    %1869 = vmatprep.subr.mxu0 0.0
    %1870 = vmatpush1.msra.mxu0 0.0
    %1871 = vmatprep.subr.mxu0 0.0
    %1872 = vmatpush1.msra.mxu0 0.0
    %1873 = vmatprep.subr.mxu0 0.0
    %1874 = vmatpush1.msra.mxu0 0.0
    %1875 = vmatprep.subr.mxu0 0.0
    %1876 = vmatpush1.msra.mxu0 0.0
    %1877 = vmatprep.subr.mxu0 0.0
    %1878 = vmatpush1.msra.mxu0 0.0
    %1879 = vmatprep.subr.mxu0 0.0
    %1880 = vmatpush1.msra.mxu0 0.0
    %1881 = vmatprep.subr.mxu0 0.0
    %1882 = vmatpush1.msra.mxu0 0.0
    %1883 = vmatprep.subr.mxu0 0.0
    %1884 = vmatpush1.msra.mxu0 0.0
    %1885 = vmatprep.subr.mxu0 0.0
    %1886 = vmatpush1.msra.mxu0 0.0
    %1887 = vmatprep.subr.mxu0 0.0
    %1888 = vmatpush1.msra.mxu0 0.0
    %1889 = vmatprep.subr.mxu0 0.0
    %1890 = vmatpush1.msra.mxu0 0.0
    %1891 = vmatprep.subr.mxu0 0.0
    %1892 = vmatpush1.msra.mxu0 0.0
    %1893 = vmatprep.subr.mxu0 0.0
    %1894 = vmatpush1.msra.mxu0 0.0
    %1895 = vmatprep.subr.mxu0 0.0
    %1896 = vmatpush1.msra.mxu0 0.0
    %1897 = vmatprep.subr.mxu0 0.0
    %1898 = vmatpush1.msra.mxu0 0.0
    %1899 = vmatprep.subr.mxu0 0.0
    %1900 = vmatpush1.msra.mxu0 0.0
    %1901 = vmatprep.mubr.f32.mxu0 0.0
    %1902 = vmatmul.mubr.f32.gmra.mrb[0].mxu0 %v1782
    %v1903 = vpop.f32.mrb[0].mxu0
    %v1904 = vadd.f32 0.0, %v1903
    %v1905 = vpop.f32.mrb[0].mxu0
    %v1906 = vadd.f32 0.0, %v1905
    %1907 = vdwg.mxu0
    %1908 = vmatprep.subr.mxu0 0.0
    %1909 = vmatpush1.msra.mxu0 %v1791
    %1910 = vmatprep.subr.mxu0 0.0
    %1911 = vmatpush1.msra.mxu0 %v1794
    %1912 = vmatprep.subr.mxu0 0.0
    %1913 = vmatpush1.msra.mxu0 %v1797
    %1914 = vmatprep.subr.mxu0 0.0
    %1915 = vmatpush1.msra.mxu0 %v1800
    %1916 = vmatprep.subr.mxu0 0.0
    %1917 = vmatpush1.msra.mxu0 %v1803
    %1918 = vmatprep.subr.mxu0 0.0
    %1919 = vmatpush1.msra.mxu0 %v1806
    %1920 = vmatprep.subr.mxu0 0.0
    %1921 = vmatpush1.msra.mxu0 %v1809
    %1922 = vmatprep.subr.mxu0 0.0
    %1923 = vmatpush1.msra.mxu0 %v1812
    %1924 = vmatprep.subr.mxu0 0.0
    %1925 = vmatpush1.msra.mxu0 %v1815
    %1926 = vmatprep.subr.mxu0 0.0
    %1927 = vmatpush1.msra.mxu0 %v1818
    %1928 = vmatprep.subr.mxu0 0.0
    %1929 = vmatpush1.msra.mxu0 %v1821
    %1930 = vmatprep.subr.mxu0 0.0
    %1931 = vmatpush1.msra.mxu0 %v1824
    %1932 = vmatprep.subr.mxu0 0.0
    %1933 = vmatpush1.msra.mxu0 %v1827
    %1934 = vmatprep.subr.mxu0 0.0
    %1935 = vmatpush1.msra.mxu0 %v1830
    %1936 = vmatprep.subr.mxu0 0.0
    %1937 = vmatpush1.msra.mxu0 %v1833
    %1938 = vmatprep.subr.mxu0 0.0
    %1939 = vmatpush1.msra.mxu0 %v1836
    %1940 = vmatprep.subr.mxu0 0.0
    %1941 = vmatpush1.msra.mxu0 0.0
    %1942 = vmatprep.subr.mxu0 0.0
    %1943 = vmatpush1.msra.mxu0 0.0
    %1944 = vmatprep.subr.mxu0 0.0
    %1945 = vmatpush1.msra.mxu0 0.0
    %1946 = vmatprep.subr.mxu0 0.0
    %1947 = vmatpush1.msra.mxu0 0.0
    %1948 = vmatprep.subr.mxu0 0.0
    %1949 = vmatpush1.msra.mxu0 0.0
    %1950 = vmatprep.subr.mxu0 0.0
    %1951 = vmatpush1.msra.mxu0 0.0
    %1952 = vmatprep.subr.mxu0 0.0
    %1953 = vmatpush1.msra.mxu0 0.0
    %1954 = vmatprep.subr.mxu0 0.0
    %1955 = vmatpush1.msra.mxu0 0.0
    %1956 = vmatprep.subr.mxu0 0.0
    %1957 = vmatpush1.msra.mxu0 0.0
    %1958 = vmatprep.subr.mxu0 0.0
    %1959 = vmatpush1.msra.mxu0 0.0
    %1960 = vmatprep.subr.mxu0 0.0
    %1961 = vmatpush1.msra.mxu0 0.0
    %1962 = vmatprep.subr.mxu0 0.0
    %1963 = vmatpush1.msra.mxu0 0.0
    %1964 = vmatprep.subr.mxu0 0.0
    %1965 = vmatpush1.msra.mxu0 0.0
    %1966 = vmatprep.subr.mxu0 0.0
    %1967 = vmatpush1.msra.mxu0 0.0
    %1968 = vmatprep.subr.mxu0 0.0
    %1969 = vmatpush1.msra.mxu0 0.0
    %1970 = vmatprep.subr.mxu0 0.0
    %1971 = vmatpush1.msra.mxu0 0.0
    %1972 = vmatprep.mubr.f32.mxu0 0.0
    %1973 = vmatmul.mubr.f32.gmra.mrb[0].mxu0 %v1782
    %v1974 = vpop.f32.mrb[0].mxu0
    %v1975 = vadd.f32 0.0, %v1974
    %v1976 = vpop.f32.mrb[0].mxu0
    %1977 = vdwg.mxu0
    %v1978 = vadd.f32 %v1786, %v1904
    %v1979 = vxor.u32 %v1978, 2147483648
    %v1980 = vmul.f32 %v1979, 1.442695
    %v1981 = vpow.pop %v1980
    %v1982 = vadd.f32 %v1981, 1.0
    %v1983 = vrcp.pop %v1982
    %v1984 = vmul.f32 1.0, %v1983
    %v1985 = vadd.f32 %v1787, %v1906
    %v1986 = vxor.u32 %v1985, 2147483648
    %v1987 = vmul.f32 %v1986, 1.442695
    %v1988 = vpow.pop %v1987
    %v1989 = vadd.f32 %v1988, 1.0
    %v1990 = vrcp.pop %v1989
    %v1991 = vmul.f32 1.0, %v1990
    %v1992 = vld [vmem:[%s5] sm:$0x1]
    %v1994 = vlaneseq
    %v1995 = vshrl.u32 %v1994, 7
    %v1996 = vsub.s32 0, %v1995
    %v1997 = vrot.slane %v1992, %v1996
    %v1999 = vadd.f32 %v1975, %v1997
    %v2000 = vmul.f32 %v1984, %v1999
    %v2001 = vadd.f32 %v1788, %v2000
    %v2002 = vtanh.pop %v2001
    %v2003 = vsub.f32 1.0, %v1991
    %v2004 = vmul.f32 %v2003, %v2002
    %v2005 = vmul.f32 %v1991, %v1782
    %v2006 = vadd.f32 %v2004, %v2005
    %vm2007 = vcmp.gt.s32.totalorder %v105, 6
    %v2008 = vsel %vm2007, 1, 0
    %2009 = vset.pattern.permute.xlu0 0
    %2010 = vperm.xlu0 %2009, %v2008
    %v2011 = vpop.permute.xlu0 %2010
    %vm2012 = vcmp.eq.s32.totalorder %v2011, 1
    %v2013 = vsel %vm2012, %v2006, %v1782
    %s2014 = scalar_lea.vmem [#allocation3], 48
    %2015 = vst [vmem:[%s2014] sm:$0xff] %v2013
    %s2016 = scalar_lea.vmem [#allocation2], 168
    %v2017 = vld [vmem:[%s2016] sm:$0xff]
    %v2018 = vld [vmem:[%s2016 + $0x8] sm:$0xff]
    %v2019 = vld [vmem:[%s2016 + $0x10] sm:$0xff]
    %v2020 = vld [vmem:[#allocation4] sm:$0xff]
    %v2021 = vld [vmem:[#allocation4 + $0x8] sm:$0xff]
    %v2022 = vld [vmem:[#allocation4 + $0x10] sm:$0xff]
    %v2023 = vld [vmem:[#allocation4 + $0x18] sm:$0xff]
    %v2024 = vld [vmem:[#allocation4 + $0x20] sm:$0xff]
    %v2025 = vld [vmem:[#allocation4 + $0x28] sm:$0xff]
    %v2026 = vld [vmem:[#allocation4 + $0x30] sm:$0xff]
    %v2027 = vld [vmem:[#allocation4 + $0x38] sm:$0xff]
    %v2028 = vld [vmem:[#allocation4 + $0x40] sm:$0xff]
    %v2029 = vld [vmem:[#allocation4 + $0x48] sm:$0xff]
    %v2030 = vld [vmem:[#allocation4 + $0x50] sm:$0xff]
    %v2031 = vld [vmem:[#allocation4 + $0x58] sm:$0xff]
    %v2032 = vld [vmem:[#allocation4 + $0x60] sm:$0xff]
    %v2033 = vld [vmem:[#allocation4 + $0x68] sm:$0xff]
    %v2034 = vld [vmem:[#allocation4 + $0x70] sm:$0xff]
    %v2035 = vld [vmem:[#allocation4 + $0x78] sm:$0xff]
    %v2036 = vld [vmem:[#allocation4 + $0x80] sm:$0xff]
    %v2037 = vld [vmem:[#allocation4 + $0x88] sm:$0xff]
    %v2038 = vld [vmem:[#allocation4 + $0x90] sm:$0xff]
    %v2039 = vld [vmem:[#allocation4 + $0x98] sm:$0xff]
    %v2040 = vld [vmem:[#allocation4 + $0xa0] sm:$0xff]
    %v2041 = vld [vmem:[#allocation4 + $0xa8] sm:$0xff]
    %v2042 = vld [vmem:[#allocation4 + $0xb0] sm:$0xff]
    %v2043 = vld [vmem:[#allocation4 + $0xb8] sm:$0xff]
    %v2044 = vld [vmem:[#allocation4 + $0xc0] sm:$0xff]
    %v2045 = vld [vmem:[#allocation4 + $0xc8] sm:$0xff]
    %v2046 = vld [vmem:[#allocation4 + $0xd0] sm:$0xff]
    %v2047 = vld [vmem:[#allocation4 + $0xd8] sm:$0xff]
    %v2048 = vld [vmem:[#allocation4 + $0xe0] sm:$0xff]
    %v2049 = vld [vmem:[#allocation4 + $0xe8] sm:$0xff]
    %v2050 = vld [vmem:[#allocation4 + $0xf0] sm:$0xff]
    %v2051 = vld [vmem:[#allocation4 + $0xf8] sm:$0xff]
    %v2052 = vld [vmem:[#allocation4 + $0x100] sm:$0xff]
    %v2053 = vld [vmem:[#allocation4 + $0x108] sm:$0xff]
    %v2054 = vld [vmem:[#allocation4 + $0x110] sm:$0xff]
    %v2055 = vld [vmem:[#allocation4 + $0x118] sm:$0xff]
    %v2056 = vld [vmem:[#allocation4 + $0x120] sm:$0xff]
    %v2057 = vld [vmem:[#allocation4 + $0x128] sm:$0xff]
    %v2058 = vld [vmem:[#allocation4 + $0x130] sm:$0xff]
    %v2059 = vld [vmem:[#allocation4 + $0x138] sm:$0xff]
    %v2060 = vld [vmem:[#allocation4 + $0x140] sm:$0xff]
    %v2061 = vld [vmem:[#allocation4 + $0x148] sm:$0xff]
    %v2062 = vld [vmem:[#allocation4 + $0x150] sm:$0xff]
    %v2063 = vld [vmem:[#allocation4 + $0x158] sm:$0xff]
    %v2064 = vld [vmem:[#allocation4 + $0x160] sm:$0xff]
    %v2065 = vld [vmem:[#allocation4 + $0x168] sm:$0xff]
    %v2066 = vld [vmem:[#allocation4 + $0x170] sm:$0xff]
    %v2067 = vld [vmem:[#allocation4 + $0x178] sm:$0xff]
    %2068 = vmatprep.subr.mxu0 %v2021
    %2069 = vmatpush1.msra.mxu0 %v2020
    %2070 = vmatprep.subr.mxu0 %v2024
    %2071 = vmatpush1.msra.mxu0 %v2023
    %2072 = vmatprep.subr.mxu0 %v2027
    %2073 = vmatpush1.msra.mxu0 %v2026
    %2074 = vmatprep.subr.mxu0 %v2030
    %2075 = vmatpush1.msra.mxu0 %v2029
    %2076 = vmatprep.subr.mxu0 %v2033
    %2077 = vmatpush1.msra.mxu0 %v2032
    %2078 = vmatprep.subr.mxu0 %v2036
    %2079 = vmatpush1.msra.mxu0 %v2035
    %2080 = vmatprep.subr.mxu0 %v2039
    %2081 = vmatpush1.msra.mxu0 %v2038
    %2082 = vmatprep.subr.mxu0 %v2042
    %2083 = vmatpush1.msra.mxu0 %v2041
    %2084 = vmatprep.subr.mxu0 %v2045
    %2085 = vmatpush1.msra.mxu0 %v2044
    %2086 = vmatprep.subr.mxu0 %v2048
    %2087 = vmatpush1.msra.mxu0 %v2047
    %2088 = vmatprep.subr.mxu0 %v2051
    %2089 = vmatpush1.msra.mxu0 %v2050
    %2090 = vmatprep.subr.mxu0 %v2054
    %2091 = vmatpush1.msra.mxu0 %v2053
    %2092 = vmatprep.subr.mxu0 %v2057
    %2093 = vmatpush1.msra.mxu0 %v2056
    %2094 = vmatprep.subr.mxu0 %v2060
    %2095 = vmatpush1.msra.mxu0 %v2059
    %2096 = vmatprep.subr.mxu0 %v2063
    %2097 = vmatpush1.msra.mxu0 %v2062
    %2098 = vmatprep.subr.mxu0 %v2066
    %2099 = vmatpush1.msra.mxu0 %v2065
    %2100 = vmatprep.subr.mxu0 0.0
    %2101 = vmatpush1.msra.mxu0 0.0
    %2102 = vmatprep.subr.mxu0 0.0
    %2103 = vmatpush1.msra.mxu0 0.0
    %2104 = vmatprep.subr.mxu0 0.0
    %2105 = vmatpush1.msra.mxu0 0.0
    %2106 = vmatprep.subr.mxu0 0.0
    %2107 = vmatpush1.msra.mxu0 0.0
    %2108 = vmatprep.subr.mxu0 0.0
    %2109 = vmatpush1.msra.mxu0 0.0
    %2110 = vmatprep.subr.mxu0 0.0
    %2111 = vmatpush1.msra.mxu0 0.0
    %2112 = vmatprep.subr.mxu0 0.0
    %2113 = vmatpush1.msra.mxu0 0.0
    %2114 = vmatprep.subr.mxu0 0.0
    %2115 = vmatpush1.msra.mxu0 0.0
    %2116 = vmatprep.subr.mxu0 0.0
    %2117 = vmatpush1.msra.mxu0 0.0
    %2118 = vmatprep.subr.mxu0 0.0
    %2119 = vmatpush1.msra.mxu0 0.0
    %2120 = vmatprep.subr.mxu0 0.0
    %2121 = vmatpush1.msra.mxu0 0.0
    %2122 = vmatprep.subr.mxu0 0.0
    %2123 = vmatpush1.msra.mxu0 0.0
    %2124 = vmatprep.subr.mxu0 0.0
    %2125 = vmatpush1.msra.mxu0 0.0
    %2126 = vmatprep.subr.mxu0 0.0
    %2127 = vmatpush1.msra.mxu0 0.0
    %2128 = vmatprep.subr.mxu0 0.0
    %2129 = vmatpush1.msra.mxu0 0.0
    %2130 = vmatprep.subr.mxu0 0.0
    %2131 = vmatpush1.msra.mxu0 0.0
    %2132 = vmatprep.mubr.f32.mxu0 0.0
    %2133 = vmatmul.mubr.f32.gmra.mrb[0].mxu0 %v2013
    %v2134 = vpop.f32.mrb[0].mxu0
    %v2135 = vadd.f32 0.0, %v2134
    %v2136 = vpop.f32.mrb[0].mxu0
    %v2137 = vadd.f32 0.0, %v2136
    %2138 = vdwg.mxu0
    %2139 = vmatprep.subr.mxu0 0.0
    %2140 = vmatpush1.msra.mxu0 %v2022
    %2141 = vmatprep.subr.mxu0 0.0
    %2142 = vmatpush1.msra.mxu0 %v2025
    %2143 = vmatprep.subr.mxu0 0.0
    %2144 = vmatpush1.msra.mxu0 %v2028
    %2145 = vmatprep.subr.mxu0 0.0
    %2146 = vmatpush1.msra.mxu0 %v2031
    %2147 = vmatprep.subr.mxu0 0.0
    %2148 = vmatpush1.msra.mxu0 %v2034
    %2149 = vmatprep.subr.mxu0 0.0
    %2150 = vmatpush1.msra.mxu0 %v2037
    %2151 = vmatprep.subr.mxu0 0.0
    %2152 = vmatpush1.msra.mxu0 %v2040
    %2153 = vmatprep.subr.mxu0 0.0
    %2154 = vmatpush1.msra.mxu0 %v2043
    %2155 = vmatprep.subr.mxu0 0.0
    %2156 = vmatpush1.msra.mxu0 %v2046
    %2157 = vmatprep.subr.mxu0 0.0
    %2158 = vmatpush1.msra.mxu0 %v2049
    %2159 = vmatprep.subr.mxu0 0.0
    %2160 = vmatpush1.msra.mxu0 %v2052
    %2161 = vmatprep.subr.mxu0 0.0
    %2162 = vmatpush1.msra.mxu0 %v2055
    %2163 = vmatprep.subr.mxu0 0.0
    %2164 = vmatpush1.msra.mxu0 %v2058
    %2165 = vmatprep.subr.mxu0 0.0
    %2166 = vmatpush1.msra.mxu0 %v2061
    %2167 = vmatprep.subr.mxu0 0.0
    %2168 = vmatpush1.msra.mxu0 %v2064
    %2169 = vmatprep.subr.mxu0 0.0
    %2170 = vmatpush1.msra.mxu0 %v2067
    %2171 = vmatprep.subr.mxu0 0.0
    %2172 = vmatpush1.msra.mxu0 0.0
    %2173 = vmatprep.subr.mxu0 0.0
    %2174 = vmatpush1.msra.mxu0 0.0
    %2175 = vmatprep.subr.mxu0 0.0
    %2176 = vmatpush1.msra.mxu0 0.0
    %2177 = vmatprep.subr.mxu0 0.0
    %2178 = vmatpush1.msra.mxu0 0.0
    %2179 = vmatprep.subr.mxu0 0.0
    %2180 = vmatpush1.msra.mxu0 0.0
    %2181 = vmatprep.subr.mxu0 0.0
    %2182 = vmatpush1.msra.mxu0 0.0
    %2183 = vmatprep.subr.mxu0 0.0
    %2184 = vmatpush1.msra.mxu0 0.0
    %2185 = vmatprep.subr.mxu0 0.0
    %2186 = vmatpush1.msra.mxu0 0.0
    %2187 = vmatprep.subr.mxu0 0.0
    %2188 = vmatpush1.msra.mxu0 0.0
    %2189 = vmatprep.subr.mxu0 0.0
    %2190 = vmatpush1.msra.mxu0 0.0
    %2191 = vmatprep.subr.mxu0 0.0
    %2192 = vmatpush1.msra.mxu0 0.0
    %2193 = vmatprep.subr.mxu0 0.0
    %2194 = vmatpush1.msra.mxu0 0.0
    %2195 = vmatprep.subr.mxu0 0.0
    %2196 = vmatpush1.msra.mxu0 0.0
    %2197 = vmatprep.subr.mxu0 0.0
    %2198 = vmatpush1.msra.mxu0 0.0
    %2199 = vmatprep.subr.mxu0 0.0
    %2200 = vmatpush1.msra.mxu0 0.0
    %2201 = vmatprep.subr.mxu0 0.0
    %2202 = vmatpush1.msra.mxu0 0.0
    %2203 = vmatprep.mubr.f32.mxu0 0.0
    %2204 = vmatmul.mubr.f32.gmra.mrb[0].mxu0 %v2013
    %v2205 = vpop.f32.mrb[0].mxu0
    %v2206 = vadd.f32 0.0, %v2205
    %v2207 = vpop.f32.mrb[0].mxu0
    %2208 = vdwg.mxu0
    %v2209 = vadd.f32 %v2017, %v2135
    %v2210 = vxor.u32 %v2209, 2147483648
    %v2211 = vmul.f32 %v2210, 1.442695
    %v2212 = vpow.pop %v2211
    %v2213 = vadd.f32 %v2212, 1.0
    %v2214 = vrcp.pop %v2213
    %v2215 = vmul.f32 1.0, %v2214
    %v2216 = vadd.f32 %v2018, %v2137
    %v2217 = vxor.u32 %v2216, 2147483648
    %v2218 = vmul.f32 %v2217, 1.442695
    %v2219 = vpow.pop %v2218
    %v2220 = vadd.f32 %v2219, 1.0
    %v2221 = vrcp.pop %v2220
    %v2222 = vmul.f32 1.0, %v2221
    %v2223 = vld [vmem:[%s5] sm:$0x1]
    %v2225 = vlaneseq
    %v2226 = vshrl.u32 %v2225, 7
    %v2227 = vsub.s32 0, %v2226
    %v2228 = vrot.slane %v2223, %v2227
    %v2230 = vadd.f32 %v2206, %v2228
    %v2231 = vmul.f32 %v2215, %v2230
    %v2232 = vadd.f32 %v2019, %v2231
    %v2233 = vtanh.pop %v2232
    %v2234 = vsub.f32 1.0, %v2222
    %v2235 = vmul.f32 %v2234, %v2233
    %v2236 = vmul.f32 %v2222, %v2013
    %v2237 = vadd.f32 %v2235, %v2236
    %vm2238 = vcmp.gt.s32.totalorder %v105, 7
    %v2239 = vsel %vm2238, 1, 0
    %2240 = vset.pattern.permute.xlu0 0
    %2241 = vperm.xlu0 %2240, %v2239
    %v2242 = vpop.permute.xlu0 %2241
    %vm2243 = vcmp.eq.s32.totalorder %v2242, 1
    %v2244 = vsel %vm2243, %v2237, %v2013
    %s2245 = scalar_lea.vmem [#allocation3], 56
    %2246 = vst [vmem:[%s2245] sm:$0xff] %v2244
    %v2247 = vld [vmem:[#allocation3] sm:$0xff]
    %v2248 = vld [vmem:[#allocation3 + $0x8] sm:$0xff]
    %v2249 = vld [vmem:[#allocation3 + $0x10] sm:$0xff]
    %v2250 = vld [vmem:[#allocation3 + $0x18] sm:$0xff]
    %v2251 = vld [vmem:[#allocation3 + $0x20] sm:$0xff]
    %v2252 = vld [vmem:[#allocation3 + $0x28] sm:$0xff]
    %v2253 = vld [vmem:[#allocation3 + $0x30] sm:$0xff]
    %v2254 = vld [vmem:[#allocation3 + $0x38] sm:$0xff]
    %v2255 = vld [vmem:[#allocation6] sm:$0xff]
    %v2256 = vld [vmem:[#allocation6 + $0x8] sm:$0xff]
    %v2257 = vld [vmem:[#allocation6 + $0x10] sm:$0xff]
    %v2258 = vld [vmem:[#allocation6 + $0x18] sm:$0xff]
    %v2259 = vld [vmem:[#allocation6 + $0x20] sm:$0xff]
    %v2260 = vld [vmem:[#allocation6 + $0x28] sm:$0xff]
    %v2261 = vld [vmem:[#allocation6 + $0x30] sm:$0xff]
    %v2262 = vld [vmem:[#allocation6 + $0x38] sm:$0xff]
    %v2263 = vld [vmem:[#allocation6 + $0x40] sm:$0xff]
    %v2264 = vld [vmem:[#allocation6 + $0x48] sm:$0xff]
    %v2265 = vld [vmem:[#allocation6 + $0x50] sm:$0xff]
    %v2266 = vld [vmem:[#allocation6 + $0x58] sm:$0xff]
    %v2267 = vld [vmem:[#allocation6 + $0x60] sm:$0xff]
    %v2268 = vld [vmem:[#allocation6 + $0x68] sm:$0xff]
    %v2269 = vld [vmem:[#allocation6 + $0x70] sm:$0xff]
    %v2270 = vld [vmem:[#allocation6 + $0x78] sm:$0xff]
    %v2271 = vld [vmem:[#allocation6 + $0x80] sm:$0xff]
    %v2272 = vld [vmem:[#allocation6 + $0x88] sm:$0xff]
    %v2273 = vld [vmem:[#allocation6 + $0x90] sm:$0xff]
    %v2274 = vld [vmem:[#allocation6 + $0x98] sm:$0xff]
    %v2275 = vld [vmem:[#allocation6 + $0xa0] sm:$0xff]
    %v2276 = vld [vmem:[#allocation6 + $0xa8] sm:$0xff]
    %v2277 = vld [vmem:[#allocation6 + $0xb0] sm:$0xff]
    %v2278 = vld [vmem:[#allocation6 + $0xb8] sm:$0xff]
    %v2279 = vld [vmem:[#allocation6 + $0xc0] sm:$0xff]
    %v2280 = vld [vmem:[#allocation6 + $0xc8] sm:$0xff]
    %v2281 = vld [vmem:[#allocation6 + $0xd0] sm:$0xff]
    %v2282 = vld [vmem:[#allocation6 + $0xd8] sm:$0xff]
    %v2283 = vld [vmem:[#allocation6 + $0xe0] sm:$0xff]
    %v2284 = vld [vmem:[#allocation6 + $0xe8] sm:$0xff]
    %v2285 = vld [vmem:[#allocation6 + $0xf0] sm:$0xff]
    %v2286 = vld [vmem:[#allocation6 + $0xf8] sm:$0xff]
    %v2287 = vld [vmem:[#allocation6 + $0x100] sm:$0xff]
    %v2288 = vld [vmem:[#allocation6 + $0x108] sm:$0xff]
    %v2289 = vld [vmem:[#allocation6 + $0x110] sm:$0xff]
    %v2290 = vld [vmem:[#allocation6 + $0x118] sm:$0xff]
    %v2291 = vld [vmem:[#allocation6 + $0x120] sm:$0xff]
    %v2292 = vld [vmem:[#allocation6 + $0x128] sm:$0xff]
    %v2293 = vld [vmem:[#allocation6 + $0x130] sm:$0xff]
    %v2294 = vld [vmem:[#allocation6 + $0x138] sm:$0xff]
    %v2295 = vld [vmem:[#allocation6 + $0x140] sm:$0xff]
    %v2296 = vld [vmem:[#allocation6 + $0x148] sm:$0xff]
    %v2297 = vld [vmem:[#allocation6 + $0x150] sm:$0xff]
    %v2298 = vld [vmem:[#allocation6 + $0x158] sm:$0xff]
    %v2299 = vld [vmem:[#allocation6 + $0x160] sm:$0xff]
    %v2300 = vld [vmem:[#allocation6 + $0x168] sm:$0xff]
    %v2301 = vld [vmem:[#allocation6 + $0x170] sm:$0xff]
    %v2302 = vld [vmem:[#allocation6 + $0x178] sm:$0xff]
    %v2303 = vld [vmem:[#allocation9] sm:$0x7]
    %v2305 = vlaneseq
    %v2306 = vshrl.u32 %v2305, 7
    %v2307 = vsub.s32 0, %v2306
    %v2308 = vrot.slane %v2303, %v2307
    %v2309 = vlaneseq
    %v2310 = vshrl.u32 %v2309, 7
    %v2311 = vsub.s32 1, %v2310
    %v2312 = vrot.slane %v2303, %v2311
    %v2313 = vlaneseq
    %v2314 = vshrl.u32 %v2313, 7
    %v2315 = vsub.s32 2, %v2314
    %v2316 = vrot.slane %v2303, %v2315
    %2320 = vmatprep.subr.mxu0 %v2256
    %2321 = vmatpush1.msra.mxu0 %v2255
    %2322 = vmatprep.subr.mxu0 %v2259
    %2323 = vmatpush1.msra.mxu0 %v2258
    %2324 = vmatprep.subr.mxu0 %v2262
    %2325 = vmatpush1.msra.mxu0 %v2261
    %2326 = vmatprep.subr.mxu0 %v2265
    %2327 = vmatpush1.msra.mxu0 %v2264
    %2328 = vmatprep.subr.mxu0 %v2268
    %2329 = vmatpush1.msra.mxu0 %v2267
    %2330 = vmatprep.subr.mxu0 %v2271
    %2331 = vmatpush1.msra.mxu0 %v2270
    %2332 = vmatprep.subr.mxu0 %v2274
    %2333 = vmatpush1.msra.mxu0 %v2273
    %2334 = vmatprep.subr.mxu0 %v2277
    %2335 = vmatpush1.msra.mxu0 %v2276
    %2336 = vmatprep.subr.mxu0 %v2280
    %2337 = vmatpush1.msra.mxu0 %v2279
    %2338 = vmatprep.subr.mxu0 %v2283
    %2339 = vmatpush1.msra.mxu0 %v2282
    %2340 = vmatprep.subr.mxu0 %v2286
    %2341 = vmatpush1.msra.mxu0 %v2285
    %2342 = vmatprep.subr.mxu0 %v2289
    %2343 = vmatpush1.msra.mxu0 %v2288
    %2344 = vmatprep.subr.mxu0 %v2292
    %2345 = vmatpush1.msra.mxu0 %v2291
    %2346 = vmatprep.subr.mxu0 %v2295
    %2347 = vmatpush1.msra.mxu0 %v2294
    %2348 = vmatprep.subr.mxu0 %v2298
    %2349 = vmatpush1.msra.mxu0 %v2297
    %2350 = vmatprep.subr.mxu0 %v2301
    %2351 = vmatpush1.msra.mxu0 %v2300
    %2352 = vmatprep.subr.mxu0 0.0
    %2353 = vmatpush1.msra.mxu0 0.0
    %2354 = vmatprep.subr.mxu0 0.0
    %2355 = vmatpush1.msra.mxu0 0.0
    %2356 = vmatprep.subr.mxu0 0.0
    %2357 = vmatpush1.msra.mxu0 0.0
    %2358 = vmatprep.subr.mxu0 0.0
    %2359 = vmatpush1.msra.mxu0 0.0
    %2360 = vmatprep.subr.mxu0 0.0
    %2361 = vmatpush1.msra.mxu0 0.0
    %2362 = vmatprep.subr.mxu0 0.0
    %2363 = vmatpush1.msra.mxu0 0.0
    %2364 = vmatprep.subr.mxu0 0.0
    %2365 = vmatpush1.msra.mxu0 0.0
    %2366 = vmatprep.subr.mxu0 0.0
    %2367 = vmatpush1.msra.mxu0 0.0
    %2368 = vmatprep.subr.mxu0 0.0
    %2369 = vmatpush1.msra.mxu0 0.0
    %2370 = vmatprep.subr.mxu0 0.0
    %2371 = vmatpush1.msra.mxu0 0.0
    %2372 = vmatprep.subr.mxu0 0.0
    %2373 = vmatpush1.msra.mxu0 0.0
    %2374 = vmatprep.subr.mxu0 0.0
    %2375 = vmatpush1.msra.mxu0 0.0
    %2376 = vmatprep.subr.mxu0 0.0
    %2377 = vmatpush1.msra.mxu0 0.0
    %2378 = vmatprep.subr.mxu0 0.0
    %2379 = vmatpush1.msra.mxu0 0.0
    %2380 = vmatprep.subr.mxu0 0.0
    %2381 = vmatpush1.msra.mxu0 0.0
    %2382 = vmatprep.subr.mxu0 0.0
    %2383 = vmatpush1.msra.mxu0 0.0
    %2384 = vmatprep.mubr.f32.mxu0 0.0
    %2385 = vmatmul.mubr.f32.gmra.mrb[0].mxu0 %v2247
    %v2386 = vpop.f32.mrb[0].mxu0
    %v2387 = vadd.f32 %v2308, %v2386
    %v2388 = vpop.f32.mrb[0].mxu0
    %v2389 = vadd.f32 %v2312, %v2388
    %2390 = vmatprep.mubr.f32.mxu0 0.0
    %2391 = vmatmul.mubr.f32.gmra.mrb[0].mxu0 %v2248
    %v2392 = vpop.f32.mrb[0].mxu0
    %v2393 = vadd.f32 %v2308, %v2392
    %v2394 = vpop.f32.mrb[0].mxu0
    %v2395 = vadd.f32 %v2312, %v2394
    %2396 = vmatprep.mubr.f32.mxu0 0.0
    %2397 = vmatmul.mubr.f32.gmra.mrb[0].mxu0 %v2249
    %v2398 = vpop.f32.mrb[0].mxu0
    %v2399 = vadd.f32 %v2308, %v2398
    %v2400 = vpop.f32.mrb[0].mxu0
    %v2401 = vadd.f32 %v2312, %v2400
    %2402 = vmatprep.mubr.f32.mxu0 0.0
    %2403 = vmatmul.mubr.f32.gmra.mrb[0].mxu0 %v2250
    %v2404 = vpop.f32.mrb[0].mxu0
    %v2405 = vadd.f32 %v2308, %v2404
    %v2406 = vpop.f32.mrb[0].mxu0
    %v2407 = vadd.f32 %v2312, %v2406
    %2408 = vmatprep.mubr.f32.mxu0 0.0
    %2409 = vmatmul.mubr.f32.gmra.mrb[0].mxu0 %v2251
    %v2410 = vpop.f32.mrb[0].mxu0
    %v2411 = vadd.f32 %v2308, %v2410
    %v2412 = vpop.f32.mrb[0].mxu0
    %v2413 = vadd.f32 %v2312, %v2412
    %2414 = vmatprep.mubr.f32.mxu0 0.0
    %2415 = vmatmul.mubr.f32.gmra.mrb[0].mxu0 %v2252
    %v2416 = vpop.f32.mrb[0].mxu0
    %v2417 = vadd.f32 %v2308, %v2416
    %v2418 = vpop.f32.mrb[0].mxu0
    %v2419 = vadd.f32 %v2312, %v2418
    %2420 = vmatprep.mubr.f32.mxu0 0.0
    %2421 = vmatmul.mubr.f32.gmra.mrb[0].mxu0 %v2253
    %v2422 = vpop.f32.mrb[0].mxu0
    %v2423 = vadd.f32 %v2308, %v2422
    %v2424 = vpop.f32.mrb[0].mxu0
    %v2425 = vadd.f32 %v2312, %v2424
    %2426 = vmatprep.mubr.f32.mxu0 0.0
    %2427 = vmatmul.mubr.f32.gmra.mrb[0].mxu0 %v2254
    %v2428 = vpop.f32.mrb[0].mxu0
    %v2429 = vadd.f32 %v2308, %v2428
    %v2430 = vpop.f32.mrb[0].mxu0
    %v2431 = vadd.f32 %v2312, %v2430
    %2432 = vdwg.mxu0
    %2433 = vmatprep.subr.mxu0 0.0
    %2434 = vmatpush1.msra.mxu0 %v2257
    %2435 = vmatprep.subr.mxu0 0.0
    %2436 = vmatpush1.msra.mxu0 %v2260
    %2437 = vmatprep.subr.mxu0 0.0
    %2438 = vmatpush1.msra.mxu0 %v2263
    %2439 = vmatprep.subr.mxu0 0.0
    %2440 = vmatpush1.msra.mxu0 %v2266
    %2441 = vmatprep.subr.mxu0 0.0
    %2442 = vmatpush1.msra.mxu0 %v2269
    %2443 = vmatprep.subr.mxu0 0.0
    %2444 = vmatpush1.msra.mxu0 %v2272
    %2445 = vmatprep.subr.mxu0 0.0
    %2446 = vmatpush1.msra.mxu0 %v2275
    %2447 = vmatprep.subr.mxu0 0.0
    %2448 = vmatpush1.msra.mxu0 %v2278
    %2449 = vmatprep.subr.mxu0 0.0
    %2450 = vmatpush1.msra.mxu0 %v2281
    %2451 = vmatprep.subr.mxu0 0.0
    %2452 = vmatpush1.msra.mxu0 %v2284
    %2453 = vmatprep.subr.mxu0 0.0
    %2454 = vmatpush1.msra.mxu0 %v2287
    %2455 = vmatprep.subr.mxu0 0.0
    %2456 = vmatpush1.msra.mxu0 %v2290
    %2457 = vmatprep.subr.mxu0 0.0
    %2458 = vmatpush1.msra.mxu0 %v2293
    %2459 = vmatprep.subr.mxu0 0.0
    %2460 = vmatpush1.msra.mxu0 %v2296
    %2461 = vmatprep.subr.mxu0 0.0
    %2462 = vmatpush1.msra.mxu0 %v2299
    %2463 = vmatprep.subr.mxu0 0.0
    %2464 = vmatpush1.msra.mxu0 %v2302
    %2465 = vmatprep.subr.mxu0 0.0
    %2466 = vmatpush1.msra.mxu0 0.0
    %2467 = vmatprep.subr.mxu0 0.0
    %2468 = vmatpush1.msra.mxu0 0.0
    %2469 = vmatprep.subr.mxu0 0.0
    %2470 = vmatpush1.msra.mxu0 0.0
    %2471 = vmatprep.subr.mxu0 0.0
    %2472 = vmatpush1.msra.mxu0 0.0
    %2473 = vmatprep.subr.mxu0 0.0
    %2474 = vmatpush1.msra.mxu0 0.0
    %2475 = vmatprep.subr.mxu0 0.0
    %2476 = vmatpush1.msra.mxu0 0.0
    %2477 = vmatprep.subr.mxu0 0.0
    %2478 = vmatpush1.msra.mxu0 0.0
    %2479 = vmatprep.subr.mxu0 0.0
    %2480 = vmatpush1.msra.mxu0 0.0
    %2481 = vmatprep.subr.mxu0 0.0
    %2482 = vmatpush1.msra.mxu0 0.0
    %2483 = vmatprep.subr.mxu0 0.0
    %2484 = vmatpush1.msra.mxu0 0.0
    %2485 = vmatprep.subr.mxu0 0.0
    %2486 = vmatpush1.msra.mxu0 0.0
    %2487 = vmatprep.subr.mxu0 0.0
    %2488 = vmatpush1.msra.mxu0 0.0
    %2489 = vmatprep.subr.mxu0 0.0
    %2490 = vmatpush1.msra.mxu0 0.0
    %2491 = vmatprep.subr.mxu0 0.0
    %2492 = vmatpush1.msra.mxu0 0.0
    %2493 = vmatprep.subr.mxu0 0.0
    %2494 = vmatpush1.msra.mxu0 0.0
    %2495 = vmatprep.subr.mxu0 0.0
    %2496 = vmatpush1.msra.mxu0 0.0
    %2497 = vmatprep.mubr.f32.mxu0 0.0
    %2498 = vmatmul.mubr.f32.gmra.mrb[0].mxu0 %v2247
    %v2499 = vpop.f32.mrb[0].mxu0
    %v2500 = vadd.f32 %v2316, %v2499
    %v2501 = vpop.f32.mrb[0].mxu0
    %2502 = vmatprep.mubr.f32.mxu0 0.0
    %2503 = vmatmul.mubr.f32.gmra.mrb[0].mxu0 %v2248
    %v2504 = vpop.f32.mrb[0].mxu0
    %v2505 = vadd.f32 %v2316, %v2504
    %v2506 = vpop.f32.mrb[0].mxu0
    %2507 = vmatprep.mubr.f32.mxu0 0.0
    %2508 = vmatmul.mubr.f32.gmra.mrb[0].mxu0 %v2249
    %v2509 = vpop.f32.mrb[0].mxu0
    %v2510 = vadd.f32 %v2316, %v2509
    %v2511 = vpop.f32.mrb[0].mxu0
    %2512 = vmatprep.mubr.f32.mxu0 0.0
    %2513 = vmatmul.mubr.f32.gmra.mrb[0].mxu0 %v2250
    %v2514 = vpop.f32.mrb[0].mxu0
    %v2515 = vadd.f32 %v2316, %v2514
    %v2516 = vpop.f32.mrb[0].mxu0
    %2517 = vmatprep.mubr.f32.mxu0 0.0
    %2518 = vmatmul.mubr.f32.gmra.mrb[0].mxu0 %v2251
    %v2519 = vpop.f32.mrb[0].mxu0
    %v2520 = vadd.f32 %v2316, %v2519
    %v2521 = vpop.f32.mrb[0].mxu0
    %2522 = vmatprep.mubr.f32.mxu0 0.0
    %2523 = vmatmul.mubr.f32.gmra.mrb[0].mxu0 %v2252
    %v2524 = vpop.f32.mrb[0].mxu0
    %v2525 = vadd.f32 %v2316, %v2524
    %v2526 = vpop.f32.mrb[0].mxu0
    %2527 = vmatprep.mubr.f32.mxu0 0.0
    %2528 = vmatmul.mubr.f32.gmra.mrb[0].mxu0 %v2253
    %v2529 = vpop.f32.mrb[0].mxu0
    %v2530 = vadd.f32 %v2316, %v2529
    %v2531 = vpop.f32.mrb[0].mxu0
    %2532 = vmatprep.mubr.f32.mxu0 0.0
    %2533 = vmatmul.mubr.f32.gmra.mrb[0].mxu0 %v2254
    %v2534 = vpop.f32.mrb[0].mxu0
    %v2535 = vadd.f32 %v2316, %v2534
    %v2536 = vpop.f32.mrb[0].mxu0
    %2537 = vdwg.mxu0
    %2538 = vst [vmem:[#allocation2] sm:$0xff] %v2387
    %2539 = vst [vmem:[#allocation2 + $0x8] sm:$0xff] %v2389
    %2540 = vst [vmem:[#allocation2 + $0x10] sm:$0xff] %v2500
    %2541 = vst [vmem:[#allocation2 + $0x18] sm:$0xff] %v2393
    %2542 = vst [vmem:[#allocation2 + $0x20] sm:$0xff] %v2395
    %2543 = vst [vmem:[#allocation2 + $0x28] sm:$0xff] %v2505
    %2544 = vst [vmem:[#allocation2 + $0x30] sm:$0xff] %v2399
    %2545 = vst [vmem:[#allocation2 + $0x38] sm:$0xff] %v2401
    %2546 = vst [vmem:[#allocation2 + $0x40] sm:$0xff] %v2510
    %2547 = vst [vmem:[#allocation2 + $0x48] sm:$0xff] %v2405
    %2548 = vst [vmem:[#allocation2 + $0x50] sm:$0xff] %v2407
    %2549 = vst [vmem:[#allocation2 + $0x58] sm:$0xff] %v2515
    %2550 = vst [vmem:[#allocation2 + $0x60] sm:$0xff] %v2411
    %2551 = vst [vmem:[#allocation2 + $0x68] sm:$0xff] %v2413
    %2552 = vst [vmem:[#allocation2 + $0x70] sm:$0xff] %v2520
    %2553 = vst [vmem:[#allocation2 + $0x78] sm:$0xff] %v2417
    %2554 = vst [vmem:[#allocation2 + $0x80] sm:$0xff] %v2419
    %2555 = vst [vmem:[#allocation2 + $0x88] sm:$0xff] %v2525
    %2556 = vst [vmem:[#allocation2 + $0x90] sm:$0xff] %v2423
    %2557 = vst [vmem:[#allocation2 + $0x98] sm:$0xff] %v2425
    %2558 = vst [vmem:[#allocation2 + $0xa0] sm:$0xff] %v2530
    %2559 = vst [vmem:[#allocation2 + $0xa8] sm:$0xff] %v2429
    %2560 = vst [vmem:[#allocation2 + $0xb0] sm:$0xff] %v2431
    %2561 = vst [vmem:[#allocation2 + $0xb8] sm:$0xff] %v2535
    %v2562 = vld [vmem:[#allocation2] sm:$0xff]
    %v2563 = vld [vmem:[#allocation2 + $0x8] sm:$0xff]
    %v2564 = vld [vmem:[#allocation2 + $0x10] sm:$0xff]
    %v2565 = vld [vmem:[#allocation8] sm:$0xff]
    %v2566 = vld [vmem:[#allocation8 + $0x8] sm:$0xff]
    %v2567 = vld [vmem:[#allocation8 + $0x10] sm:$0xff]
    %v2568 = vld [vmem:[#allocation8 + $0x18] sm:$0xff]
    %v2569 = vld [vmem:[#allocation8 + $0x20] sm:$0xff]
    %v2570 = vld [vmem:[#allocation8 + $0x28] sm:$0xff]
    %v2571 = vld [vmem:[#allocation8 + $0x30] sm:$0xff]
    %v2572 = vld [vmem:[#allocation8 + $0x38] sm:$0xff]
    %v2573 = vld [vmem:[#allocation8 + $0x40] sm:$0xff]
    %v2574 = vld [vmem:[#allocation8 + $0x48] sm:$0xff]
    %v2575 = vld [vmem:[#allocation8 + $0x50] sm:$0xff]
    %v2576 = vld [vmem:[#allocation8 + $0x58] sm:$0xff]
    %v2577 = vld [vmem:[#allocation8 + $0x60] sm:$0xff]
    %v2578 = vld [vmem:[#allocation8 + $0x68] sm:$0xff]
    %v2579 = vld [vmem:[#allocation8 + $0x70] sm:$0xff]
    %v2580 = vld [vmem:[#allocation8 + $0x78] sm:$0xff]
    %v2581 = vld [vmem:[#allocation8 + $0x80] sm:$0xff]
    %v2582 = vld [vmem:[#allocation8 + $0x88] sm:$0xff]
    %v2583 = vld [vmem:[#allocation8 + $0x90] sm:$0xff]
    %v2584 = vld [vmem:[#allocation8 + $0x98] sm:$0xff]
    %v2585 = vld [vmem:[#allocation8 + $0xa0] sm:$0xff]
    %v2586 = vld [vmem:[#allocation8 + $0xa8] sm:$0xff]
    %v2587 = vld [vmem:[#allocation8 + $0xb0] sm:$0xff]
    %v2588 = vld [vmem:[#allocation8 + $0xb8] sm:$0xff]
    %v2589 = vld [vmem:[#allocation8 + $0xc0] sm:$0xff]
    %v2590 = vld [vmem:[#allocation8 + $0xc8] sm:$0xff]
    %v2591 = vld [vmem:[#allocation8 + $0xd0] sm:$0xff]
    %v2592 = vld [vmem:[#allocation8 + $0xd8] sm:$0xff]
    %v2593 = vld [vmem:[#allocation8 + $0xe0] sm:$0xff]
    %v2594 = vld [vmem:[#allocation8 + $0xe8] sm:$0xff]
    %v2595 = vld [vmem:[#allocation8 + $0xf0] sm:$0xff]
    %v2596 = vld [vmem:[#allocation8 + $0xf8] sm:$0xff]
    %v2597 = vld [vmem:[#allocation8 + $0x100] sm:$0xff]
    %v2598 = vld [vmem:[#allocation8 + $0x108] sm:$0xff]
    %v2599 = vld [vmem:[#allocation8 + $0x110] sm:$0xff]
    %v2600 = vld [vmem:[#allocation8 + $0x118] sm:$0xff]
    %v2601 = vld [vmem:[#allocation8 + $0x120] sm:$0xff]
    %v2602 = vld [vmem:[#allocation8 + $0x128] sm:$0xff]
    %v2603 = vld [vmem:[#allocation8 + $0x130] sm:$0xff]
    %v2604 = vld [vmem:[#allocation8 + $0x138] sm:$0xff]
    %v2605 = vld [vmem:[#allocation8 + $0x140] sm:$0xff]
    %v2606 = vld [vmem:[#allocation8 + $0x148] sm:$0xff]
    %v2607 = vld [vmem:[#allocation8 + $0x150] sm:$0xff]
    %v2608 = vld [vmem:[#allocation8 + $0x158] sm:$0xff]
    %v2609 = vld [vmem:[#allocation8 + $0x160] sm:$0xff]
    %v2610 = vld [vmem:[#allocation8 + $0x168] sm:$0xff]
    %v2611 = vld [vmem:[#allocation8 + $0x170] sm:$0xff]
    %v2612 = vld [vmem:[#allocation8 + $0x178] sm:$0xff]
    %2613 = vmatprep.subr.mxu0 %v2566
    %2614 = vmatpush1.msra.mxu0 %v2565
    %2615 = vmatprep.subr.mxu0 %v2569
    %2616 = vmatpush1.msra.mxu0 %v2568
    %2617 = vmatprep.subr.mxu0 %v2572
    %2618 = vmatpush1.msra.mxu0 %v2571
    %2619 = vmatprep.subr.mxu0 %v2575
    %2620 = vmatpush1.msra.mxu0 %v2574
    %2621 = vmatprep.subr.mxu0 %v2578
    %2622 = vmatpush1.msra.mxu0 %v2577
    %2623 = vmatprep.subr.mxu0 %v2581
    %2624 = vmatpush1.msra.mxu0 %v2580
    %2625 = vmatprep.subr.mxu0 %v2584
    %2626 = vmatpush1.msra.mxu0 %v2583
    %2627 = vmatprep.subr.mxu0 %v2587
    %2628 = vmatpush1.msra.mxu0 %v2586
    %2629 = vmatprep.subr.mxu0 %v2590
    %2630 = vmatpush1.msra.mxu0 %v2589
    %2631 = vmatprep.subr.mxu0 %v2593
    %2632 = vmatpush1.msra.mxu0 %v2592
    %2633 = vmatprep.subr.mxu0 %v2596
    %2634 = vmatpush1.msra.mxu0 %v2595
    %2635 = vmatprep.subr.mxu0 %v2599
    %2636 = vmatpush1.msra.mxu0 %v2598
    %2637 = vmatprep.subr.mxu0 %v2602
    %2638 = vmatpush1.msra.mxu0 %v2601
    %2639 = vmatprep.subr.mxu0 %v2605
    %2640 = vmatpush1.msra.mxu0 %v2604
    %2641 = vmatprep.subr.mxu0 %v2608
    %2642 = vmatpush1.msra.mxu0 %v2607
    %2643 = vmatprep.subr.mxu0 %v2611
    %2644 = vmatpush1.msra.mxu0 %v2610
    %2645 = vmatprep.subr.mxu0 0.0
    %2646 = vmatpush1.msra.mxu0 0.0
    %2647 = vmatprep.subr.mxu0 0.0
    %2648 = vmatpush1.msra.mxu0 0.0
    %2649 = vmatprep.subr.mxu0 0.0
    %2650 = vmatpush1.msra.mxu0 0.0
    %2651 = vmatprep.subr.mxu0 0.0
    %2652 = vmatpush1.msra.mxu0 0.0
    %2653 = vmatprep.subr.mxu0 0.0
    %2654 = vmatpush1.msra.mxu0 0.0
    %2655 = vmatprep.subr.mxu0 0.0
    %2656 = vmatpush1.msra.mxu0 0.0
    %2657 = vmatprep.subr.mxu0 0.0
    %2658 = vmatpush1.msra.mxu0 0.0
    %2659 = vmatprep.subr.mxu0 0.0
    %2660 = vmatpush1.msra.mxu0 0.0
    %2661 = vmatprep.subr.mxu0 0.0
    %2662 = vmatpush1.msra.mxu0 0.0
    %2663 = vmatprep.subr.mxu0 0.0
    %2664 = vmatpush1.msra.mxu0 0.0
    %2665 = vmatprep.subr.mxu0 0.0
    %2666 = vmatpush1.msra.mxu0 0.0
    %2667 = vmatprep.subr.mxu0 0.0
    %2668 = vmatpush1.msra.mxu0 0.0
    %2669 = vmatprep.subr.mxu0 0.0
    %2670 = vmatpush1.msra.mxu0 0.0
    %2671 = vmatprep.subr.mxu0 0.0
    %2672 = vmatpush1.msra.mxu0 0.0
    %2673 = vmatprep.subr.mxu0 0.0
    %2674 = vmatpush1.msra.mxu0 0.0
    %2675 = vmatprep.subr.mxu0 0.0
    %2676 = vmatpush1.msra.mxu0 0.0
    %2677 = vmatprep.mubr.f32.mxu0 0.0
    %2678 = vmatmul.mubr.f32.gmra.mrb[0].mxu0 0.0
    %v2679 = vpop.f32.mrb[0].mxu0
    %v2680 = vadd.f32 0.0, %v2679
    %v2681 = vpop.f32.mrb[0].mxu0
    %v2682 = vadd.f32 0.0, %v2681
    %2683 = vdwg.mxu0
    %2684 = vmatprep.subr.mxu0 0.0
    %2685 = vmatpush1.msra.mxu0 %v2567
    %2686 = vmatprep.subr.mxu0 0.0
    %2687 = vmatpush1.msra.mxu0 %v2570
    %2688 = vmatprep.subr.mxu0 0.0
    %2689 = vmatpush1.msra.mxu0 %v2573
    %2690 = vmatprep.subr.mxu0 0.0
    %2691 = vmatpush1.msra.mxu0 %v2576
    %2692 = vmatprep.subr.mxu0 0.0
    %2693 = vmatpush1.msra.mxu0 %v2579
    %2694 = vmatprep.subr.mxu0 0.0
    %2695 = vmatpush1.msra.mxu0 %v2582
    %2696 = vmatprep.subr.mxu0 0.0
    %2697 = vmatpush1.msra.mxu0 %v2585
    %2698 = vmatprep.subr.mxu0 0.0
    %2699 = vmatpush1.msra.mxu0 %v2588
    %2700 = vmatprep.subr.mxu0 0.0
    %2701 = vmatpush1.msra.mxu0 %v2591
    %2702 = vmatprep.subr.mxu0 0.0
    %2703 = vmatpush1.msra.mxu0 %v2594
    %2704 = vmatprep.subr.mxu0 0.0
    %2705 = vmatpush1.msra.mxu0 %v2597
    %2706 = vmatprep.subr.mxu0 0.0
    %2707 = vmatpush1.msra.mxu0 %v2600
    %2708 = vmatprep.subr.mxu0 0.0
    %2709 = vmatpush1.msra.mxu0 %v2603
    %2710 = vmatprep.subr.mxu0 0.0
    %2711 = vmatpush1.msra.mxu0 %v2606
    %2712 = vmatprep.subr.mxu0 0.0
    %2713 = vmatpush1.msra.mxu0 %v2609
    %2714 = vmatprep.subr.mxu0 0.0
    %2715 = vmatpush1.msra.mxu0 %v2612
    %2716 = vmatprep.subr.mxu0 0.0
    %2717 = vmatpush1.msra.mxu0 0.0
    %2718 = vmatprep.subr.mxu0 0.0
    %2719 = vmatpush1.msra.mxu0 0.0
    %2720 = vmatprep.subr.mxu0 0.0
    %2721 = vmatpush1.msra.mxu0 0.0
    %2722 = vmatprep.subr.mxu0 0.0
    %2723 = vmatpush1.msra.mxu0 0.0
    %2724 = vmatprep.subr.mxu0 0.0
    %2725 = vmatpush1.msra.mxu0 0.0
    %2726 = vmatprep.subr.mxu0 0.0
    %2727 = vmatpush1.msra.mxu0 0.0
    %2728 = vmatprep.subr.mxu0 0.0
    %2729 = vmatpush1.msra.mxu0 0.0
    %2730 = vmatprep.subr.mxu0 0.0
    %2731 = vmatpush1.msra.mxu0 0.0
    %2732 = vmatprep.subr.mxu0 0.0
    %2733 = vmatpush1.msra.mxu0 0.0
    %2734 = vmatprep.subr.mxu0 0.0
    %2735 = vmatpush1.msra.mxu0 0.0
    %2736 = vmatprep.subr.mxu0 0.0
    %2737 = vmatpush1.msra.mxu0 0.0
    %2738 = vmatprep.subr.mxu0 0.0
    %2739 = vmatpush1.msra.mxu0 0.0
    %2740 = vmatprep.subr.mxu0 0.0
    %2741 = vmatpush1.msra.mxu0 0.0
    %2742 = vmatprep.subr.mxu0 0.0
    %2743 = vmatpush1.msra.mxu0 0.0
    %2744 = vmatprep.subr.mxu0 0.0
    %2745 = vmatpush1.msra.mxu0 0.0
    %2746 = vmatprep.subr.mxu0 0.0
    %2747 = vmatpush1.msra.mxu0 0.0
    %2748 = vmatprep.mubr.f32.mxu0 0.0
    %2749 = vmatmul.mubr.f32.gmra.mrb[0].mxu0 0.0
    %v2750 = vpop.f32.mrb[0].mxu0
    %v2751 = vadd.f32 0.0, %v2750
    %v2752 = vpop.f32.mrb[0].mxu0
    %2753 = vdwg.mxu0
    %v2754 = vadd.f32 %v2562, %v2680
    %v2755 = vxor.u32 %v2754, 2147483648
    %v2756 = vmul.f32 %v2755, 1.442695
    %v2757 = vpow.pop %v2756
    %v2758 = vadd.f32 %v2757, 1.0
    %v2759 = vrcp.pop %v2758
    %v2760 = vmul.f32 1.0, %v2759
    %v2761 = vadd.f32 %v2563, %v2682
    %v2762 = vxor.u32 %v2761, 2147483648
    %v2763 = vmul.f32 %v2762, 1.442695
    %v2764 = vpow.pop %v2763
    %v2765 = vadd.f32 %v2764, 1.0
    %v2766 = vrcp.pop %v2765
    %v2767 = vmul.f32 1.0, %v2766
    %v2768 = vld [vmem:[%s9] sm:$0x1]
    %v2770 = vlaneseq
    %v2771 = vshrl.u32 %v2770, 7
    %v2772 = vsub.s32 0, %v2771
    %v2773 = vrot.slane %v2768, %v2772
    %v2775 = vadd.f32 %v2751, %v2773
    %v2776 = vmul.f32 %v2760, %v2775
    %v2777 = vadd.f32 %v2564, %v2776
    %v2778 = vtanh.pop %v2777
    %v2779 = vsub.f32 1.0, %v2767
    %v2780 = vmul.f32 %v2779, %v2778
    %v2781 = vmul.f32 %v2767, 0.0
    %v2782 = vadd.f32 %v2780, %v2781
    %v2783 = vsel %vm627, %v2782, 0.0
    %v2784 = vld [vmem:[%s630] sm:$0xff]
    %v2785 = vld [vmem:[%s630 + $0x8] sm:$0xff]
    %v2786 = vld [vmem:[%s630 + $0x10] sm:$0xff]
    %2787 = vmatprep.subr.mxu0 %v2566
    %2788 = vmatpush1.msra.mxu0 %v2565
    %2789 = vmatprep.subr.mxu0 %v2569
    %2790 = vmatpush1.msra.mxu0 %v2568
    %2791 = vmatprep.subr.mxu0 %v2572
    %2792 = vmatpush1.msra.mxu0 %v2571
    %2793 = vmatprep.subr.mxu0 %v2575
    %2794 = vmatpush1.msra.mxu0 %v2574
    %2795 = vmatprep.subr.mxu0 %v2578
    %2796 = vmatpush1.msra.mxu0 %v2577
    %2797 = vmatprep.subr.mxu0 %v2581
    %2798 = vmatpush1.msra.mxu0 %v2580
    %2799 = vmatprep.subr.mxu0 %v2584
    %2800 = vmatpush1.msra.mxu0 %v2583
    %2801 = vmatprep.subr.mxu0 %v2587
    %2802 = vmatpush1.msra.mxu0 %v2586
    %2803 = vmatprep.subr.mxu0 %v2590
    %2804 = vmatpush1.msra.mxu0 %v2589
    %2805 = vmatprep.subr.mxu0 %v2593
    %2806 = vmatpush1.msra.mxu0 %v2592
    %2807 = vmatprep.subr.mxu0 %v2596
    %2808 = vmatpush1.msra.mxu0 %v2595
    %2809 = vmatprep.subr.mxu0 %v2599
    %2810 = vmatpush1.msra.mxu0 %v2598
    %2811 = vmatprep.subr.mxu0 %v2602
    %2812 = vmatpush1.msra.mxu0 %v2601
    %2813 = vmatprep.subr.mxu0 %v2605
    %2814 = vmatpush1.msra.mxu0 %v2604
    %2815 = vmatprep.subr.mxu0 %v2608
    %2816 = vmatpush1.msra.mxu0 %v2607
    %2817 = vmatprep.subr.mxu0 %v2611
    %2818 = vmatpush1.msra.mxu0 %v2610
    %2819 = vmatprep.subr.mxu0 0.0
    %2820 = vmatpush1.msra.mxu0 0.0
    %2821 = vmatprep.subr.mxu0 0.0
    %2822 = vmatpush1.msra.mxu0 0.0
    %2823 = vmatprep.subr.mxu0 0.0
    %2824 = vmatpush1.msra.mxu0 0.0
    %2825 = vmatprep.subr.mxu0 0.0
    %2826 = vmatpush1.msra.mxu0 0.0
    %2827 = vmatprep.subr.mxu0 0.0
    %2828 = vmatpush1.msra.mxu0 0.0
    %2829 = vmatprep.subr.mxu0 0.0
    %2830 = vmatpush1.msra.mxu0 0.0
    %2831 = vmatprep.subr.mxu0 0.0
    %2832 = vmatpush1.msra.mxu0 0.0
    %2833 = vmatprep.subr.mxu0 0.0
    %2834 = vmatpush1.msra.mxu0 0.0
    %2835 = vmatprep.subr.mxu0 0.0
    %2836 = vmatpush1.msra.mxu0 0.0
    %2837 = vmatprep.subr.mxu0 0.0
    %2838 = vmatpush1.msra.mxu0 0.0
    %2839 = vmatprep.subr.mxu0 0.0
    %2840 = vmatpush1.msra.mxu0 0.0
    %2841 = vmatprep.subr.mxu0 0.0
    %2842 = vmatpush1.msra.mxu0 0.0
    %2843 = vmatprep.subr.mxu0 0.0
    %2844 = vmatpush1.msra.mxu0 0.0
    %2845 = vmatprep.subr.mxu0 0.0
    %2846 = vmatpush1.msra.mxu0 0.0
    %2847 = vmatprep.subr.mxu0 0.0
    %2848 = vmatpush1.msra.mxu0 0.0
    %2849 = vmatprep.subr.mxu0 0.0
    %2850 = vmatpush1.msra.mxu0 0.0
    %2851 = vmatprep.mubr.f32.mxu0 0.0
    %2852 = vmatmul.mubr.f32.gmra.mrb[0].mxu0 %v2783
    %v2853 = vpop.f32.mrb[0].mxu0
    %v2854 = vadd.f32 0.0, %v2853
    %v2855 = vpop.f32.mrb[0].mxu0
    %v2856 = vadd.f32 0.0, %v2855
    %2857 = vdwg.mxu0
    %2858 = vmatprep.subr.mxu0 0.0
    %2859 = vmatpush1.msra.mxu0 %v2567
    %2860 = vmatprep.subr.mxu0 0.0
    %2861 = vmatpush1.msra.mxu0 %v2570
    %2862 = vmatprep.subr.mxu0 0.0
    %2863 = vmatpush1.msra.mxu0 %v2573
    %2864 = vmatprep.subr.mxu0 0.0
    %2865 = vmatpush1.msra.mxu0 %v2576
    %2866 = vmatprep.subr.mxu0 0.0
    %2867 = vmatpush1.msra.mxu0 %v2579
    %2868 = vmatprep.subr.mxu0 0.0
    %2869 = vmatpush1.msra.mxu0 %v2582
    %2870 = vmatprep.subr.mxu0 0.0
    %2871 = vmatpush1.msra.mxu0 %v2585
    %2872 = vmatprep.subr.mxu0 0.0
    %2873 = vmatpush1.msra.mxu0 %v2588
    %2874 = vmatprep.subr.mxu0 0.0
    %2875 = vmatpush1.msra.mxu0 %v2591
    %2876 = vmatprep.subr.mxu0 0.0
    %2877 = vmatpush1.msra.mxu0 %v2594
    %2878 = vmatprep.subr.mxu0 0.0
    %2879 = vmatpush1.msra.mxu0 %v2597
    %2880 = vmatprep.subr.mxu0 0.0
    %2881 = vmatpush1.msra.mxu0 %v2600
    %2882 = vmatprep.subr.mxu0 0.0
    %2883 = vmatpush1.msra.mxu0 %v2603
    %2884 = vmatprep.subr.mxu0 0.0
    %2885 = vmatpush1.msra.mxu0 %v2606
    %2886 = vmatprep.subr.mxu0 0.0
    %2887 = vmatpush1.msra.mxu0 %v2609
    %2888 = vmatprep.subr.mxu0 0.0
    %2889 = vmatpush1.msra.mxu0 %v2612
    %2890 = vmatprep.subr.mxu0 0.0
    %2891 = vmatpush1.msra.mxu0 0.0
    %2892 = vmatprep.subr.mxu0 0.0
    %2893 = vmatpush1.msra.mxu0 0.0
    %2894 = vmatprep.subr.mxu0 0.0
    %2895 = vmatpush1.msra.mxu0 0.0
    %2896 = vmatprep.subr.mxu0 0.0
    %2897 = vmatpush1.msra.mxu0 0.0
    %2898 = vmatprep.subr.mxu0 0.0
    %2899 = vmatpush1.msra.mxu0 0.0
    %2900 = vmatprep.subr.mxu0 0.0
    %2901 = vmatpush1.msra.mxu0 0.0
    %2902 = vmatprep.subr.mxu0 0.0
    %2903 = vmatpush1.msra.mxu0 0.0
    %2904 = vmatprep.subr.mxu0 0.0
    %2905 = vmatpush1.msra.mxu0 0.0
    %2906 = vmatprep.subr.mxu0 0.0
    %2907 = vmatpush1.msra.mxu0 0.0
    %2908 = vmatprep.subr.mxu0 0.0
    %2909 = vmatpush1.msra.mxu0 0.0
    %2910 = vmatprep.subr.mxu0 0.0
    %2911 = vmatpush1.msra.mxu0 0.0
    %2912 = vmatprep.subr.mxu0 0.0
    %2913 = vmatpush1.msra.mxu0 0.0
    %2914 = vmatprep.subr.mxu0 0.0
    %2915 = vmatpush1.msra.mxu0 0.0
    %2916 = vmatprep.subr.mxu0 0.0
    %2917 = vmatpush1.msra.mxu0 0.0
    %2918 = vmatprep.subr.mxu0 0.0
    %2919 = vmatpush1.msra.mxu0 0.0
    %2920 = vmatprep.subr.mxu0 0.0
    %2921 = vmatpush1.msra.mxu0 0.0
    %2922 = vmatprep.mubr.f32.mxu0 0.0
    %2923 = vmatmul.mubr.f32.gmra.mrb[0].mxu0 %v2783
    %v2924 = vpop.f32.mrb[0].mxu0
    %v2925 = vadd.f32 0.0, %v2924
    %v2926 = vpop.f32.mrb[0].mxu0
    %2927 = vdwg.mxu0
    %v2928 = vadd.f32 %v2784, %v2854
    %v2929 = vxor.u32 %v2928, 2147483648
    %v2930 = vmul.f32 %v2929, 1.442695
    %v2931 = vpow.pop %v2930
    %v2932 = vadd.f32 %v2931, 1.0
    %v2933 = vrcp.pop %v2932
    %v2934 = vmul.f32 1.0, %v2933
    %v2935 = vadd.f32 %v2785, %v2856
    %v2936 = vxor.u32 %v2935, 2147483648
    %v2937 = vmul.f32 %v2936, 1.442695
    %v2938 = vpow.pop %v2937
    %v2939 = vadd.f32 %v2938, 1.0
    %v2940 = vrcp.pop %v2939
    %v2941 = vmul.f32 1.0, %v2940
    %v2942 = vadd.f32 %v2925, %v2773
    %v2943 = vmul.f32 %v2934, %v2942
    %v2944 = vadd.f32 %v2786, %v2943
    %v2945 = vtanh.pop %v2944
    %v2946 = vsub.f32 1.0, %v2941
    %v2947 = vmul.f32 %v2946, %v2945
    %v2948 = vmul.f32 %v2941, %v2783
    %v2949 = vadd.f32 %v2947, %v2948
    %v2950 = vsel %vm857, %v2949, %v2783
    %v2951 = vld [vmem:[%s861] sm:$0xff]
    %v2952 = vld [vmem:[%s861 + $0x8] sm:$0xff]
    %v2953 = vld [vmem:[%s861 + $0x10] sm:$0xff]
    %2954 = vmatprep.subr.mxu0 %v2566
    %2955 = vmatpush1.msra.mxu0 %v2565
    %2956 = vmatprep.subr.mxu0 %v2569
    %2957 = vmatpush1.msra.mxu0 %v2568
    %2958 = vmatprep.subr.mxu0 %v2572
    %2959 = vmatpush1.msra.mxu0 %v2571
    %2960 = vmatprep.subr.mxu0 %v2575
    %2961 = vmatpush1.msra.mxu0 %v2574
    %2962 = vmatprep.subr.mxu0 %v2578
    %2963 = vmatpush1.msra.mxu0 %v2577
    %2964 = vmatprep.subr.mxu0 %v2581
    %2965 = vmatpush1.msra.mxu0 %v2580
    %2966 = vmatprep.subr.mxu0 %v2584
    %2967 = vmatpush1.msra.mxu0 %v2583
    %2968 = vmatprep.subr.mxu0 %v2587
    %2969 = vmatpush1.msra.mxu0 %v2586
    %2970 = vmatprep.subr.mxu0 %v2590
    %2971 = vmatpush1.msra.mxu0 %v2589
    %2972 = vmatprep.subr.mxu0 %v2593
    %2973 = vmatpush1.msra.mxu0 %v2592
    %2974 = vmatprep.subr.mxu0 %v2596
    %2975 = vmatpush1.msra.mxu0 %v2595
    %2976 = vmatprep.subr.mxu0 %v2599
    %2977 = vmatpush1.msra.mxu0 %v2598
    %2978 = vmatprep.subr.mxu0 %v2602
    %2979 = vmatpush1.msra.mxu0 %v2601
    %2980 = vmatprep.subr.mxu0 %v2605
    %2981 = vmatpush1.msra.mxu0 %v2604
    %2982 = vmatprep.subr.mxu0 %v2608
    %2983 = vmatpush1.msra.mxu0 %v2607
    %2984 = vmatprep.subr.mxu0 %v2611
    %2985 = vmatpush1.msra.mxu0 %v2610
    %2986 = vmatprep.subr.mxu0 0.0
    %2987 = vmatpush1.msra.mxu0 0.0
    %2988 = vmatprep.subr.mxu0 0.0
    %2989 = vmatpush1.msra.mxu0 0.0
    %2990 = vmatprep.subr.mxu0 0.0
    %2991 = vmatpush1.msra.mxu0 0.0
    %2992 = vmatprep.subr.mxu0 0.0
    %2993 = vmatpush1.msra.mxu0 0.0
    %2994 = vmatprep.subr.mxu0 0.0
    %2995 = vmatpush1.msra.mxu0 0.0
    %2996 = vmatprep.subr.mxu0 0.0
    %2997 = vmatpush1.msra.mxu0 0.0
    %2998 = vmatprep.subr.mxu0 0.0
    %2999 = vmatpush1.msra.mxu0 0.0
    %3000 = vmatprep.subr.mxu0 0.0
    %3001 = vmatpush1.msra.mxu0 0.0
    %3002 = vmatprep.subr.mxu0 0.0
    %3003 = vmatpush1.msra.mxu0 0.0
    %3004 = vmatprep.subr.mxu0 0.0
    %3005 = vmatpush1.msra.mxu0 0.0
    %3006 = vmatprep.subr.mxu0 0.0
    %3007 = vmatpush1.msra.mxu0 0.0
    %3008 = vmatprep.subr.mxu0 0.0
    %3009 = vmatpush1.msra.mxu0 0.0
    %3010 = vmatprep.subr.mxu0 0.0
    %3011 = vmatpush1.msra.mxu0 0.0
    %3012 = vmatprep.subr.mxu0 0.0
    %3013 = vmatpush1.msra.mxu0 0.0
    %3014 = vmatprep.subr.mxu0 0.0
    %3015 = vmatpush1.msra.mxu0 0.0
    %3016 = vmatprep.subr.mxu0 0.0
    %3017 = vmatpush1.msra.mxu0 0.0
    %3018 = vmatprep.mubr.f32.mxu0 0.0
    %3019 = vmatmul.mubr.f32.gmra.mrb[0].mxu0 %v2950
    %v3020 = vpop.f32.mrb[0].mxu0
    %v3021 = vadd.f32 0.0, %v3020
    %v3022 = vpop.f32.mrb[0].mxu0
    %v3023 = vadd.f32 0.0, %v3022
    %3024 = vdwg.mxu0
    %3025 = vmatprep.subr.mxu0 0.0
    %3026 = vmatpush1.msra.mxu0 %v2567
    %3027 = vmatprep.subr.mxu0 0.0
    %3028 = vmatpush1.msra.mxu0 %v2570
    %3029 = vmatprep.subr.mxu0 0.0
    %3030 = vmatpush1.msra.mxu0 %v2573
    %3031 = vmatprep.subr.mxu0 0.0
    %3032 = vmatpush1.msra.mxu0 %v2576
    %3033 = vmatprep.subr.mxu0 0.0
    %3034 = vmatpush1.msra.mxu0 %v2579
    %3035 = vmatprep.subr.mxu0 0.0
    %3036 = vmatpush1.msra.mxu0 %v2582
    %3037 = vmatprep.subr.mxu0 0.0
    %3038 = vmatpush1.msra.mxu0 %v2585
    %3039 = vmatprep.subr.mxu0 0.0
    %3040 = vmatpush1.msra.mxu0 %v2588
    %3041 = vmatprep.subr.mxu0 0.0
    %3042 = vmatpush1.msra.mxu0 %v2591
    %3043 = vmatprep.subr.mxu0 0.0
    %3044 = vmatpush1.msra.mxu0 %v2594
    %3045 = vmatprep.subr.mxu0 0.0
    %3046 = vmatpush1.msra.mxu0 %v2597
    %3047 = vmatprep.subr.mxu0 0.0
    %3048 = vmatpush1.msra.mxu0 %v2600
    %3049 = vmatprep.subr.mxu0 0.0
    %3050 = vmatpush1.msra.mxu0 %v2603
    %3051 = vmatprep.subr.mxu0 0.0
    %3052 = vmatpush1.msra.mxu0 %v2606
    %3053 = vmatprep.subr.mxu0 0.0
    %3054 = vmatpush1.msra.mxu0 %v2609
    %3055 = vmatprep.subr.mxu0 0.0
    %3056 = vmatpush1.msra.mxu0 %v2612
    %3057 = vmatprep.subr.mxu0 0.0
    %3058 = vmatpush1.msra.mxu0 0.0
    %3059 = vmatprep.subr.mxu0 0.0
    %3060 = vmatpush1.msra.mxu0 0.0
    %3061 = vmatprep.subr.mxu0 0.0
    %3062 = vmatpush1.msra.mxu0 0.0
    %3063 = vmatprep.subr.mxu0 0.0
    %3064 = vmatpush1.msra.mxu0 0.0
    %3065 = vmatprep.subr.mxu0 0.0
    %3066 = vmatpush1.msra.mxu0 0.0
    %3067 = vmatprep.subr.mxu0 0.0
    %3068 = vmatpush1.msra.mxu0 0.0
    %3069 = vmatprep.subr.mxu0 0.0
    %3070 = vmatpush1.msra.mxu0 0.0
    %3071 = vmatprep.subr.mxu0 0.0
    %3072 = vmatpush1.msra.mxu0 0.0
    %3073 = vmatprep.subr.mxu0 0.0
    %3074 = vmatpush1.msra.mxu0 0.0
    %3075 = vmatprep.subr.mxu0 0.0
    %3076 = vmatpush1.msra.mxu0 0.0
    %3077 = vmatprep.subr.mxu0 0.0
    %3078 = vmatpush1.msra.mxu0 0.0
    %3079 = vmatprep.subr.mxu0 0.0
    %3080 = vmatpush1.msra.mxu0 0.0
    %3081 = vmatprep.subr.mxu0 0.0
    %3082 = vmatpush1.msra.mxu0 0.0
    %3083 = vmatprep.subr.mxu0 0.0
    %3084 = vmatpush1.msra.mxu0 0.0
    %3085 = vmatprep.subr.mxu0 0.0
    %3086 = vmatpush1.msra.mxu0 0.0
    %3087 = vmatprep.subr.mxu0 0.0
    %3088 = vmatpush1.msra.mxu0 0.0
    %3089 = vmatprep.mubr.f32.mxu0 0.0
    %3090 = vmatmul.mubr.f32.gmra.mrb[0].mxu0 %v2950
    %v3091 = vpop.f32.mrb[0].mxu0
    %v3092 = vadd.f32 0.0, %v3091
    %v3093 = vpop.f32.mrb[0].mxu0
    %3094 = vdwg.mxu0
    %v3095 = vadd.f32 %v2951, %v3021
    %v3096 = vxor.u32 %v3095, 2147483648
    %v3097 = vmul.f32 %v3096, 1.442695
    %v3098 = vpow.pop %v3097
    %v3099 = vadd.f32 %v3098, 1.0
    %v3100 = vrcp.pop %v3099
    %v3101 = vmul.f32 1.0, %v3100
    %v3102 = vadd.f32 %v2952, %v3023
    %v3103 = vxor.u32 %v3102, 2147483648
    %v3104 = vmul.f32 %v3103, 1.442695
    %v3105 = vpow.pop %v3104
    %v3106 = vadd.f32 %v3105, 1.0
    %v3107 = vrcp.pop %v3106
    %v3108 = vmul.f32 1.0, %v3107
    %v3109 = vadd.f32 %v3092, %v2773
    %v3110 = vmul.f32 %v3101, %v3109
    %v3111 = vadd.f32 %v2953, %v3110
    %v3112 = vtanh.pop %v3111
    %v3113 = vsub.f32 1.0, %v3108
    %v3114 = vmul.f32 %v3113, %v3112
    %v3115 = vmul.f32 %v3108, %v2950
    %v3116 = vadd.f32 %v3114, %v3115
    %v3117 = vsel %vm1088, %v3116, %v2950
    %v3118 = vld [vmem:[%s1092] sm:$0xff]
    %v3119 = vld [vmem:[%s1092 + $0x8] sm:$0xff]
    %v3120 = vld [vmem:[%s1092 + $0x10] sm:$0xff]
    %3121 = vmatprep.subr.mxu0 %v2566
    %3122 = vmatpush1.msra.mxu0 %v2565
    %3123 = vmatprep.subr.mxu0 %v2569
    %3124 = vmatpush1.msra.mxu0 %v2568
    %3125 = vmatprep.subr.mxu0 %v2572
    %3126 = vmatpush1.msra.mxu0 %v2571
    %3127 = vmatprep.subr.mxu0 %v2575
    %3128 = vmatpush1.msra.mxu0 %v2574
    %3129 = vmatprep.subr.mxu0 %v2578
    %3130 = vmatpush1.msra.mxu0 %v2577
    %3131 = vmatprep.subr.mxu0 %v2581
    %3132 = vmatpush1.msra.mxu0 %v2580
    %3133 = vmatprep.subr.mxu0 %v2584
    %3134 = vmatpush1.msra.mxu0 %v2583
    %3135 = vmatprep.subr.mxu0 %v2587
    %3136 = vmatpush1.msra.mxu0 %v2586
    %3137 = vmatprep.subr.mxu0 %v2590
    %3138 = vmatpush1.msra.mxu0 %v2589
    %3139 = vmatprep.subr.mxu0 %v2593
    %3140 = vmatpush1.msra.mxu0 %v2592
    %3141 = vmatprep.subr.mxu0 %v2596
    %3142 = vmatpush1.msra.mxu0 %v2595
    %3143 = vmatprep.subr.mxu0 %v2599
    %3144 = vmatpush1.msra.mxu0 %v2598
    %3145 = vmatprep.subr.mxu0 %v2602
    %3146 = vmatpush1.msra.mxu0 %v2601
    %3147 = vmatprep.subr.mxu0 %v2605
    %3148 = vmatpush1.msra.mxu0 %v2604
    %3149 = vmatprep.subr.mxu0 %v2608
    %3150 = vmatpush1.msra.mxu0 %v2607
    %3151 = vmatprep.subr.mxu0 %v2611
    %3152 = vmatpush1.msra.mxu0 %v2610
    %3153 = vmatprep.subr.mxu0 0.0
    %3154 = vmatpush1.msra.mxu0 0.0
    %3155 = vmatprep.subr.mxu0 0.0
    %3156 = vmatpush1.msra.mxu0 0.0
    %3157 = vmatprep.subr.mxu0 0.0
    %3158 = vmatpush1.msra.mxu0 0.0
    %3159 = vmatprep.subr.mxu0 0.0
    %3160 = vmatpush1.msra.mxu0 0.0
    %3161 = vmatprep.subr.mxu0 0.0
    %3162 = vmatpush1.msra.mxu0 0.0
    %3163 = vmatprep.subr.mxu0 0.0
    %3164 = vmatpush1.msra.mxu0 0.0
    %3165 = vmatprep.subr.mxu0 0.0
    %3166 = vmatpush1.msra.mxu0 0.0
    %3167 = vmatprep.subr.mxu0 0.0
    %3168 = vmatpush1.msra.mxu0 0.0
    %3169 = vmatprep.subr.mxu0 0.0
    %3170 = vmatpush1.msra.mxu0 0.0
    %3171 = vmatprep.subr.mxu0 0.0
    %3172 = vmatpush1.msra.mxu0 0.0
    %3173 = vmatprep.subr.mxu0 0.0
    %3174 = vmatpush1.msra.mxu0 0.0
    %3175 = vmatprep.subr.mxu0 0.0
    %3176 = vmatpush1.msra.mxu0 0.0
    %3177 = vmatprep.subr.mxu0 0.0
    %3178 = vmatpush1.msra.mxu0 0.0
    %3179 = vmatprep.subr.mxu0 0.0
    %3180 = vmatpush1.msra.mxu0 0.0
    %3181 = vmatprep.subr.mxu0 0.0
    %3182 = vmatpush1.msra.mxu0 0.0
    %3183 = vmatprep.subr.mxu0 0.0
    %3184 = vmatpush1.msra.mxu0 0.0
    %3185 = vmatprep.mubr.f32.mxu0 0.0
    %3186 = vmatmul.mubr.f32.gmra.mrb[0].mxu0 %v3117
    %v3187 = vpop.f32.mrb[0].mxu0
    %v3188 = vadd.f32 0.0, %v3187
    %v3189 = vpop.f32.mrb[0].mxu0
    %v3190 = vadd.f32 0.0, %v3189
    %3191 = vdwg.mxu0
    %3192 = vmatprep.subr.mxu0 0.0
    %3193 = vmatpush1.msra.mxu0 %v2567
    %3194 = vmatprep.subr.mxu0 0.0
    %3195 = vmatpush1.msra.mxu0 %v2570
    %3196 = vmatprep.subr.mxu0 0.0
    %3197 = vmatpush1.msra.mxu0 %v2573
    %3198 = vmatprep.subr.mxu0 0.0
    %3199 = vmatpush1.msra.mxu0 %v2576
    %3200 = vmatprep.subr.mxu0 0.0
    %3201 = vmatpush1.msra.mxu0 %v2579
    %3202 = vmatprep.subr.mxu0 0.0
    %3203 = vmatpush1.msra.mxu0 %v2582
    %3204 = vmatprep.subr.mxu0 0.0
    %3205 = vmatpush1.msra.mxu0 %v2585
    %3206 = vmatprep.subr.mxu0 0.0
    %3207 = vmatpush1.msra.mxu0 %v2588
    %3208 = vmatprep.subr.mxu0 0.0
    %3209 = vmatpush1.msra.mxu0 %v2591
    %3210 = vmatprep.subr.mxu0 0.0
    %3211 = vmatpush1.msra.mxu0 %v2594
    %3212 = vmatprep.subr.mxu0 0.0
    %3213 = vmatpush1.msra.mxu0 %v2597
    %3214 = vmatprep.subr.mxu0 0.0
    %3215 = vmatpush1.msra.mxu0 %v2600
    %3216 = vmatprep.subr.mxu0 0.0
    %3217 = vmatpush1.msra.mxu0 %v2603
    %3218 = vmatprep.subr.mxu0 0.0
    %3219 = vmatpush1.msra.mxu0 %v2606
    %3220 = vmatprep.subr.mxu0 0.0
    %3221 = vmatpush1.msra.mxu0 %v2609
    %3222 = vmatprep.subr.mxu0 0.0
    %3223 = vmatpush1.msra.mxu0 %v2612
    %3224 = vmatprep.subr.mxu0 0.0
    %3225 = vmatpush1.msra.mxu0 0.0
    %3226 = vmatprep.subr.mxu0 0.0
    %3227 = vmatpush1.msra.mxu0 0.0
    %3228 = vmatprep.subr.mxu0 0.0
    %3229 = vmatpush1.msra.mxu0 0.0
    %3230 = vmatprep.subr.mxu0 0.0
    %3231 = vmatpush1.msra.mxu0 0.0
    %3232 = vmatprep.subr.mxu0 0.0
    %3233 = vmatpush1.msra.mxu0 0.0
    %3234 = vmatprep.subr.mxu0 0.0
    %3235 = vmatpush1.msra.mxu0 0.0
    %3236 = vmatprep.subr.mxu0 0.0
    %3237 = vmatpush1.msra.mxu0 0.0
    %3238 = vmatprep.subr.mxu0 0.0
    %3239 = vmatpush1.msra.mxu0 0.0
    %3240 = vmatprep.subr.mxu0 0.0
    %3241 = vmatpush1.msra.mxu0 0.0
    %3242 = vmatprep.subr.mxu0 0.0
    %3243 = vmatpush1.msra.mxu0 0.0
    %3244 = vmatprep.subr.mxu0 0.0
    %3245 = vmatpush1.msra.mxu0 0.0
    %3246 = vmatprep.subr.mxu0 0.0
    %3247 = vmatpush1.msra.mxu0 0.0
    %3248 = vmatprep.subr.mxu0 0.0
    %3249 = vmatpush1.msra.mxu0 0.0
    %3250 = vmatprep.subr.mxu0 0.0
    %3251 = vmatpush1.msra.mxu0 0.0
    %3252 = vmatprep.subr.mxu0 0.0
    %3253 = vmatpush1.msra.mxu0 0.0
    %3254 = vmatprep.subr.mxu0 0.0
    %3255 = vmatpush1.msra.mxu0 0.0
    %3256 = vmatprep.mubr.f32.mxu0 0.0
    %3257 = vmatmul.mubr.f32.gmra.mrb[0].mxu0 %v3117
    %v3258 = vpop.f32.mrb[0].mxu0
    %v3259 = vadd.f32 0.0, %v3258
    %v3260 = vpop.f32.mrb[0].mxu0
    %3261 = vdwg.mxu0
    %v3262 = vadd.f32 %v3118, %v3188
    %v3263 = vxor.u32 %v3262, 2147483648
    %v3264 = vmul.f32 %v3263, 1.442695
    %v3265 = vpow.pop %v3264
    %v3266 = vadd.f32 %v3265, 1.0
    %v3267 = vrcp.pop %v3266
    %v3268 = vmul.f32 1.0, %v3267
    %v3269 = vadd.f32 %v3119, %v3190
    %v3270 = vxor.u32 %v3269, 2147483648
    %v3271 = vmul.f32 %v3270, 1.442695
    %v3272 = vpow.pop %v3271
    %v3273 = vadd.f32 %v3272, 1.0
    %v3274 = vrcp.pop %v3273
    %v3275 = vmul.f32 1.0, %v3274
    %v3276 = vadd.f32 %v3259, %v2773
    %v3277 = vmul.f32 %v3268, %v3276
    %v3278 = vadd.f32 %v3120, %v3277
    %v3279 = vtanh.pop %v3278
    %v3280 = vsub.f32 1.0, %v3275
    %v3281 = vmul.f32 %v3280, %v3279
    %v3282 = vmul.f32 %v3275, %v3117
    %v3283 = vadd.f32 %v3281, %v3282
    %v3284 = vsel %vm1319, %v3283, %v3117
    %v3285 = vld [vmem:[%s1323] sm:$0xff]
    %v3286 = vld [vmem:[%s1323 + $0x8] sm:$0xff]
    %v3287 = vld [vmem:[%s1323 + $0x10] sm:$0xff]
    %3288 = vmatprep.subr.mxu0 %v2566
    %3289 = vmatpush1.msra.mxu0 %v2565
    %3290 = vmatprep.subr.mxu0 %v2569
    %3291 = vmatpush1.msra.mxu0 %v2568
    %3292 = vmatprep.subr.mxu0 %v2572
    %3293 = vmatpush1.msra.mxu0 %v2571
    %3294 = vmatprep.subr.mxu0 %v2575
    %3295 = vmatpush1.msra.mxu0 %v2574
    %3296 = vmatprep.subr.mxu0 %v2578
    %3297 = vmatpush1.msra.mxu0 %v2577
    %3298 = vmatprep.subr.mxu0 %v2581
    %3299 = vmatpush1.msra.mxu0 %v2580
    %3300 = vmatprep.subr.mxu0 %v2584
    %3301 = vmatpush1.msra.mxu0 %v2583
    %3302 = vmatprep.subr.mxu0 %v2587
    %3303 = vmatpush1.msra.mxu0 %v2586
    %3304 = vmatprep.subr.mxu0 %v2590
    %3305 = vmatpush1.msra.mxu0 %v2589
    %3306 = vmatprep.subr.mxu0 %v2593
    %3307 = vmatpush1.msra.mxu0 %v2592
    %3308 = vmatprep.subr.mxu0 %v2596
    %3309 = vmatpush1.msra.mxu0 %v2595
    %3310 = vmatprep.subr.mxu0 %v2599
    %3311 = vmatpush1.msra.mxu0 %v2598
    %3312 = vmatprep.subr.mxu0 %v2602
    %3313 = vmatpush1.msra.mxu0 %v2601
    %3314 = vmatprep.subr.mxu0 %v2605
    %3315 = vmatpush1.msra.mxu0 %v2604
    %3316 = vmatprep.subr.mxu0 %v2608
    %3317 = vmatpush1.msra.mxu0 %v2607
    %3318 = vmatprep.subr.mxu0 %v2611
    %3319 = vmatpush1.msra.mxu0 %v2610
    %3320 = vmatprep.subr.mxu0 0.0
    %3321 = vmatpush1.msra.mxu0 0.0
    %3322 = vmatprep.subr.mxu0 0.0
    %3323 = vmatpush1.msra.mxu0 0.0
    %3324 = vmatprep.subr.mxu0 0.0
    %3325 = vmatpush1.msra.mxu0 0.0
    %3326 = vmatprep.subr.mxu0 0.0
    %3327 = vmatpush1.msra.mxu0 0.0
    %3328 = vmatprep.subr.mxu0 0.0
    %3329 = vmatpush1.msra.mxu0 0.0
    %3330 = vmatprep.subr.mxu0 0.0
    %3331 = vmatpush1.msra.mxu0 0.0
    %3332 = vmatprep.subr.mxu0 0.0
    %3333 = vmatpush1.msra.mxu0 0.0
    %3334 = vmatprep.subr.mxu0 0.0
    %3335 = vmatpush1.msra.mxu0 0.0
    %3336 = vmatprep.subr.mxu0 0.0
    %3337 = vmatpush1.msra.mxu0 0.0
    %3338 = vmatprep.subr.mxu0 0.0
    %3339 = vmatpush1.msra.mxu0 0.0
    %3340 = vmatprep.subr.mxu0 0.0
    %3341 = vmatpush1.msra.mxu0 0.0
    %3342 = vmatprep.subr.mxu0 0.0
    %3343 = vmatpush1.msra.mxu0 0.0
    %3344 = vmatprep.subr.mxu0 0.0
    %3345 = vmatpush1.msra.mxu0 0.0
    %3346 = vmatprep.subr.mxu0 0.0
    %3347 = vmatpush1.msra.mxu0 0.0
    %3348 = vmatprep.subr.mxu0 0.0
    %3349 = vmatpush1.msra.mxu0 0.0
    %3350 = vmatprep.subr.mxu0 0.0
    %3351 = vmatpush1.msra.mxu0 0.0
    %3352 = vmatprep.mubr.f32.mxu0 0.0
    %3353 = vmatmul.mubr.f32.gmra.mrb[0].mxu0 %v3284
    %v3354 = vpop.f32.mrb[0].mxu0
    %v3355 = vadd.f32 0.0, %v3354
    %v3356 = vpop.f32.mrb[0].mxu0
    %v3357 = vadd.f32 0.0, %v3356
    %3358 = vdwg.mxu0
    %3359 = vmatprep.subr.mxu0 0.0
    %3360 = vmatpush1.msra.mxu0 %v2567
    %3361 = vmatprep.subr.mxu0 0.0
    %3362 = vmatpush1.msra.mxu0 %v2570
    %3363 = vmatprep.subr.mxu0 0.0
    %3364 = vmatpush1.msra.mxu0 %v2573
    %3365 = vmatprep.subr.mxu0 0.0
    %3366 = vmatpush1.msra.mxu0 %v2576
    %3367 = vmatprep.subr.mxu0 0.0
    %3368 = vmatpush1.msra.mxu0 %v2579
    %3369 = vmatprep.subr.mxu0 0.0
    %3370 = vmatpush1.msra.mxu0 %v2582
    %3371 = vmatprep.subr.mxu0 0.0
    %3372 = vmatpush1.msra.mxu0 %v2585
    %3373 = vmatprep.subr.mxu0 0.0
    %3374 = vmatpush1.msra.mxu0 %v2588
    %3375 = vmatprep.subr.mxu0 0.0
    %3376 = vmatpush1.msra.mxu0 %v2591
    %3377 = vmatprep.subr.mxu0 0.0
    %3378 = vmatpush1.msra.mxu0 %v2594
    %3379 = vmatprep.subr.mxu0 0.0
    %3380 = vmatpush1.msra.mxu0 %v2597
    %3381 = vmatprep.subr.mxu0 0.0
    %3382 = vmatpush1.msra.mxu0 %v2600
    %3383 = vmatprep.subr.mxu0 0.0
    %3384 = vmatpush1.msra.mxu0 %v2603
    %3385 = vmatprep.subr.mxu0 0.0
    %3386 = vmatpush1.msra.mxu0 %v2606
    %3387 = vmatprep.subr.mxu0 0.0
    %3388 = vmatpush1.msra.mxu0 %v2609
    %3389 = vmatprep.subr.mxu0 0.0
    %3390 = vmatpush1.msra.mxu0 %v2612
    %3391 = vmatprep.subr.mxu0 0.0
    %3392 = vmatpush1.msra.mxu0 0.0
    %3393 = vmatprep.subr.mxu0 0.0
    %3394 = vmatpush1.msra.mxu0 0.0
    %3395 = vmatprep.subr.mxu0 0.0
    %3396 = vmatpush1.msra.mxu0 0.0
    %3397 = vmatprep.subr.mxu0 0.0
    %3398 = vmatpush1.msra.mxu0 0.0
    %3399 = vmatprep.subr.mxu0 0.0
    %3400 = vmatpush1.msra.mxu0 0.0
    %3401 = vmatprep.subr.mxu0 0.0
    %3402 = vmatpush1.msra.mxu0 0.0
    %3403 = vmatprep.subr.mxu0 0.0
    %3404 = vmatpush1.msra.mxu0 0.0
    %3405 = vmatprep.subr.mxu0 0.0
    %3406 = vmatpush1.msra.mxu0 0.0
    %3407 = vmatprep.subr.mxu0 0.0
    %3408 = vmatpush1.msra.mxu0 0.0
    %3409 = vmatprep.subr.mxu0 0.0
    %3410 = vmatpush1.msra.mxu0 0.0
    %3411 = vmatprep.subr.mxu0 0.0
    %3412 = vmatpush1.msra.mxu0 0.0
    %3413 = vmatprep.subr.mxu0 0.0
    %3414 = vmatpush1.msra.mxu0 0.0
    %3415 = vmatprep.subr.mxu0 0.0
    %3416 = vmatpush1.msra.mxu0 0.0
    %3417 = vmatprep.subr.mxu0 0.0
    %3418 = vmatpush1.msra.mxu0 0.0
    %3419 = vmatprep.subr.mxu0 0.0
    %3420 = vmatpush1.msra.mxu0 0.0
    %3421 = vmatprep.subr.mxu0 0.0
    %3422 = vmatpush1.msra.mxu0 0.0
    %3423 = vmatprep.mubr.f32.mxu0 0.0
    %3424 = vmatmul.mubr.f32.gmra.mrb[0].mxu0 %v3284
    %v3425 = vpop.f32.mrb[0].mxu0
    %v3426 = vadd.f32 0.0, %v3425
    %v3427 = vpop.f32.mrb[0].mxu0
    %3428 = vdwg.mxu0
    %v3429 = vadd.f32 %v3285, %v3355
    %v3430 = vxor.u32 %v3429, 2147483648
    %v3431 = vmul.f32 %v3430, 1.442695
    %v3432 = vpow.pop %v3431
    %v3433 = vadd.f32 %v3432, 1.0
    %v3434 = vrcp.pop %v3433
    %v3435 = vmul.f32 1.0, %v3434
    %v3436 = vadd.f32 %v3286, %v3357
    %v3437 = vxor.u32 %v3436, 2147483648
    %v3438 = vmul.f32 %v3437, 1.442695
    %v3439 = vpow.pop %v3438
    %v3440 = vadd.f32 %v3439, 1.0
    %v3441 = vrcp.pop %v3440
    %v3442 = vmul.f32 1.0, %v3441
    %v3443 = vadd.f32 %v3426, %v2773
    %v3444 = vmul.f32 %v3435, %v3443
    %v3445 = vadd.f32 %v3287, %v3444
    %v3446 = vtanh.pop %v3445
    %v3447 = vsub.f32 1.0, %v3442
    %v3448 = vmul.f32 %v3447, %v3446
    %v3449 = vmul.f32 %v3442, %v3284
    %v3450 = vadd.f32 %v3448, %v3449
    %v3451 = vsel %vm1550, %v3450, %v3284
    %v3452 = vld [vmem:[%s1554] sm:$0xff]
    %v3453 = vld [vmem:[%s1554 + $0x8] sm:$0xff]
    %v3454 = vld [vmem:[%s1554 + $0x10] sm:$0xff]
    %3455 = vmatprep.subr.mxu0 %v2566
    %3456 = vmatpush1.msra.mxu0 %v2565
    %3457 = vmatprep.subr.mxu0 %v2569
    %3458 = vmatpush1.msra.mxu0 %v2568
    %3459 = vmatprep.subr.mxu0 %v2572
    %3460 = vmatpush1.msra.mxu0 %v2571
    %3461 = vmatprep.subr.mxu0 %v2575
    %3462 = vmatpush1.msra.mxu0 %v2574
    %3463 = vmatprep.subr.mxu0 %v2578
    %3464 = vmatpush1.msra.mxu0 %v2577
    %3465 = vmatprep.subr.mxu0 %v2581
    %3466 = vmatpush1.msra.mxu0 %v2580
    %3467 = vmatprep.subr.mxu0 %v2584
    %3468 = vmatpush1.msra.mxu0 %v2583
    %3469 = vmatprep.subr.mxu0 %v2587
    %3470 = vmatpush1.msra.mxu0 %v2586
    %3471 = vmatprep.subr.mxu0 %v2590
    %3472 = vmatpush1.msra.mxu0 %v2589
    %3473 = vmatprep.subr.mxu0 %v2593
    %3474 = vmatpush1.msra.mxu0 %v2592
    %3475 = vmatprep.subr.mxu0 %v2596
    %3476 = vmatpush1.msra.mxu0 %v2595
    %3477 = vmatprep.subr.mxu0 %v2599
    %3478 = vmatpush1.msra.mxu0 %v2598
    %3479 = vmatprep.subr.mxu0 %v2602
    %3480 = vmatpush1.msra.mxu0 %v2601
    %3481 = vmatprep.subr.mxu0 %v2605
    %3482 = vmatpush1.msra.mxu0 %v2604
    %3483 = vmatprep.subr.mxu0 %v2608
    %3484 = vmatpush1.msra.mxu0 %v2607
    %3485 = vmatprep.subr.mxu0 %v2611
    %3486 = vmatpush1.msra.mxu0 %v2610
    %3487 = vmatprep.subr.mxu0 0.0
    %3488 = vmatpush1.msra.mxu0 0.0
    %3489 = vmatprep.subr.mxu0 0.0
    %3490 = vmatpush1.msra.mxu0 0.0
    %3491 = vmatprep.subr.mxu0 0.0
    %3492 = vmatpush1.msra.mxu0 0.0
    %3493 = vmatprep.subr.mxu0 0.0
    %3494 = vmatpush1.msra.mxu0 0.0
    %3495 = vmatprep.subr.mxu0 0.0
    %3496 = vmatpush1.msra.mxu0 0.0
    %3497 = vmatprep.subr.mxu0 0.0
    %3498 = vmatpush1.msra.mxu0 0.0
    %3499 = vmatprep.subr.mxu0 0.0
    %3500 = vmatpush1.msra.mxu0 0.0
    %3501 = vmatprep.subr.mxu0 0.0
    %3502 = vmatpush1.msra.mxu0 0.0
    %3503 = vmatprep.subr.mxu0 0.0
    %3504 = vmatpush1.msra.mxu0 0.0
    %3505 = vmatprep.subr.mxu0 0.0
    %3506 = vmatpush1.msra.mxu0 0.0
    %3507 = vmatprep.subr.mxu0 0.0
    %3508 = vmatpush1.msra.mxu0 0.0
    %3509 = vmatprep.subr.mxu0 0.0
    %3510 = vmatpush1.msra.mxu0 0.0
    %3511 = vmatprep.subr.mxu0 0.0
    %3512 = vmatpush1.msra.mxu0 0.0
    %3513 = vmatprep.subr.mxu0 0.0
    %3514 = vmatpush1.msra.mxu0 0.0
    %3515 = vmatprep.subr.mxu0 0.0
    %3516 = vmatpush1.msra.mxu0 0.0
    %3517 = vmatprep.subr.mxu0 0.0
    %3518 = vmatpush1.msra.mxu0 0.0
    %3519 = vmatprep.mubr.f32.mxu0 0.0
    %3520 = vmatmul.mubr.f32.gmra.mrb[0].mxu0 %v3451
    %v3521 = vpop.f32.mrb[0].mxu0
    %v3522 = vadd.f32 0.0, %v3521
    %v3523 = vpop.f32.mrb[0].mxu0
    %v3524 = vadd.f32 0.0, %v3523
    %3525 = vdwg.mxu0
    %3526 = vmatprep.subr.mxu0 0.0
    %3527 = vmatpush1.msra.mxu0 %v2567
    %3528 = vmatprep.subr.mxu0 0.0
    %3529 = vmatpush1.msra.mxu0 %v2570
    %3530 = vmatprep.subr.mxu0 0.0
    %3531 = vmatpush1.msra.mxu0 %v2573
    %3532 = vmatprep.subr.mxu0 0.0
    %3533 = vmatpush1.msra.mxu0 %v2576
    %3534 = vmatprep.subr.mxu0 0.0
    %3535 = vmatpush1.msra.mxu0 %v2579
    %3536 = vmatprep.subr.mxu0 0.0
    %3537 = vmatpush1.msra.mxu0 %v2582
    %3538 = vmatprep.subr.mxu0 0.0
    %3539 = vmatpush1.msra.mxu0 %v2585
    %3540 = vmatprep.subr.mxu0 0.0
    %3541 = vmatpush1.msra.mxu0 %v2588
    %3542 = vmatprep.subr.mxu0 0.0
    %3543 = vmatpush1.msra.mxu0 %v2591
    %3544 = vmatprep.subr.mxu0 0.0
    %3545 = vmatpush1.msra.mxu0 %v2594
    %3546 = vmatprep.subr.mxu0 0.0
    %3547 = vmatpush1.msra.mxu0 %v2597
    %3548 = vmatprep.subr.mxu0 0.0
    %3549 = vmatpush1.msra.mxu0 %v2600
    %3550 = vmatprep.subr.mxu0 0.0
    %3551 = vmatpush1.msra.mxu0 %v2603
    %3552 = vmatprep.subr.mxu0 0.0
    %3553 = vmatpush1.msra.mxu0 %v2606
    %3554 = vmatprep.subr.mxu0 0.0
    %3555 = vmatpush1.msra.mxu0 %v2609
    %3556 = vmatprep.subr.mxu0 0.0
    %3557 = vmatpush1.msra.mxu0 %v2612
    %3558 = vmatprep.subr.mxu0 0.0
    %3559 = vmatpush1.msra.mxu0 0.0
    %3560 = vmatprep.subr.mxu0 0.0
    %3561 = vmatpush1.msra.mxu0 0.0
    %3562 = vmatprep.subr.mxu0 0.0
    %3563 = vmatpush1.msra.mxu0 0.0
    %3564 = vmatprep.subr.mxu0 0.0
    %3565 = vmatpush1.msra.mxu0 0.0
    %3566 = vmatprep.subr.mxu0 0.0
    %3567 = vmatpush1.msra.mxu0 0.0
    %3568 = vmatprep.subr.mxu0 0.0
    %3569 = vmatpush1.msra.mxu0 0.0
    %3570 = vmatprep.subr.mxu0 0.0
    %3571 = vmatpush1.msra.mxu0 0.0
    %3572 = vmatprep.subr.mxu0 0.0
    %3573 = vmatpush1.msra.mxu0 0.0
    %3574 = vmatprep.subr.mxu0 0.0
    %3575 = vmatpush1.msra.mxu0 0.0
    %3576 = vmatprep.subr.mxu0 0.0
    %3577 = vmatpush1.msra.mxu0 0.0
    %3578 = vmatprep.subr.mxu0 0.0
    %3579 = vmatpush1.msra.mxu0 0.0
    %3580 = vmatprep.subr.mxu0 0.0
    %3581 = vmatpush1.msra.mxu0 0.0
    %3582 = vmatprep.subr.mxu0 0.0
    %3583 = vmatpush1.msra.mxu0 0.0
    %3584 = vmatprep.subr.mxu0 0.0
    %3585 = vmatpush1.msra.mxu0 0.0
    %3586 = vmatprep.subr.mxu0 0.0
    %3587 = vmatpush1.msra.mxu0 0.0
    %3588 = vmatprep.subr.mxu0 0.0
    %3589 = vmatpush1.msra.mxu0 0.0
    %3590 = vmatprep.mubr.f32.mxu0 0.0
    %3591 = vmatmul.mubr.f32.gmra.mrb[0].mxu0 %v3451
    %v3592 = vpop.f32.mrb[0].mxu0
    %v3593 = vadd.f32 0.0, %v3592
    %v3594 = vpop.f32.mrb[0].mxu0
    %3595 = vdwg.mxu0
    %v3596 = vadd.f32 %v3452, %v3522
    %v3597 = vxor.u32 %v3596, 2147483648
    %v3598 = vmul.f32 %v3597, 1.442695
    %v3599 = vpow.pop %v3598
    %v3600 = vadd.f32 %v3599, 1.0
    %v3601 = vrcp.pop %v3600
    %v3602 = vmul.f32 1.0, %v3601
    %v3603 = vadd.f32 %v3453, %v3524
    %v3604 = vxor.u32 %v3603, 2147483648
    %v3605 = vmul.f32 %v3604, 1.442695
    %v3606 = vpow.pop %v3605
    %v3607 = vadd.f32 %v3606, 1.0
    %v3608 = vrcp.pop %v3607
    %v3609 = vmul.f32 1.0, %v3608
    %v3610 = vadd.f32 %v3593, %v2773
    %v3611 = vmul.f32 %v3602, %v3610
    %v3612 = vadd.f32 %v3454, %v3611
    %v3613 = vtanh.pop %v3612
    %v3614 = vsub.f32 1.0, %v3609
    %v3615 = vmul.f32 %v3614, %v3613
    %v3616 = vmul.f32 %v3609, %v3451
    %v3617 = vadd.f32 %v3615, %v3616
    %v3618 = vsel %vm1781, %v3617, %v3451
    %v3619 = vld [vmem:[%s1785] sm:$0xff]
    %v3620 = vld [vmem:[%s1785 + $0x8] sm:$0xff]
    %v3621 = vld [vmem:[%s1785 + $0x10] sm:$0xff]
    %3622 = vmatprep.subr.mxu0 %v2566
    %3623 = vmatpush1.msra.mxu0 %v2565
    %3624 = vmatprep.subr.mxu0 %v2569
    %3625 = vmatpush1.msra.mxu0 %v2568
    %3626 = vmatprep.subr.mxu0 %v2572
    %3627 = vmatpush1.msra.mxu0 %v2571
    %3628 = vmatprep.subr.mxu0 %v2575
    %3629 = vmatpush1.msra.mxu0 %v2574
    %3630 = vmatprep.subr.mxu0 %v2578
    %3631 = vmatpush1.msra.mxu0 %v2577
    %3632 = vmatprep.subr.mxu0 %v2581
    %3633 = vmatpush1.msra.mxu0 %v2580
    %3634 = vmatprep.subr.mxu0 %v2584
    %3635 = vmatpush1.msra.mxu0 %v2583
    %3636 = vmatprep.subr.mxu0 %v2587
    %3637 = vmatpush1.msra.mxu0 %v2586
    %3638 = vmatprep.subr.mxu0 %v2590
    %3639 = vmatpush1.msra.mxu0 %v2589
    %3640 = vmatprep.subr.mxu0 %v2593
    %3641 = vmatpush1.msra.mxu0 %v2592
    %3642 = vmatprep.subr.mxu0 %v2596
    %3643 = vmatpush1.msra.mxu0 %v2595
    %3644 = vmatprep.subr.mxu0 %v2599
    %3645 = vmatpush1.msra.mxu0 %v2598
    %3646 = vmatprep.subr.mxu0 %v2602
    %3647 = vmatpush1.msra.mxu0 %v2601
    %3648 = vmatprep.subr.mxu0 %v2605
    %3649 = vmatpush1.msra.mxu0 %v2604
    %3650 = vmatprep.subr.mxu0 %v2608
    %3651 = vmatpush1.msra.mxu0 %v2607
    %3652 = vmatprep.subr.mxu0 %v2611
    %3653 = vmatpush1.msra.mxu0 %v2610
    %3654 = vmatprep.subr.mxu0 0.0
    %3655 = vmatpush1.msra.mxu0 0.0
    %3656 = vmatprep.subr.mxu0 0.0
    %3657 = vmatpush1.msra.mxu0 0.0
    %3658 = vmatprep.subr.mxu0 0.0
    %3659 = vmatpush1.msra.mxu0 0.0
    %3660 = vmatprep.subr.mxu0 0.0
    %3661 = vmatpush1.msra.mxu0 0.0
    %3662 = vmatprep.subr.mxu0 0.0
    %3663 = vmatpush1.msra.mxu0 0.0
    %3664 = vmatprep.subr.mxu0 0.0
    %3665 = vmatpush1.msra.mxu0 0.0
    %3666 = vmatprep.subr.mxu0 0.0
    %3667 = vmatpush1.msra.mxu0 0.0
    %3668 = vmatprep.subr.mxu0 0.0
    %3669 = vmatpush1.msra.mxu0 0.0
    %3670 = vmatprep.subr.mxu0 0.0
    %3671 = vmatpush1.msra.mxu0 0.0
    %3672 = vmatprep.subr.mxu0 0.0
    %3673 = vmatpush1.msra.mxu0 0.0
    %3674 = vmatprep.subr.mxu0 0.0
    %3675 = vmatpush1.msra.mxu0 0.0
    %3676 = vmatprep.subr.mxu0 0.0
    %3677 = vmatpush1.msra.mxu0 0.0
    %3678 = vmatprep.subr.mxu0 0.0
    %3679 = vmatpush1.msra.mxu0 0.0
    %3680 = vmatprep.subr.mxu0 0.0
    %3681 = vmatpush1.msra.mxu0 0.0
    %3682 = vmatprep.subr.mxu0 0.0
    %3683 = vmatpush1.msra.mxu0 0.0
    %3684 = vmatprep.subr.mxu0 0.0
    %3685 = vmatpush1.msra.mxu0 0.0
    %3686 = vmatprep.mubr.f32.mxu0 0.0
    %3687 = vmatmul.mubr.f32.gmra.mrb[0].mxu0 %v3618
    %v3688 = vpop.f32.mrb[0].mxu0
    %v3689 = vadd.f32 0.0, %v3688
    %v3690 = vpop.f32.mrb[0].mxu0
    %v3691 = vadd.f32 0.0, %v3690
    %3692 = vdwg.mxu0
    %3693 = vmatprep.subr.mxu0 0.0
    %3694 = vmatpush1.msra.mxu0 %v2567
    %3695 = vmatprep.subr.mxu0 0.0
    %3696 = vmatpush1.msra.mxu0 %v2570
    %3697 = vmatprep.subr.mxu0 0.0
    %3698 = vmatpush1.msra.mxu0 %v2573
    %3699 = vmatprep.subr.mxu0 0.0
    %3700 = vmatpush1.msra.mxu0 %v2576
    %3701 = vmatprep.subr.mxu0 0.0
    %3702 = vmatpush1.msra.mxu0 %v2579
    %3703 = vmatprep.subr.mxu0 0.0
    %3704 = vmatpush1.msra.mxu0 %v2582
    %3705 = vmatprep.subr.mxu0 0.0
    %3706 = vmatpush1.msra.mxu0 %v2585
    %3707 = vmatprep.subr.mxu0 0.0
    %3708 = vmatpush1.msra.mxu0 %v2588
    %3709 = vmatprep.subr.mxu0 0.0
    %3710 = vmatpush1.msra.mxu0 %v2591
    %3711 = vmatprep.subr.mxu0 0.0
    %3712 = vmatpush1.msra.mxu0 %v2594
    %3713 = vmatprep.subr.mxu0 0.0
    %3714 = vmatpush1.msra.mxu0 %v2597
    %3715 = vmatprep.subr.mxu0 0.0
    %3716 = vmatpush1.msra.mxu0 %v2600
    %3717 = vmatprep.subr.mxu0 0.0
    %3718 = vmatpush1.msra.mxu0 %v2603
    %3719 = vmatprep.subr.mxu0 0.0
    %3720 = vmatpush1.msra.mxu0 %v2606
    %3721 = vmatprep.subr.mxu0 0.0
    %3722 = vmatpush1.msra.mxu0 %v2609
    %3723 = vmatprep.subr.mxu0 0.0
    %3724 = vmatpush1.msra.mxu0 %v2612
    %3725 = vmatprep.subr.mxu0 0.0
    %3726 = vmatpush1.msra.mxu0 0.0
    %3727 = vmatprep.subr.mxu0 0.0
    %3728 = vmatpush1.msra.mxu0 0.0
    %3729 = vmatprep.subr.mxu0 0.0
    %3730 = vmatpush1.msra.mxu0 0.0
    %3731 = vmatprep.subr.mxu0 0.0
    %3732 = vmatpush1.msra.mxu0 0.0
    %3733 = vmatprep.subr.mxu0 0.0
    %3734 = vmatpush1.msra.mxu0 0.0
    %3735 = vmatprep.subr.mxu0 0.0
    %3736 = vmatpush1.msra.mxu0 0.0
    %3737 = vmatprep.subr.mxu0 0.0
    %3738 = vmatpush1.msra.mxu0 0.0
    %3739 = vmatprep.subr.mxu0 0.0
    %3740 = vmatpush1.msra.mxu0 0.0
    %3741 = vmatprep.subr.mxu0 0.0
    %3742 = vmatpush1.msra.mxu0 0.0
    %3743 = vmatprep.subr.mxu0 0.0
    %3744 = vmatpush1.msra.mxu0 0.0
    %3745 = vmatprep.subr.mxu0 0.0
    %3746 = vmatpush1.msra.mxu0 0.0
    %3747 = vmatprep.subr.mxu0 0.0
    %3748 = vmatpush1.msra.mxu0 0.0
    %3749 = vmatprep.subr.mxu0 0.0
    %3750 = vmatpush1.msra.mxu0 0.0
    %3751 = vmatprep.subr.mxu0 0.0
    %3752 = vmatpush1.msra.mxu0 0.0
    %3753 = vmatprep.subr.mxu0 0.0
    %3754 = vmatpush1.msra.mxu0 0.0
    %3755 = vmatprep.subr.mxu0 0.0
    %3756 = vmatpush1.msra.mxu0 0.0
    %3757 = vmatprep.mubr.f32.mxu0 0.0
    %3758 = vmatmul.mubr.f32.gmra.mrb[0].mxu0 %v3618
    %v3759 = vpop.f32.mrb[0].mxu0
    %v3760 = vadd.f32 0.0, %v3759
    %v3761 = vpop.f32.mrb[0].mxu0
    %3762 = vdwg.mxu0
    %v3763 = vadd.f32 %v3619, %v3689
    %v3764 = vxor.u32 %v3763, 2147483648
    %v3765 = vmul.f32 %v3764, 1.442695
    %v3766 = vpow.pop %v3765
    %v3767 = vadd.f32 %v3766, 1.0
    %v3768 = vrcp.pop %v3767
    %v3769 = vmul.f32 1.0, %v3768
    %v3770 = vadd.f32 %v3620, %v3691
    %v3771 = vxor.u32 %v3770, 2147483648
    %v3772 = vmul.f32 %v3771, 1.442695
    %v3773 = vpow.pop %v3772
    %v3774 = vadd.f32 %v3773, 1.0
    %v3775 = vrcp.pop %v3774
    %v3776 = vmul.f32 1.0, %v3775
    %v3777 = vadd.f32 %v3760, %v2773
    %v3778 = vmul.f32 %v3769, %v3777
    %v3779 = vadd.f32 %v3621, %v3778
    %v3780 = vtanh.pop %v3779
    %v3781 = vsub.f32 1.0, %v3776
    %v3782 = vmul.f32 %v3781, %v3780
    %v3783 = vmul.f32 %v3776, %v3618
    %v3784 = vadd.f32 %v3782, %v3783
    %v3785 = vsel %vm2012, %v3784, %v3618
    %v3786 = vld [vmem:[%s2016] sm:$0xff]
    %v3787 = vld [vmem:[%s2016 + $0x8] sm:$0xff]
    %v3788 = vld [vmem:[%s2016 + $0x10] sm:$0xff]
    %3789 = vmatprep.subr.mxu0 %v2566
    %3790 = vmatpush1.msra.mxu0 %v2565
    %3791 = vmatprep.subr.mxu0 %v2569
    %3792 = vmatpush1.msra.mxu0 %v2568
    %3793 = vmatprep.subr.mxu0 %v2572
    %3794 = vmatpush1.msra.mxu0 %v2571
    %3795 = vmatprep.subr.mxu0 %v2575
    %3796 = vmatpush1.msra.mxu0 %v2574
    %3797 = vmatprep.subr.mxu0 %v2578
    %3798 = vmatpush1.msra.mxu0 %v2577
    %3799 = vmatprep.subr.mxu0 %v2581
    %3800 = vmatpush1.msra.mxu0 %v2580
    %3801 = vmatprep.subr.mxu0 %v2584
    %3802 = vmatpush1.msra.mxu0 %v2583
    %3803 = vmatprep.subr.mxu0 %v2587
    %3804 = vmatpush1.msra.mxu0 %v2586
    %3805 = vmatprep.subr.mxu0 %v2590
    %3806 = vmatpush1.msra.mxu0 %v2589
    %3807 = vmatprep.subr.mxu0 %v2593
    %3808 = vmatpush1.msra.mxu0 %v2592
    %3809 = vmatprep.subr.mxu0 %v2596
    %3810 = vmatpush1.msra.mxu0 %v2595
    %3811 = vmatprep.subr.mxu0 %v2599
    %3812 = vmatpush1.msra.mxu0 %v2598
    %3813 = vmatprep.subr.mxu0 %v2602
    %3814 = vmatpush1.msra.mxu0 %v2601
    %3815 = vmatprep.subr.mxu0 %v2605
    %3816 = vmatpush1.msra.mxu0 %v2604
    %3817 = vmatprep.subr.mxu0 %v2608
    %3818 = vmatpush1.msra.mxu0 %v2607
    %3819 = vmatprep.subr.mxu0 %v2611
    %3820 = vmatpush1.msra.mxu0 %v2610
    %3821 = vmatprep.subr.mxu0 0.0
    %3822 = vmatpush1.msra.mxu0 0.0
    %3823 = vmatprep.subr.mxu0 0.0
    %3824 = vmatpush1.msra.mxu0 0.0
    %3825 = vmatprep.subr.mxu0 0.0
    %3826 = vmatpush1.msra.mxu0 0.0
    %3827 = vmatprep.subr.mxu0 0.0
    %3828 = vmatpush1.msra.mxu0 0.0
    %3829 = vmatprep.subr.mxu0 0.0
    %3830 = vmatpush1.msra.mxu0 0.0
    %3831 = vmatprep.subr.mxu0 0.0
    %3832 = vmatpush1.msra.mxu0 0.0
    %3833 = vmatprep.subr.mxu0 0.0
    %3834 = vmatpush1.msra.mxu0 0.0
    %3835 = vmatprep.subr.mxu0 0.0
    %3836 = vmatpush1.msra.mxu0 0.0
    %3837 = vmatprep.subr.mxu0 0.0
    %3838 = vmatpush1.msra.mxu0 0.0
    %3839 = vmatprep.subr.mxu0 0.0
    %3840 = vmatpush1.msra.mxu0 0.0
    %3841 = vmatprep.subr.mxu0 0.0
    %3842 = vmatpush1.msra.mxu0 0.0
    %3843 = vmatprep.subr.mxu0 0.0
    %3844 = vmatpush1.msra.mxu0 0.0
    %3845 = vmatprep.subr.mxu0 0.0
    %3846 = vmatpush1.msra.mxu0 0.0
    %3847 = vmatprep.subr.mxu0 0.0
    %3848 = vmatpush1.msra.mxu0 0.0
    %3849 = vmatprep.subr.mxu0 0.0
    %3850 = vmatpush1.msra.mxu0 0.0
    %3851 = vmatprep.subr.mxu0 0.0
    %3852 = vmatpush1.msra.mxu0 0.0
    %3853 = vmatprep.mubr.f32.mxu0 0.0
    %3854 = vmatmul.mubr.f32.gmra.mrb[0].mxu0 %v3785
    %v3855 = vpop.f32.mrb[0].mxu0
    %v3856 = vadd.f32 0.0, %v3855
    %v3857 = vpop.f32.mrb[0].mxu0
    %v3858 = vadd.f32 0.0, %v3857
    %3859 = vdwg.mxu0
    %3860 = vmatprep.subr.mxu0 0.0
    %3861 = vmatpush1.msra.mxu0 %v2567
    %3862 = vmatprep.subr.mxu0 0.0
    %3863 = vmatpush1.msra.mxu0 %v2570
    %3864 = vmatprep.subr.mxu0 0.0
    %3865 = vmatpush1.msra.mxu0 %v2573
    %3866 = vmatprep.subr.mxu0 0.0
    %3867 = vmatpush1.msra.mxu0 %v2576
    %3868 = vmatprep.subr.mxu0 0.0
    %3869 = vmatpush1.msra.mxu0 %v2579
    %3870 = vmatprep.subr.mxu0 0.0
    %3871 = vmatpush1.msra.mxu0 %v2582
    %3872 = vmatprep.subr.mxu0 0.0
    %3873 = vmatpush1.msra.mxu0 %v2585
    %3874 = vmatprep.subr.mxu0 0.0
    %3875 = vmatpush1.msra.mxu0 %v2588
    %3876 = vmatprep.subr.mxu0 0.0
    %3877 = vmatpush1.msra.mxu0 %v2591
    %3878 = vmatprep.subr.mxu0 0.0
    %3879 = vmatpush1.msra.mxu0 %v2594
    %3880 = vmatprep.subr.mxu0 0.0
    %3881 = vmatpush1.msra.mxu0 %v2597
    %3882 = vmatprep.subr.mxu0 0.0
    %3883 = vmatpush1.msra.mxu0 %v2600
    %3884 = vmatprep.subr.mxu0 0.0
    %3885 = vmatpush1.msra.mxu0 %v2603
    %3886 = vmatprep.subr.mxu0 0.0
    %3887 = vmatpush1.msra.mxu0 %v2606
    %3888 = vmatprep.subr.mxu0 0.0
    %3889 = vmatpush1.msra.mxu0 %v2609
    %3890 = vmatprep.subr.mxu0 0.0
    %3891 = vmatpush1.msra.mxu0 %v2612
    %3892 = vmatprep.subr.mxu0 0.0
    %3893 = vmatpush1.msra.mxu0 0.0
    %3894 = vmatprep.subr.mxu0 0.0
    %3895 = vmatpush1.msra.mxu0 0.0
    %3896 = vmatprep.subr.mxu0 0.0
    %3897 = vmatpush1.msra.mxu0 0.0
    %3898 = vmatprep.subr.mxu0 0.0
    %3899 = vmatpush1.msra.mxu0 0.0
    %3900 = vmatprep.subr.mxu0 0.0
    %3901 = vmatpush1.msra.mxu0 0.0
    %3902 = vmatprep.subr.mxu0 0.0
    %3903 = vmatpush1.msra.mxu0 0.0
    %3904 = vmatprep.subr.mxu0 0.0
    %3905 = vmatpush1.msra.mxu0 0.0
    %3906 = vmatprep.subr.mxu0 0.0
    %3907 = vmatpush1.msra.mxu0 0.0
    %3908 = vmatprep.subr.mxu0 0.0
    %3909 = vmatpush1.msra.mxu0 0.0
    %3910 = vmatprep.subr.mxu0 0.0
    %3911 = vmatpush1.msra.mxu0 0.0
    %3912 = vmatprep.subr.mxu0 0.0
    %3913 = vmatpush1.msra.mxu0 0.0
    %3914 = vmatprep.subr.mxu0 0.0
    %3915 = vmatpush1.msra.mxu0 0.0
    %3916 = vmatprep.subr.mxu0 0.0
    %3917 = vmatpush1.msra.mxu0 0.0
    %3918 = vmatprep.subr.mxu0 0.0
    %3919 = vmatpush1.msra.mxu0 0.0
    %3920 = vmatprep.subr.mxu0 0.0
    %3921 = vmatpush1.msra.mxu0 0.0
    %3922 = vmatprep.subr.mxu0 0.0
    %3923 = vmatpush1.msra.mxu0 0.0
    %3924 = vmatprep.mubr.f32.mxu0 0.0
    %3925 = vmatmul.mubr.f32.gmra.mrb[0].mxu0 %v3785
    %v3926 = vpop.f32.mrb[0].mxu0
    %v3927 = vadd.f32 0.0, %v3926
    %v3928 = vpop.f32.mrb[0].mxu0
    %3929 = vdwg.mxu0
    %v3930 = vadd.f32 %v3786, %v3856
    %v3931 = vxor.u32 %v3930, 2147483648
    %v3932 = vmul.f32 %v3931, 1.442695
    %v3933 = vpow.pop %v3932
    %v3934 = vadd.f32 %v3933, 1.0
    %v3935 = vrcp.pop %v3934
    %v3936 = vmul.f32 1.0, %v3935
    %v3937 = vadd.f32 %v3787, %v3858
    %v3938 = vxor.u32 %v3937, 2147483648
    %v3939 = vmul.f32 %v3938, 1.442695
    %v3940 = vpow.pop %v3939
    %v3941 = vadd.f32 %v3940, 1.0
    %v3942 = vrcp.pop %v3941
    %v3943 = vmul.f32 1.0, %v3942
    %v3944 = vadd.f32 %v3927, %v2773
    %v3945 = vmul.f32 %v3936, %v3944
    %v3946 = vadd.f32 %v3788, %v3945
    %v3947 = vtanh.pop %v3946
    %v3948 = vsub.f32 1.0, %v3943
    %v3949 = vmul.f32 %v3948, %v3947
    %v3950 = vmul.f32 %v3943, %v3785
    %v3951 = vadd.f32 %v3949, %v3950
    %v3952 = vsel %vm2243, %v3951, %v3785
    %v3953 = vld [vmem:[%s10] sm:$0xff]
    %v3954 = vld [vmem:[%s10 + $0x8] sm:$0xff]
    %v3955 = vld [vmem:[%s10 + $0x10] sm:$0xff]
    %v3956 = vld [vmem:[%s10 + $0x18] sm:$0xff]
    %v3957 = vld [vmem:[%s10 + $0x20] sm:$0xff]
    %v3958 = vld [vmem:[%s10 + $0x28] sm:$0xff]
    %v3959 = vld [vmem:[%s10 + $0x30] sm:$0xff]
    %v3960 = vld [vmem:[%s10 + $0x38] sm:$0xff]
    %v3961 = vld [vmem:[%s10 + $0x40] sm:$0xff]
    %v3962 = vld [vmem:[%s10 + $0x48] sm:$0xff]
    %v3963 = vld [vmem:[%s10 + $0x50] sm:$0xff]
    %v3964 = vld [vmem:[%s10 + $0x58] sm:$0xff]
    %v3965 = vld [vmem:[%s10 + $0x60] sm:$0xff]
    %v3966 = vld [vmem:[%s10 + $0x68] sm:$0xff]
    %v3967 = vld [vmem:[%s10 + $0x70] sm:$0xff]
    %v3968 = vld [vmem:[%s10 + $0x78] sm:$0xff]
    %v3969 = vld [vmem:[#allocation11] sm:$0x1]
    %v3971 = vlaneseq
    %v3972 = vshrl.u32 %v3971, 7
    %v3973 = vsub.s32 0, %v3972
    %v3974 = vrot.slane %v3969, %v3973
    %3976 = vmatprep.subr.mxu0 0.0
    %3977 = vmatpush1.msra.mxu0 %v3953
    %3978 = vmatprep.subr.mxu0 0.0
    %3979 = vmatpush1.msra.mxu0 %v3954
    %3980 = vmatprep.subr.mxu0 0.0
    %3981 = vmatpush1.msra.mxu0 %v3955
    %3982 = vmatprep.subr.mxu0 0.0
    %3983 = vmatpush1.msra.mxu0 %v3956
    %3984 = vmatprep.subr.mxu0 0.0
    %3985 = vmatpush1.msra.mxu0 %v3957
    %3986 = vmatprep.subr.mxu0 0.0
    %3987 = vmatpush1.msra.mxu0 %v3958
    %3988 = vmatprep.subr.mxu0 0.0
    %3989 = vmatpush1.msra.mxu0 %v3959
    %3990 = vmatprep.subr.mxu0 0.0
    %3991 = vmatpush1.msra.mxu0 %v3960
    %3992 = vmatprep.subr.mxu0 0.0
    %3993 = vmatpush1.msra.mxu0 %v3961
    %3994 = vmatprep.subr.mxu0 0.0
    %3995 = vmatpush1.msra.mxu0 %v3962
    %3996 = vmatprep.subr.mxu0 0.0
    %3997 = vmatpush1.msra.mxu0 %v3963
    %3998 = vmatprep.subr.mxu0 0.0
    %3999 = vmatpush1.msra.mxu0 %v3964
    %4000 = vmatprep.subr.mxu0 0.0
    %4001 = vmatpush1.msra.mxu0 %v3965
    %4002 = vmatprep.subr.mxu0 0.0
    %4003 = vmatpush1.msra.mxu0 %v3966
    %4004 = vmatprep.subr.mxu0 0.0
    %4005 = vmatpush1.msra.mxu0 %v3967
    %4006 = vmatprep.subr.mxu0 0.0
    %4007 = vmatpush1.msra.mxu0 %v3968
    %4008 = vmatprep.subr.mxu0 0.0
    %4009 = vmatpush1.msra.mxu0 0.0
    %4010 = vmatprep.subr.mxu0 0.0
    %4011 = vmatpush1.msra.mxu0 0.0
    %4012 = vmatprep.subr.mxu0 0.0
    %4013 = vmatpush1.msra.mxu0 0.0
    %4014 = vmatprep.subr.mxu0 0.0
    %4015 = vmatpush1.msra.mxu0 0.0
    %4016 = vmatprep.subr.mxu0 0.0
    %4017 = vmatpush1.msra.mxu0 0.0
    %4018 = vmatprep.subr.mxu0 0.0
    %4019 = vmatpush1.msra.mxu0 0.0
    %4020 = vmatprep.subr.mxu0 0.0
    %4021 = vmatpush1.msra.mxu0 0.0
    %4022 = vmatprep.subr.mxu0 0.0
    %4023 = vmatpush1.msra.mxu0 0.0
    %4024 = vmatprep.subr.mxu0 0.0
    %4025 = vmatpush1.msra.mxu0 0.0
    %4026 = vmatprep.subr.mxu0 0.0
    %4027 = vmatpush1.msra.mxu0 0.0
    %4028 = vmatprep.subr.mxu0 0.0
    %4029 = vmatpush1.msra.mxu0 0.0
    %4030 = vmatprep.subr.mxu0 0.0
    %4031 = vmatpush1.msra.mxu0 0.0
    %4032 = vmatprep.subr.mxu0 0.0
    %4033 = vmatpush1.msra.mxu0 0.0
    %4034 = vmatprep.subr.mxu0 0.0
    %4035 = vmatpush1.msra.mxu0 0.0
    %4036 = vmatprep.subr.mxu0 0.0
    %4037 = vmatpush1.msra.mxu0 0.0
    %4038 = vmatprep.subr.mxu0 0.0
    %4039 = vmatpush1.msra.mxu0 0.0
    %4040 = vmatprep.mubr.f32.mxu0 0.0
    %4041 = vmatmul.mubr.f32.gmra.mrb[0].mxu0 %v3952
    %v4042 = vpop.f32.mrb[0].mxu0
    %v4043 = vadd.f32 %v3974, %v4042
    %v4044 = vpop.f32.mrb[0].mxu0
    %4045 = vdwg.mxu0
    %4046 = vst [vmem:[%s12] sm:$0xff] %v4043
    // Predicated region
    $region70: #{_forward.1} parent=1 // pred_check
      _
    $region71: #{_forward.1} parent=1 // pred_check_branch
      %4048 = sbr.rel (0) target = $region73
    $region72: #{_forward.1} parent=1 // pred_region
      _
    $region73: #{_forward.1} parent=1 // pred_fallthru
      _
    // Predicated region
    $region74: #{_forward.1} parent=1 // pred_check
      _
    $region75: #{_forward.1} parent=1 // pred_check_branch
      %4050 = sbr.rel (0) target = $region77
    $region76: #{_forward.1} parent=1 // pred_region
      _
    $region77: #{_forward.1} parent=1 // pred_fallthru
      _
    %4051 = vsyncpa [#allocation5], 1
    %4052 = vsyncpa [#allocation7], 1
    %4053 = vsyncpa [#allocation10], 1

</llo_original>
